<compile_context>
chip_gen: v7x
topology: tpu7x:2x2x1
jax: 0.10.0
libtpu: 0.0.40
codegen_flags: <defaults>
</compile_context>

<pallas_src>
import functools

import jax
import jax.numpy as jnp
from jax.experimental import pallas as pl
from jax.experimental.pallas import tpu as pltpu

NODE_FEATURE_DIMS = [119, 5, 12, 12, 10, 6, 6, 2, 2]
NUM_FEATS = len(NODE_FEATURE_DIMS)

# static row offsets of each feature's table inside the stacked table
_OFFSETS = []
_acc = 0
for _d in NODE_FEATURE_DIMS:
    _OFFSETS.append(_acc)
    _acc += _d
TOTAL_ROWS = _acc                              # 174
ROWS_PAD = ((TOTAL_ROWS + 127) // 128) * 128   # pad K dim of the matmul -> 256


def _node_encoder_kernel(x_ref, table_ref, out_ref, *, tile_n):
    idx = x_ref[...]                                           # (tile_n, 9) int32

    # hoisted row-id iota, reused by all 9 compares
    iota = jax.lax.broadcasted_iota(jnp.int32, (tile_n, ROWS_PAD), 1)

    # multi-hot: 9 ones per row.  Offsets are static Python ints (scalar
    # literals in the jaxpr), and the feature row ranges are disjoint, so the
    # OR of per-feature one-hots is exact.
    mh = (idx[:, 0:1] + _OFFSETS[0]) == iota                   # (tile_n, ROWS_PAD)
    for i in range(1, NUM_FEATS):
        mh = jnp.logical_or(mh, (idx[:, i:i + 1] + _OFFSETS[i]) == iota)
    mh = mh.astype(table_ref.dtype)

    # single MXU matmul -> full-width lane-dense tile, single store
    out_ref[...] = jnp.dot(
        mh, table_ref[...], preferred_element_type=jnp.float32
    ).astype(out_ref.dtype)


def node_encoder_forward(x, block_table, emb_dim, *, tile_n=512):
    """x: (N, 9) int32; block_table: (ROWS_PAD, 9*emb_dim) -> (N, 9*emb_dim) f32."""
    assert tile_n % 8 == 0
    N = x.shape[0]
    out_dim = NUM_FEATS * emb_dim
    assert block_table.shape == (ROWS_PAD, out_dim)

    n_pad = pl.cdiv(N, tile_n) * tile_n
    if n_pad != N:
        # pad with index 0 (valid for every feature); padded rows sliced off below
        x = jnp.pad(x, ((0, n_pad - N), (0, 0)))

    kernel = functools.partial(_node_encoder_kernel, tile_n=tile_n)

    out = pl.pallas_call(
        kernel,
        out_shape=jax.ShapeDtypeStruct((n_pad, out_dim), jnp.float32),
        grid_spec=pltpu.PrefetchScalarGridSpec(
            num_scalar_prefetch=0,
            grid=(n_pad // tile_n,),
            in_specs=[
                pl.BlockSpec((tile_n, NUM_FEATS), lambda i: (i, 0)),
                pl.BlockSpec((ROWS_PAD, out_dim), lambda i: (0, 0)),
            ],
            out_specs=pl.BlockSpec((tile_n, out_dim), lambda i: (i, 0)),
        ),
        compiler_params=pltpu.CompilerParams(
            dimension_semantics=("parallel",)),
    )(x, block_table)

    return out[:N] if n_pad != N else out


def init_stacked_table(key, emb_dim, dtype=jnp.float32):
    """Xavier-uniform init per table (matches torch.nn.init.xavier_uniform_),
    laid out block-diagonally: feature i's rows sit at global row offset
    _OFFSETS[i] and occupy columns [i*emb_dim : (i+1)*emb_dim]; everything
    else (including the ROWS_PAD padding rows) is zero."""
    out_dim = NUM_FEATS * emb_dim
    tables = []
    keys = jax.random.split(key, NUM_FEATS)
    for k, dim in zip(keys, NODE_FEATURE_DIMS):
        a = (6.0 / (dim + emb_dim)) ** 0.5
        tables.append(jax.random.uniform(k, (dim, emb_dim),
                                         minval=-a, maxval=a,
                                         dtype=jnp.float32))
    block = jnp.zeros((ROWS_PAD, out_dim), jnp.float32)
    for i, t in enumerate(tables):
        r0 = _OFFSETS[i]
        block = block.at[r0:r0 + t.shape[0],
                         i * emb_dim:(i + 1) * emb_dim].set(t)
    # NOTE: pass dtype=jnp.bfloat16 on v5e (and optionally v7x) to avoid the
    # f32 MXU multi-pass; the 0/1 multi-hot stays exact, only table rounding.
    return block.astype(dtype), tables


def reference_forward(x, tables):
    # pure-JAX reference of the PyTorch forward
    outs = [tables[i][x[:, i]] for i in range(NUM_FEATS)]
    return jnp.concatenate(outs, axis=1)


if __name__ == "__main__":
    emb_dim = 32
    N = 8

    key = jax.random.PRNGKey(0)
    k_tab, k_idx = jax.random.split(key)

    block_table, tables = init_stacked_table(k_tab, emb_dim)

    # build valid random indices per feature column
    idx_keys = jax.random.split(k_idx, NUM_FEATS)
    cols = [jax.random.randint(idx_keys[i], (N, 1), 0, NODE_FEATURE_DIMS[i],
                               dtype=jnp.int32)
            for i in range(NUM_FEATS)]
    x = jnp.concatenate(cols, axis=1)                  # (N, 9) int32

    out = node_encoder_forward(x, block_table, emb_dim)
    out = jax.block_until_ready(out)

    ref = reference_forward(x, tables)
    assert out.shape == (N, NUM_FEATS * emb_dim)
    assert jnp.allclose(out, ref, atol=1e-5, rtol=1e-5)

    print("KERNEL_OK")
</pallas_src>

<mosaic_0001>
module attributes {stable_mosaic.version = 11 : i64} {
  func.func @_node_encoder_kernel(%arg0: i32, %arg1: memref<512x9xi32, #tpu.memory_space<vmem>>, %arg2: memref<256x288xf32, #tpu.memory_space<vmem>>, %arg3: memref<512x288xf32, #tpu.memory_space<vmem>>) attributes {dimension_semantics = [#tpu.dimension_semantics<parallel>], iteration_bounds = array<i64: 1>, scalar_prefetch = 0 : i64, scratch_operands = 0 : i64, tpu.core_type = #tpu.core_type<tc>, window_params = [{transform_indices = @transform_0, window_bounds = array<i64: 512, 9>}, {pipeline_mode = #tpu.pipeline_mode<synchronous>, transform_indices = @transform_1, window_bounds = array<i64: 256, 288>}, {transform_indices = @transform_2, window_bounds = array<i64: 512, 288>}]} {
    %c0 = arith.constant 0 : index
    %c0_0 = arith.constant 0 : index
    %0 = vector.load %arg1[%c0, %c0_0] : memref<512x9xi32, #tpu.memory_space<vmem>>, vector<512x9xi32>
    %1 = tpu.iota {dimensions = array<i32: 1>} : vector<512x256xi32>
    %2 = vector.extract_strided_slice %0 {offsets = [0, 0], sizes = [512, 1], strides = [1, 1]} : vector<512x9xi32> to vector<512x1xi32>
    %c0_i32 = arith.constant 0 : i32
    %3 = vector.broadcast %c0_i32 : i32 to vector<512x1xi32>
    %4 = arith.addi %2, %3 : vector<512x1xi32>
    %5 = vector.broadcast %4 : vector<512x1xi32> to vector<512x256xi32>
    %6 = arith.cmpi eq, %5, %1 : vector<512x256xi32>
    %7 = vector.extract_strided_slice %0 {offsets = [0, 1], sizes = [512, 1], strides = [1, 1]} : vector<512x9xi32> to vector<512x1xi32>
    %c119_i32 = arith.constant 119 : i32
    %8 = vector.broadcast %c119_i32 : i32 to vector<512x1xi32>
    %9 = arith.addi %7, %8 : vector<512x1xi32>
    %10 = vector.broadcast %9 : vector<512x1xi32> to vector<512x256xi32>
    %11 = arith.cmpi eq, %10, %1 : vector<512x256xi32>
    %12 = arith.ori %6, %11 : vector<512x256xi1>
    %13 = vector.extract_strided_slice %0 {offsets = [0, 2], sizes = [512, 1], strides = [1, 1]} : vector<512x9xi32> to vector<512x1xi32>
    %c124_i32 = arith.constant 124 : i32
    %14 = vector.broadcast %c124_i32 : i32 to vector<512x1xi32>
    %15 = arith.addi %13, %14 : vector<512x1xi32>
    %16 = vector.broadcast %15 : vector<512x1xi32> to vector<512x256xi32>
    %17 = arith.cmpi eq, %16, %1 : vector<512x256xi32>
    %18 = arith.ori %12, %17 : vector<512x256xi1>
    %19 = vector.extract_strided_slice %0 {offsets = [0, 3], sizes = [512, 1], strides = [1, 1]} : vector<512x9xi32> to vector<512x1xi32>
    %c136_i32 = arith.constant 136 : i32
    %20 = vector.broadcast %c136_i32 : i32 to vector<512x1xi32>
    %21 = arith.addi %19, %20 : vector<512x1xi32>
    %22 = vector.broadcast %21 : vector<512x1xi32> to vector<512x256xi32>
    %23 = arith.cmpi eq, %22, %1 : vector<512x256xi32>
    %24 = arith.ori %18, %23 : vector<512x256xi1>
    %25 = vector.extract_strided_slice %0 {offsets = [0, 4], sizes = [512, 1], strides = [1, 1]} : vector<512x9xi32> to vector<512x1xi32>
    %c148_i32 = arith.constant 148 : i32
    %26 = vector.broadcast %c148_i32 : i32 to vector<512x1xi32>
    %27 = arith.addi %25, %26 : vector<512x1xi32>
    %28 = vector.broadcast %27 : vector<512x1xi32> to vector<512x256xi32>
    %29 = arith.cmpi eq, %28, %1 : vector<512x256xi32>
    %30 = arith.ori %24, %29 : vector<512x256xi1>
    %31 = vector.extract_strided_slice %0 {offsets = [0, 5], sizes = [512, 1], strides = [1, 1]} : vector<512x9xi32> to vector<512x1xi32>
    %c158_i32 = arith.constant 158 : i32
    %32 = vector.broadcast %c158_i32 : i32 to vector<512x1xi32>
    %33 = arith.addi %31, %32 : vector<512x1xi32>
    %34 = vector.broadcast %33 : vector<512x1xi32> to vector<512x256xi32>
    %35 = arith.cmpi eq, %34, %1 : vector<512x256xi32>
    %36 = arith.ori %30, %35 : vector<512x256xi1>
    %37 = vector.extract_strided_slice %0 {offsets = [0, 6], sizes = [512, 1], strides = [1, 1]} : vector<512x9xi32> to vector<512x1xi32>
    %c164_i32 = arith.constant 164 : i32
    %38 = vector.broadcast %c164_i32 : i32 to vector<512x1xi32>
    %39 = arith.addi %37, %38 : vector<512x1xi32>
    %40 = vector.broadcast %39 : vector<512x1xi32> to vector<512x256xi32>
    %41 = arith.cmpi eq, %40, %1 : vector<512x256xi32>
    %42 = arith.ori %36, %41 : vector<512x256xi1>
    %43 = vector.extract_strided_slice %0 {offsets = [0, 7], sizes = [512, 1], strides = [1, 1]} : vector<512x9xi32> to vector<512x1xi32>
    %c170_i32 = arith.constant 170 : i32
    %44 = vector.broadcast %c170_i32 : i32 to vector<512x1xi32>
    %45 = arith.addi %43, %44 : vector<512x1xi32>
    %46 = vector.broadcast %45 : vector<512x1xi32> to vector<512x256xi32>
    %47 = arith.cmpi eq, %46, %1 : vector<512x256xi32>
    %48 = arith.ori %42, %47 : vector<512x256xi1>
    %49 = vector.extract_strided_slice %0 {offsets = [0, 8], sizes = [512, 1], strides = [1, 1]} : vector<512x9xi32> to vector<512x1xi32>
    %c172_i32 = arith.constant 172 : i32
    %50 = vector.broadcast %c172_i32 : i32 to vector<512x1xi32>
    %51 = arith.addi %49, %50 : vector<512x1xi32>
    %52 = vector.broadcast %51 : vector<512x1xi32> to vector<512x256xi32>
    %53 = arith.cmpi eq, %52, %1 : vector<512x256xi32>
    %54 = arith.ori %48, %53 : vector<512x256xi1>
    %55 = arith.extui %54 : vector<512x256xi1> to vector<512x256xi32>
    %56 = arith.sitofp %55 : vector<512x256xi32> to vector<512x256xf32>
    %c0_1 = arith.constant 0 : index
    %c0_2 = arith.constant 0 : index
    %57 = vector.load %arg2[%c0_1, %c0_2] : memref<256x288xf32, #tpu.memory_space<vmem>>, vector<256x288xf32>
    %cst = arith.constant dense<0.000000e+00> : vector<512x288xf32>
    %58 = tpu.matmul %56, %57, %cst {dimension_numbers = #tpu.dot_dimension_numbers<[1], [0], [0], [1], [0, 0, 1, 1], [], []>} : vector<512x256xf32>, vector<256x288xf32>, vector<512x288xf32> -> vector<512x288xf32>
    %c0_3 = arith.constant 0 : index
    %c0_4 = arith.constant 0 : index
    %59 = vector.load %arg3[%c0_3, %c0_4] : memref<512x288xf32, #tpu.memory_space<vmem>>, vector<512x288xf32>
    tpu.vector_store %arg3[%c0_3, %c0_4], %58 {strides = array<i32>} : memref<512x288xf32, #tpu.memory_space<vmem>>, vector<512x288xf32>,
    return
  }
  func.func @transform_0(%arg0: i32) -> (i32, i32) {
    %c0_i32 = arith.constant 0 : i32
    %c0_i32_0 = arith.constant 0 : i32
    return %arg0, %c0_i32 : i32, i32
  }
  func.func @transform_1(%arg0: i32) -> (i32, i32) {
    %c0_i32 = arith.constant 0 : i32
    %c0_i32_0 = arith.constant 0 : i32
    %c0_i32_1 = arith.constant 0 : i32
    return %c0_i32, %c0_i32_0 : i32, i32
  }
  func.func @transform_2(%arg0: i32) -> (i32, i32) {
    %c0_i32 = arith.constant 0 : i32
    %c0_i32_0 = arith.constant 0 : i32
    return %arg0, %c0_i32 : i32, i32
  }
}

</mosaic_0001>

<llo_original>
// kernel: tpu_custom_call.1
$region0: #{tpu_custom_call.1}
  #allocation0 [shape = 'u32[]', space=smem, size = 0x4, offset = 0x4, fixed_abs, tag = 'smem constant byte address 0x4 - core index']
  #allocation1 [shape = 'u32[144,128]{1,0:T(1,128)}', space=vmem, size = 0x12000, scoped, tag = 'internal scratch']
  %s0 = inlined_call_operand.vmem [shape: s32[512,9], index: 0, kind: input, shape index: {}]
  %s1 = inlined_call_operand.vmem [shape: f32[256,288], index: 1, kind: input, shape index: {}]
  %s2 = inlined_call_operand.vmem [shape: f32[512,288], index: 2, kind: output, shape index: {}]
  %s3 = sld [smem:[#allocation0]]
  $region18: #{tpu_custom_call.1} parent=0
    _
  %s5 = ssub.s32 1, %s3
  %s6 = scalar_select 0, %s5, %s3
  // Predicated region
  $region2: #{tpu_custom_call.1} parent=0 // pred_check
    _
  $region3: #{tpu_custom_call.1} parent=0 // pred_check_branch
    %8 = sbr.rel (0) target = $region5
  $region4: #{tpu_custom_call.1} parent=0 // pred_region
    _
  $region5: #{tpu_custom_call.1} parent=0 // pred_fallthru
    _
  // Predicated region
  $region6: #{tpu_custom_call.1} parent=0 // pred_check
    _
  $region7: #{tpu_custom_call.1} parent=0 // pred_check_branch
    %10 = sbr.rel (0) target = $region9
  $region8: #{tpu_custom_call.1} parent=0 // pred_region
    _
  $region9: #{tpu_custom_call.1} parent=0 // pred_fallthru
    _
  %v11 = vld [vmem:[%s0] sm:$0xff]
  %v12 = vld [vmem:[%s0 + $0x8] sm:$0xff]
  %v13 = vld [vmem:[%s0 + $0x10] sm:$0xff]
  %v14 = vld [vmem:[%s0 + $0x18] sm:$0xff]
  %v15 = vld [vmem:[%s0 + $0x20] sm:$0xff]
  %v16 = vld [vmem:[%s0 + $0x28] sm:$0xff]
  %v17 = vld [vmem:[%s0 + $0x30] sm:$0xff]
  %v18 = vld [vmem:[%s0 + $0x38] sm:$0xff]
  %v19 = vld [vmem:[%s0 + $0x40] sm:$0xff]
  %v20 = vld [vmem:[%s0 + $0x48] sm:$0xff]
  %v21 = vld [vmem:[%s0 + $0x50] sm:$0xff]
  %v22 = vld [vmem:[%s0 + $0x58] sm:$0xff]
  %v23 = vld [vmem:[%s0 + $0x60] sm:$0xff]
  %v24 = vld [vmem:[%s0 + $0x68] sm:$0xff]
  %v25 = vld [vmem:[%s0 + $0x70] sm:$0xff]
  %v26 = vld [vmem:[%s0 + $0x78] sm:$0xff]
  %v27 = vld [vmem:[%s0 + $0x80] sm:$0xff]
  %v28 = vld [vmem:[%s0 + $0x88] sm:$0xff]
  %v29 = vld [vmem:[%s0 + $0x90] sm:$0xff]
  %v30 = vld [vmem:[%s0 + $0x98] sm:$0xff]
  %v31 = vld [vmem:[%s0 + $0xa0] sm:$0xff]
  %v32 = vld [vmem:[%s0 + $0xa8] sm:$0xff]
  %v33 = vld [vmem:[%s0 + $0xb0] sm:$0xff]
  %v34 = vld [vmem:[%s0 + $0xb8] sm:$0xff]
  %v35 = vld [vmem:[%s0 + $0xc0] sm:$0xff]
  %v36 = vld [vmem:[%s0 + $0xc8] sm:$0xff]
  %v37 = vld [vmem:[%s0 + $0xd0] sm:$0xff]
  %v38 = vld [vmem:[%s0 + $0xd8] sm:$0xff]
  %v39 = vld [vmem:[%s0 + $0xe0] sm:$0xff]
  %v40 = vld [vmem:[%s0 + $0xe8] sm:$0xff]
  %v41 = vld [vmem:[%s0 + $0xf0] sm:$0xff]
  %v42 = vld [vmem:[%s0 + $0xf8] sm:$0xff]
  %v43 = vld [vmem:[%s0 + $0x100] sm:$0xff]
  %v44 = vld [vmem:[%s0 + $0x108] sm:$0xff]
  %v45 = vld [vmem:[%s0 + $0x110] sm:$0xff]
  %v46 = vld [vmem:[%s0 + $0x118] sm:$0xff]
  %v47 = vld [vmem:[%s0 + $0x120] sm:$0xff]
  %v48 = vld [vmem:[%s0 + $0x128] sm:$0xff]
  %v49 = vld [vmem:[%s0 + $0x130] sm:$0xff]
  %v50 = vld [vmem:[%s0 + $0x138] sm:$0xff]
  %v51 = vld [vmem:[%s0 + $0x140] sm:$0xff]
  %v52 = vld [vmem:[%s0 + $0x148] sm:$0xff]
  %v53 = vld [vmem:[%s0 + $0x150] sm:$0xff]
  %v54 = vld [vmem:[%s0 + $0x158] sm:$0xff]
  %v55 = vld [vmem:[%s0 + $0x160] sm:$0xff]
  %v56 = vld [vmem:[%s0 + $0x168] sm:$0xff]
  %v57 = vld [vmem:[%s0 + $0x170] sm:$0xff]
  %v58 = vld [vmem:[%s0 + $0x178] sm:$0xff]
  %v59 = vld [vmem:[%s0 + $0x180] sm:$0xff]
  %v60 = vld [vmem:[%s0 + $0x188] sm:$0xff]
  %v61 = vld [vmem:[%s0 + $0x190] sm:$0xff]
  %v62 = vld [vmem:[%s0 + $0x198] sm:$0xff]
  %v63 = vld [vmem:[%s0 + $0x1a0] sm:$0xff]
  %v64 = vld [vmem:[%s0 + $0x1a8] sm:$0xff]
  %v65 = vld [vmem:[%s0 + $0x1b0] sm:$0xff]
  %v66 = vld [vmem:[%s0 + $0x1b8] sm:$0xff]
  %v67 = vld [vmem:[%s0 + $0x1c0] sm:$0xff]
  %v68 = vld [vmem:[%s0 + $0x1c8] sm:$0xff]
  %v69 = vld [vmem:[%s0 + $0x1d0] sm:$0xff]
  %v70 = vld [vmem:[%s0 + $0x1d8] sm:$0xff]
  %v71 = vld [vmem:[%s0 + $0x1e0] sm:$0xff]
  %v72 = vld [vmem:[%s0 + $0x1e8] sm:$0xff]
  %v73 = vld [vmem:[%s0 + $0x1f0] sm:$0xff]
  %v74 = vld [vmem:[%s0 + $0x1f8] sm:$0xff]
  %v75 = vlaneseq
  %v76 = vand.u32 %v75, 127
  %v77 = vadd.s32 %v76, 128
  %78 = vset.pattern.permute.xlu0 0
  %79 = vperm.xlu0 %78, %v11
  %v80 = vpop.permute.xlu0 %79
  %81 = vset.pattern.permute.xlu0 0
  %82 = vperm.xlu0 %81, %v12
  %v83 = vpop.permute.xlu0 %82
  %84 = vset.pattern.permute.xlu0 0
  %85 = vperm.xlu0 %84, %v13
  %v86 = vpop.permute.xlu0 %85
  %87 = vset.pattern.permute.xlu0 0
  %88 = vperm.xlu0 %87, %v14
  %v89 = vpop.permute.xlu0 %88
  %90 = vset.pattern.permute.xlu0 0
  %91 = vperm.xlu0 %90, %v15
  %v92 = vpop.permute.xlu0 %91
  %93 = vset.pattern.permute.xlu0 0
  %94 = vperm.xlu0 %93, %v16
  %v95 = vpop.permute.xlu0 %94
  %96 = vset.pattern.permute.xlu0 0
  %97 = vperm.xlu0 %96, %v17
  %v98 = vpop.permute.xlu0 %97
  %99 = vset.pattern.permute.xlu0 0
  %100 = vperm.xlu0 %99, %v18
  %v101 = vpop.permute.xlu0 %100
  %102 = vset.pattern.permute.xlu0 0
  %103 = vperm.xlu0 %102, %v19
  %v104 = vpop.permute.xlu0 %103
  %105 = vset.pattern.permute.xlu0 0
  %106 = vperm.xlu0 %105, %v20
  %v107 = vpop.permute.xlu0 %106
  %108 = vset.pattern.permute.xlu0 0
  %109 = vperm.xlu0 %108, %v21
  %v110 = vpop.permute.xlu0 %109
  %111 = vset.pattern.permute.xlu0 0
  %112 = vperm.xlu0 %111, %v22
  %v113 = vpop.permute.xlu0 %112
  %114 = vset.pattern.permute.xlu0 0
  %115 = vperm.xlu0 %114, %v23
  %v116 = vpop.permute.xlu0 %115
  %117 = vset.pattern.permute.xlu0 0
  %118 = vperm.xlu0 %117, %v24
  %v119 = vpop.permute.xlu0 %118
  %120 = vset.pattern.permute.xlu0 0
  %121 = vperm.xlu0 %120, %v25
  %v122 = vpop.permute.xlu0 %121
  %123 = vset.pattern.permute.xlu0 0
  %124 = vperm.xlu0 %123, %v26
  %v125 = vpop.permute.xlu0 %124
  %126 = vset.pattern.permute.xlu0 0
  %127 = vperm.xlu0 %126, %v27
  %v128 = vpop.permute.xlu0 %127
  %129 = vset.pattern.permute.xlu0 0
  %130 = vperm.xlu0 %129, %v28
  %v131 = vpop.permute.xlu0 %130
  %132 = vset.pattern.permute.xlu0 0
  %133 = vperm.xlu0 %132, %v29
  %v134 = vpop.permute.xlu0 %133
  %135 = vset.pattern.permute.xlu0 0
  %136 = vperm.xlu0 %135, %v30
  %v137 = vpop.permute.xlu0 %136
  %138 = vset.pattern.permute.xlu0 0
  %139 = vperm.xlu0 %138, %v31
  %v140 = vpop.permute.xlu0 %139
  %141 = vset.pattern.permute.xlu0 0
  %142 = vperm.xlu0 %141, %v32
  %v143 = vpop.permute.xlu0 %142
  %144 = vset.pattern.permute.xlu0 0
  %145 = vperm.xlu0 %144, %v33
  %v146 = vpop.permute.xlu0 %145
  %147 = vset.pattern.permute.xlu0 0
  %148 = vperm.xlu0 %147, %v34
  %v149 = vpop.permute.xlu0 %148
  %150 = vset.pattern.permute.xlu0 0
  %151 = vperm.xlu0 %150, %v35
  %v152 = vpop.permute.xlu0 %151
  %153 = vset.pattern.permute.xlu0 0
  %154 = vperm.xlu0 %153, %v36
  %v155 = vpop.permute.xlu0 %154
  %156 = vset.pattern.permute.xlu0 0
  %157 = vperm.xlu0 %156, %v37
  %v158 = vpop.permute.xlu0 %157
  %159 = vset.pattern.permute.xlu0 0
  %160 = vperm.xlu0 %159, %v38
  %v161 = vpop.permute.xlu0 %160
  %162 = vset.pattern.permute.xlu0 0
  %163 = vperm.xlu0 %162, %v39
  %v164 = vpop.permute.xlu0 %163
  %165 = vset.pattern.permute.xlu0 0
  %166 = vperm.xlu0 %165, %v40
  %v167 = vpop.permute.xlu0 %166
  %168 = vset.pattern.permute.xlu0 0
  %169 = vperm.xlu0 %168, %v41
  %v170 = vpop.permute.xlu0 %169
  %171 = vset.pattern.permute.xlu0 0
  %172 = vperm.xlu0 %171, %v42
  %v173 = vpop.permute.xlu0 %172
  %174 = vset.pattern.permute.xlu0 0
  %175 = vperm.xlu0 %174, %v43
  %v176 = vpop.permute.xlu0 %175
  %177 = vset.pattern.permute.xlu0 0
  %178 = vperm.xlu0 %177, %v44
  %v179 = vpop.permute.xlu0 %178
  %180 = vset.pattern.permute.xlu0 0
  %181 = vperm.xlu0 %180, %v45
  %v182 = vpop.permute.xlu0 %181
  %183 = vset.pattern.permute.xlu0 0
  %184 = vperm.xlu0 %183, %v46
  %v185 = vpop.permute.xlu0 %184
  %186 = vset.pattern.permute.xlu0 0
  %187 = vperm.xlu0 %186, %v47
  %v188 = vpop.permute.xlu0 %187
  %189 = vset.pattern.permute.xlu0 0
  %190 = vperm.xlu0 %189, %v48
  %v191 = vpop.permute.xlu0 %190
  %192 = vset.pattern.permute.xlu0 0
  %193 = vperm.xlu0 %192, %v49
  %v194 = vpop.permute.xlu0 %193
  %195 = vset.pattern.permute.xlu0 0
  %196 = vperm.xlu0 %195, %v50
  %v197 = vpop.permute.xlu0 %196
  %198 = vset.pattern.permute.xlu0 0
  %199 = vperm.xlu0 %198, %v51
  %v200 = vpop.permute.xlu0 %199
  %201 = vset.pattern.permute.xlu0 0
  %202 = vperm.xlu0 %201, %v52
  %v203 = vpop.permute.xlu0 %202
  %204 = vset.pattern.permute.xlu0 0
  %205 = vperm.xlu0 %204, %v53
  %v206 = vpop.permute.xlu0 %205
  %207 = vset.pattern.permute.xlu0 0
  %208 = vperm.xlu0 %207, %v54
  %v209 = vpop.permute.xlu0 %208
  %210 = vset.pattern.permute.xlu0 0
  %211 = vperm.xlu0 %210, %v55
  %v212 = vpop.permute.xlu0 %211
  %213 = vset.pattern.permute.xlu0 0
  %214 = vperm.xlu0 %213, %v56
  %v215 = vpop.permute.xlu0 %214
  %216 = vset.pattern.permute.xlu0 0
  %217 = vperm.xlu0 %216, %v57
  %v218 = vpop.permute.xlu0 %217
  %219 = vset.pattern.permute.xlu0 0
  %220 = vperm.xlu0 %219, %v58
  %v221 = vpop.permute.xlu0 %220
  %222 = vset.pattern.permute.xlu0 0
  %223 = vperm.xlu0 %222, %v59
  %v224 = vpop.permute.xlu0 %223
  %225 = vset.pattern.permute.xlu0 0
  %226 = vperm.xlu0 %225, %v60
  %v227 = vpop.permute.xlu0 %226
  %228 = vset.pattern.permute.xlu0 0
  %229 = vperm.xlu0 %228, %v61
  %v230 = vpop.permute.xlu0 %229
  %231 = vset.pattern.permute.xlu0 0
  %232 = vperm.xlu0 %231, %v62
  %v233 = vpop.permute.xlu0 %232
  %234 = vset.pattern.permute.xlu0 0
  %235 = vperm.xlu0 %234, %v63
  %v236 = vpop.permute.xlu0 %235
  %237 = vset.pattern.permute.xlu0 0
  %238 = vperm.xlu0 %237, %v64
  %v239 = vpop.permute.xlu0 %238
  %240 = vset.pattern.permute.xlu0 0
  %241 = vperm.xlu0 %240, %v65
  %v242 = vpop.permute.xlu0 %241
  %243 = vset.pattern.permute.xlu0 0
  %244 = vperm.xlu0 %243, %v66
  %v245 = vpop.permute.xlu0 %244
  %246 = vset.pattern.permute.xlu0 0
  %247 = vperm.xlu0 %246, %v67
  %v248 = vpop.permute.xlu0 %247
  %249 = vset.pattern.permute.xlu0 0
  %250 = vperm.xlu0 %249, %v68
  %v251 = vpop.permute.xlu0 %250
  %252 = vset.pattern.permute.xlu0 0
  %253 = vperm.xlu0 %252, %v69
  %v254 = vpop.permute.xlu0 %253
  %255 = vset.pattern.permute.xlu0 0
  %256 = vperm.xlu0 %255, %v70
  %v257 = vpop.permute.xlu0 %256
  %258 = vset.pattern.permute.xlu0 0
  %259 = vperm.xlu0 %258, %v71
  %v260 = vpop.permute.xlu0 %259
  %261 = vset.pattern.permute.xlu0 0
  %262 = vperm.xlu0 %261, %v72
  %v263 = vpop.permute.xlu0 %262
  %264 = vset.pattern.permute.xlu0 0
  %265 = vperm.xlu0 %264, %v73
  %v266 = vpop.permute.xlu0 %265
  %267 = vset.pattern.permute.xlu0 0
  %268 = vperm.xlu0 %267, %v74
  %v269 = vpop.permute.xlu0 %268
  %vm270 = vcmp.eq.s32.totalorder %v80, %v76
  %vm271 = vcmp.eq.s32.totalorder %v80, %v77
  %vm272 = vcmp.eq.s32.totalorder %v83, %v76
  %vm273 = vcmp.eq.s32.totalorder %v83, %v77
  %vm274 = vcmp.eq.s32.totalorder %v86, %v76
  %vm275 = vcmp.eq.s32.totalorder %v86, %v77
  %vm276 = vcmp.eq.s32.totalorder %v89, %v76
  %vm277 = vcmp.eq.s32.totalorder %v89, %v77
  %vm278 = vcmp.eq.s32.totalorder %v92, %v76
  %vm279 = vcmp.eq.s32.totalorder %v92, %v77
  %vm280 = vcmp.eq.s32.totalorder %v95, %v76
  %vm281 = vcmp.eq.s32.totalorder %v95, %v77
  %vm282 = vcmp.eq.s32.totalorder %v98, %v76
  %vm283 = vcmp.eq.s32.totalorder %v98, %v77
  %vm284 = vcmp.eq.s32.totalorder %v101, %v76
  %vm285 = vcmp.eq.s32.totalorder %v101, %v77
  %vm286 = vcmp.eq.s32.totalorder %v104, %v76
  %vm287 = vcmp.eq.s32.totalorder %v104, %v77
  %vm288 = vcmp.eq.s32.totalorder %v107, %v76
  %vm289 = vcmp.eq.s32.totalorder %v107, %v77
  %vm290 = vcmp.eq.s32.totalorder %v110, %v76
  %vm291 = vcmp.eq.s32.totalorder %v110, %v77
  %vm292 = vcmp.eq.s32.totalorder %v113, %v76
  %vm293 = vcmp.eq.s32.totalorder %v113, %v77
  %vm294 = vcmp.eq.s32.totalorder %v116, %v76
  %vm295 = vcmp.eq.s32.totalorder %v116, %v77
  %vm296 = vcmp.eq.s32.totalorder %v119, %v76
  %vm297 = vcmp.eq.s32.totalorder %v119, %v77
  %vm298 = vcmp.eq.s32.totalorder %v122, %v76
  %vm299 = vcmp.eq.s32.totalorder %v122, %v77
  %vm300 = vcmp.eq.s32.totalorder %v125, %v76
  %vm301 = vcmp.eq.s32.totalorder %v125, %v77
  %vm302 = vcmp.eq.s32.totalorder %v128, %v76
  %vm303 = vcmp.eq.s32.totalorder %v128, %v77
  %vm304 = vcmp.eq.s32.totalorder %v131, %v76
  %vm305 = vcmp.eq.s32.totalorder %v131, %v77
  %vm306 = vcmp.eq.s32.totalorder %v134, %v76
  %vm307 = vcmp.eq.s32.totalorder %v134, %v77
  %vm308 = vcmp.eq.s32.totalorder %v137, %v76
  %vm309 = vcmp.eq.s32.totalorder %v137, %v77
  %vm310 = vcmp.eq.s32.totalorder %v140, %v76
  %vm311 = vcmp.eq.s32.totalorder %v140, %v77
  %vm312 = vcmp.eq.s32.totalorder %v143, %v76
  %vm313 = vcmp.eq.s32.totalorder %v143, %v77
  %vm314 = vcmp.eq.s32.totalorder %v146, %v76
  %vm315 = vcmp.eq.s32.totalorder %v146, %v77
  %vm316 = vcmp.eq.s32.totalorder %v149, %v76
  %vm317 = vcmp.eq.s32.totalorder %v149, %v77
  %vm318 = vcmp.eq.s32.totalorder %v152, %v76
  %vm319 = vcmp.eq.s32.totalorder %v152, %v77
  %vm320 = vcmp.eq.s32.totalorder %v155, %v76
  %vm321 = vcmp.eq.s32.totalorder %v155, %v77
  %vm322 = vcmp.eq.s32.totalorder %v158, %v76
  %vm323 = vcmp.eq.s32.totalorder %v158, %v77
  %vm324 = vcmp.eq.s32.totalorder %v161, %v76
  %vm325 = vcmp.eq.s32.totalorder %v161, %v77
  %vm326 = vcmp.eq.s32.totalorder %v164, %v76
  %vm327 = vcmp.eq.s32.totalorder %v164, %v77
  %vm328 = vcmp.eq.s32.totalorder %v167, %v76
  %vm329 = vcmp.eq.s32.totalorder %v167, %v77
  %vm330 = vcmp.eq.s32.totalorder %v170, %v76
  %vm331 = vcmp.eq.s32.totalorder %v170, %v77
  %vm332 = vcmp.eq.s32.totalorder %v173, %v76
  %vm333 = vcmp.eq.s32.totalorder %v173, %v77
  %vm334 = vcmp.eq.s32.totalorder %v176, %v76
  %vm335 = vcmp.eq.s32.totalorder %v176, %v77
  %vm336 = vcmp.eq.s32.totalorder %v179, %v76
  %vm337 = vcmp.eq.s32.totalorder %v179, %v77
  %vm338 = vcmp.eq.s32.totalorder %v182, %v76
  %vm339 = vcmp.eq.s32.totalorder %v182, %v77
  %vm340 = vcmp.eq.s32.totalorder %v185, %v76
  %vm341 = vcmp.eq.s32.totalorder %v185, %v77
  %vm342 = vcmp.eq.s32.totalorder %v188, %v76
  %vm343 = vcmp.eq.s32.totalorder %v188, %v77
  %vm344 = vcmp.eq.s32.totalorder %v191, %v76
  %vm345 = vcmp.eq.s32.totalorder %v191, %v77
  %vm346 = vcmp.eq.s32.totalorder %v194, %v76
  %vm347 = vcmp.eq.s32.totalorder %v194, %v77
  %vm348 = vcmp.eq.s32.totalorder %v197, %v76
  %vm349 = vcmp.eq.s32.totalorder %v197, %v77
  %vm350 = vcmp.eq.s32.totalorder %v200, %v76
  %vm351 = vcmp.eq.s32.totalorder %v200, %v77
  %vm352 = vcmp.eq.s32.totalorder %v203, %v76
  %vm353 = vcmp.eq.s32.totalorder %v203, %v77
  %vm354 = vcmp.eq.s32.totalorder %v206, %v76
  %vm355 = vcmp.eq.s32.totalorder %v206, %v77
  %vm356 = vcmp.eq.s32.totalorder %v209, %v76
  %vm357 = vcmp.eq.s32.totalorder %v209, %v77
  %vm358 = vcmp.eq.s32.totalorder %v212, %v76
  %vm359 = vcmp.eq.s32.totalorder %v212, %v77
  %vm360 = vcmp.eq.s32.totalorder %v215, %v76
  %vm361 = vcmp.eq.s32.totalorder %v215, %v77
  %vm362 = vcmp.eq.s32.totalorder %v218, %v76
  %vm363 = vcmp.eq.s32.totalorder %v218, %v77
  %vm364 = vcmp.eq.s32.totalorder %v221, %v76
  %vm365 = vcmp.eq.s32.totalorder %v221, %v77
  %vm366 = vcmp.eq.s32.totalorder %v224, %v76
  %vm367 = vcmp.eq.s32.totalorder %v224, %v77
  %vm368 = vcmp.eq.s32.totalorder %v227, %v76
  %vm369 = vcmp.eq.s32.totalorder %v227, %v77
  %vm370 = vcmp.eq.s32.totalorder %v230, %v76
  %vm371 = vcmp.eq.s32.totalorder %v230, %v77
  %vm372 = vcmp.eq.s32.totalorder %v233, %v76
  %vm373 = vcmp.eq.s32.totalorder %v233, %v77
  %vm374 = vcmp.eq.s32.totalorder %v236, %v76
  %vm375 = vcmp.eq.s32.totalorder %v236, %v77
  %vm376 = vcmp.eq.s32.totalorder %v239, %v76
  %vm377 = vcmp.eq.s32.totalorder %v239, %v77
  %vm378 = vcmp.eq.s32.totalorder %v242, %v76
  %vm379 = vcmp.eq.s32.totalorder %v242, %v77
  %vm380 = vcmp.eq.s32.totalorder %v245, %v76
  %vm381 = vcmp.eq.s32.totalorder %v245, %v77
  %vm382 = vcmp.eq.s32.totalorder %v248, %v76
  %vm383 = vcmp.eq.s32.totalorder %v248, %v77
  %vm384 = vcmp.eq.s32.totalorder %v251, %v76
  %vm385 = vcmp.eq.s32.totalorder %v251, %v77
  %vm386 = vcmp.eq.s32.totalorder %v254, %v76
  %vm387 = vcmp.eq.s32.totalorder %v254, %v77
  %vm388 = vcmp.eq.s32.totalorder %v257, %v76
  %vm389 = vcmp.eq.s32.totalorder %v257, %v77
  %vm390 = vcmp.eq.s32.totalorder %v260, %v76
  %vm391 = vcmp.eq.s32.totalorder %v260, %v77
  %vm392 = vcmp.eq.s32.totalorder %v263, %v76
  %vm393 = vcmp.eq.s32.totalorder %v263, %v77
  %vm394 = vcmp.eq.s32.totalorder %v266, %v76
  %vm395 = vcmp.eq.s32.totalorder %v266, %v77
  %vm396 = vcmp.eq.s32.totalorder %v269, %v76
  %vm397 = vcmp.eq.s32.totalorder %v269, %v77
  %v398 = vadd.s32 %v11, 119
  %v399 = vadd.s32 %v12, 119
  %v400 = vadd.s32 %v13, 119
  %v401 = vadd.s32 %v14, 119
  %v402 = vadd.s32 %v15, 119
  %v403 = vadd.s32 %v16, 119
  %v404 = vadd.s32 %v17, 119
  %v405 = vadd.s32 %v18, 119
  %v406 = vadd.s32 %v19, 119
  %v407 = vadd.s32 %v20, 119
  %v408 = vadd.s32 %v21, 119
  %v409 = vadd.s32 %v22, 119
  %v410 = vadd.s32 %v23, 119
  %v411 = vadd.s32 %v24, 119
  %v412 = vadd.s32 %v25, 119
  %v413 = vadd.s32 %v26, 119
  %v414 = vadd.s32 %v27, 119
  %v415 = vadd.s32 %v28, 119
  %v416 = vadd.s32 %v29, 119
  %v417 = vadd.s32 %v30, 119
  %v418 = vadd.s32 %v31, 119
  %v419 = vadd.s32 %v32, 119
  %v420 = vadd.s32 %v33, 119
  %v421 = vadd.s32 %v34, 119
  %v422 = vadd.s32 %v35, 119
  %v423 = vadd.s32 %v36, 119
  %v424 = vadd.s32 %v37, 119
  %v425 = vadd.s32 %v38, 119
  %v426 = vadd.s32 %v39, 119
  %v427 = vadd.s32 %v40, 119
  %v428 = vadd.s32 %v41, 119
  %v429 = vadd.s32 %v42, 119
  %v430 = vadd.s32 %v43, 119
  %v431 = vadd.s32 %v44, 119
  %v432 = vadd.s32 %v45, 119
  %v433 = vadd.s32 %v46, 119
  %v434 = vadd.s32 %v47, 119
  %v435 = vadd.s32 %v48, 119
  %v436 = vadd.s32 %v49, 119
  %v437 = vadd.s32 %v50, 119
  %v438 = vadd.s32 %v51, 119
  %v439 = vadd.s32 %v52, 119
  %v440 = vadd.s32 %v53, 119
  %v441 = vadd.s32 %v54, 119
  %v442 = vadd.s32 %v55, 119
  %v443 = vadd.s32 %v56, 119
  %v444 = vadd.s32 %v57, 119
  %v445 = vadd.s32 %v58, 119
  %v446 = vadd.s32 %v59, 119
  %v447 = vadd.s32 %v60, 119
  %v448 = vadd.s32 %v61, 119
  %v449 = vadd.s32 %v62, 119
  %v450 = vadd.s32 %v63, 119
  %v451 = vadd.s32 %v64, 119
  %v452 = vadd.s32 %v65, 119
  %v453 = vadd.s32 %v66, 119
  %v454 = vadd.s32 %v67, 119
  %v455 = vadd.s32 %v68, 119
  %v456 = vadd.s32 %v69, 119
  %v457 = vadd.s32 %v70, 119
  %v458 = vadd.s32 %v71, 119
  %v459 = vadd.s32 %v72, 119
  %v460 = vadd.s32 %v73, 119
  %v461 = vadd.s32 %v74, 119
  %462 = vset.pattern.permute.xlu0 1
  %463 = vperm.xlu0 %462, %v398
  %v464 = vpop.permute.xlu0 %463
  %465 = vset.pattern.permute.xlu0 1
  %466 = vperm.xlu0 %465, %v399
  %v467 = vpop.permute.xlu0 %466
  %468 = vset.pattern.permute.xlu0 1
  %469 = vperm.xlu0 %468, %v400
  %v470 = vpop.permute.xlu0 %469
  %471 = vset.pattern.permute.xlu0 1
  %472 = vperm.xlu0 %471, %v401
  %v473 = vpop.permute.xlu0 %472
  %474 = vset.pattern.permute.xlu0 1
  %475 = vperm.xlu0 %474, %v402
  %v476 = vpop.permute.xlu0 %475
  %477 = vset.pattern.permute.xlu0 1
  %478 = vperm.xlu0 %477, %v403
  %v479 = vpop.permute.xlu0 %478
  %480 = vset.pattern.permute.xlu0 1
  %481 = vperm.xlu0 %480, %v404
  %v482 = vpop.permute.xlu0 %481
  %483 = vset.pattern.permute.xlu0 1
  %484 = vperm.xlu0 %483, %v405
  %v485 = vpop.permute.xlu0 %484
  %486 = vset.pattern.permute.xlu0 1
  %487 = vperm.xlu0 %486, %v406
  %v488 = vpop.permute.xlu0 %487
  %489 = vset.pattern.permute.xlu0 1
  %490 = vperm.xlu0 %489, %v407
  %v491 = vpop.permute.xlu0 %490
  %492 = vset.pattern.permute.xlu0 1
  %493 = vperm.xlu0 %492, %v408
  %v494 = vpop.permute.xlu0 %493
  %495 = vset.pattern.permute.xlu0 1
  %496 = vperm.xlu0 %495, %v409
  %v497 = vpop.permute.xlu0 %496
  %498 = vset.pattern.permute.xlu0 1
  %499 = vperm.xlu0 %498, %v410
  %v500 = vpop.permute.xlu0 %499
  %501 = vset.pattern.permute.xlu0 1
  %502 = vperm.xlu0 %501, %v411
  %v503 = vpop.permute.xlu0 %502
  %504 = vset.pattern.permute.xlu0 1
  %505 = vperm.xlu0 %504, %v412
  %v506 = vpop.permute.xlu0 %505
  %507 = vset.pattern.permute.xlu0 1
  %508 = vperm.xlu0 %507, %v413
  %v509 = vpop.permute.xlu0 %508
  %510 = vset.pattern.permute.xlu0 1
  %511 = vperm.xlu0 %510, %v414
  %v512 = vpop.permute.xlu0 %511
  %513 = vset.pattern.permute.xlu0 1
  %514 = vperm.xlu0 %513, %v415
  %v515 = vpop.permute.xlu0 %514
  %516 = vset.pattern.permute.xlu0 1
  %517 = vperm.xlu0 %516, %v416
  %v518 = vpop.permute.xlu0 %517
  %519 = vset.pattern.permute.xlu0 1
  %520 = vperm.xlu0 %519, %v417
  %v521 = vpop.permute.xlu0 %520
  %522 = vset.pattern.permute.xlu0 1
  %523 = vperm.xlu0 %522, %v418
  %v524 = vpop.permute.xlu0 %523
  %525 = vset.pattern.permute.xlu0 1
  %526 = vperm.xlu0 %525, %v419
  %v527 = vpop.permute.xlu0 %526
  %528 = vset.pattern.permute.xlu0 1
  %529 = vperm.xlu0 %528, %v420
  %v530 = vpop.permute.xlu0 %529
  %531 = vset.pattern.permute.xlu0 1
  %532 = vperm.xlu0 %531, %v421
  %v533 = vpop.permute.xlu0 %532
  %534 = vset.pattern.permute.xlu0 1
  %535 = vperm.xlu0 %534, %v422
  %v536 = vpop.permute.xlu0 %535
  %537 = vset.pattern.permute.xlu0 1
  %538 = vperm.xlu0 %537, %v423
  %v539 = vpop.permute.xlu0 %538
  %540 = vset.pattern.permute.xlu0 1
  %541 = vperm.xlu0 %540, %v424
  %v542 = vpop.permute.xlu0 %541
  %543 = vset.pattern.permute.xlu0 1
  %544 = vperm.xlu0 %543, %v425
  %v545 = vpop.permute.xlu0 %544
  %546 = vset.pattern.permute.xlu0 1
  %547 = vperm.xlu0 %546, %v426
  %v548 = vpop.permute.xlu0 %547
  %549 = vset.pattern.permute.xlu0 1
  %550 = vperm.xlu0 %549, %v427
  %v551 = vpop.permute.xlu0 %550
  %552 = vset.pattern.permute.xlu0 1
  %553 = vperm.xlu0 %552, %v428
  %v554 = vpop.permute.xlu0 %553
  %555 = vset.pattern.permute.xlu0 1
  %556 = vperm.xlu0 %555, %v429
  %v557 = vpop.permute.xlu0 %556
  %558 = vset.pattern.permute.xlu0 1
  %559 = vperm.xlu0 %558, %v430
  %v560 = vpop.permute.xlu0 %559
  %561 = vset.pattern.permute.xlu0 1
  %562 = vperm.xlu0 %561, %v431
  %v563 = vpop.permute.xlu0 %562
  %564 = vset.pattern.permute.xlu0 1
  %565 = vperm.xlu0 %564, %v432
  %v566 = vpop.permute.xlu0 %565
  %567 = vset.pattern.permute.xlu0 1
  %568 = vperm.xlu0 %567, %v433
  %v569 = vpop.permute.xlu0 %568
  %570 = vset.pattern.permute.xlu0 1
  %571 = vperm.xlu0 %570, %v434
  %v572 = vpop.permute.xlu0 %571
  %573 = vset.pattern.permute.xlu0 1
  %574 = vperm.xlu0 %573, %v435
  %v575 = vpop.permute.xlu0 %574
  %576 = vset.pattern.permute.xlu0 1
  %577 = vperm.xlu0 %576, %v436
  %v578 = vpop.permute.xlu0 %577
  %579 = vset.pattern.permute.xlu0 1
  %580 = vperm.xlu0 %579, %v437
  %v581 = vpop.permute.xlu0 %580
  %582 = vset.pattern.permute.xlu0 1
  %583 = vperm.xlu0 %582, %v438
  %v584 = vpop.permute.xlu0 %583
  %585 = vset.pattern.permute.xlu0 1
  %586 = vperm.xlu0 %585, %v439
  %v587 = vpop.permute.xlu0 %586
  %588 = vset.pattern.permute.xlu0 1
  %589 = vperm.xlu0 %588, %v440
  %v590 = vpop.permute.xlu0 %589
  %591 = vset.pattern.permute.xlu0 1
  %592 = vperm.xlu0 %591, %v441
  %v593 = vpop.permute.xlu0 %592
  %594 = vset.pattern.permute.xlu0 1
  %595 = vperm.xlu0 %594, %v442
  %v596 = vpop.permute.xlu0 %595
  %597 = vset.pattern.permute.xlu0 1
  %598 = vperm.xlu0 %597, %v443
  %v599 = vpop.permute.xlu0 %598
  %600 = vset.pattern.permute.xlu0 1
  %601 = vperm.xlu0 %600, %v444
  %v602 = vpop.permute.xlu0 %601
  %603 = vset.pattern.permute.xlu0 1
  %604 = vperm.xlu0 %603, %v445
  %v605 = vpop.permute.xlu0 %604
  %606 = vset.pattern.permute.xlu0 1
  %607 = vperm.xlu0 %606, %v446
  %v608 = vpop.permute.xlu0 %607
  %609 = vset.pattern.permute.xlu0 1
  %610 = vperm.xlu0 %609, %v447
  %v611 = vpop.permute.xlu0 %610
  %612 = vset.pattern.permute.xlu0 1
  %613 = vperm.xlu0 %612, %v448
  %v614 = vpop.permute.xlu0 %613
  %615 = vset.pattern.permute.xlu0 1
  %616 = vperm.xlu0 %615, %v449
  %v617 = vpop.permute.xlu0 %616
  %618 = vset.pattern.permute.xlu0 1
  %619 = vperm.xlu0 %618, %v450
  %v620 = vpop.permute.xlu0 %619
  %621 = vset.pattern.permute.xlu0 1
  %622 = vperm.xlu0 %621, %v451
  %v623 = vpop.permute.xlu0 %622
  %624 = vset.pattern.permute.xlu0 1
  %625 = vperm.xlu0 %624, %v452
  %v626 = vpop.permute.xlu0 %625
  %627 = vset.pattern.permute.xlu0 1
  %628 = vperm.xlu0 %627, %v453
  %v629 = vpop.permute.xlu0 %628
  %630 = vset.pattern.permute.xlu0 1
  %631 = vperm.xlu0 %630, %v454
  %v632 = vpop.permute.xlu0 %631
  %633 = vset.pattern.permute.xlu0 1
  %634 = vperm.xlu0 %633, %v455
  %v635 = vpop.permute.xlu0 %634
  %636 = vset.pattern.permute.xlu0 1
  %637 = vperm.xlu0 %636, %v456
  %v638 = vpop.permute.xlu0 %637
  %639 = vset.pattern.permute.xlu0 1
  %640 = vperm.xlu0 %639, %v457
  %v641 = vpop.permute.xlu0 %640
  %642 = vset.pattern.permute.xlu0 1
  %643 = vperm.xlu0 %642, %v458
  %v644 = vpop.permute.xlu0 %643
  %645 = vset.pattern.permute.xlu0 1
  %646 = vperm.xlu0 %645, %v459
  %v647 = vpop.permute.xlu0 %646
  %648 = vset.pattern.permute.xlu0 1
  %649 = vperm.xlu0 %648, %v460
  %v650 = vpop.permute.xlu0 %649
  %651 = vset.pattern.permute.xlu0 1
  %652 = vperm.xlu0 %651, %v461
  %v653 = vpop.permute.xlu0 %652
  %vm654 = vcmp.eq.s32.totalorder %v464, %v76
  %vm655 = vcmp.eq.s32.totalorder %v464, %v77
  %vm656 = vcmp.eq.s32.totalorder %v467, %v76
  %vm657 = vcmp.eq.s32.totalorder %v467, %v77
  %vm658 = vcmp.eq.s32.totalorder %v470, %v76
  %vm659 = vcmp.eq.s32.totalorder %v470, %v77
  %vm660 = vcmp.eq.s32.totalorder %v473, %v76
  %vm661 = vcmp.eq.s32.totalorder %v473, %v77
  %vm662 = vcmp.eq.s32.totalorder %v476, %v76
  %vm663 = vcmp.eq.s32.totalorder %v476, %v77
  %vm664 = vcmp.eq.s32.totalorder %v479, %v76
  %vm665 = vcmp.eq.s32.totalorder %v479, %v77
  %vm666 = vcmp.eq.s32.totalorder %v482, %v76
  %vm667 = vcmp.eq.s32.totalorder %v482, %v77
  %vm668 = vcmp.eq.s32.totalorder %v485, %v76
  %vm669 = vcmp.eq.s32.totalorder %v485, %v77
  %vm670 = vcmp.eq.s32.totalorder %v488, %v76
  %vm671 = vcmp.eq.s32.totalorder %v488, %v77
  %vm672 = vcmp.eq.s32.totalorder %v491, %v76
  %vm673 = vcmp.eq.s32.totalorder %v491, %v77
  %vm674 = vcmp.eq.s32.totalorder %v494, %v76
  %vm675 = vcmp.eq.s32.totalorder %v494, %v77
  %vm676 = vcmp.eq.s32.totalorder %v497, %v76
  %vm677 = vcmp.eq.s32.totalorder %v497, %v77
  %vm678 = vcmp.eq.s32.totalorder %v500, %v76
  %vm679 = vcmp.eq.s32.totalorder %v500, %v77
  %vm680 = vcmp.eq.s32.totalorder %v503, %v76
  %vm681 = vcmp.eq.s32.totalorder %v503, %v77
  %vm682 = vcmp.eq.s32.totalorder %v506, %v76
  %vm683 = vcmp.eq.s32.totalorder %v506, %v77
  %vm684 = vcmp.eq.s32.totalorder %v509, %v76
  %vm685 = vcmp.eq.s32.totalorder %v509, %v77
  %vm686 = vcmp.eq.s32.totalorder %v512, %v76
  %vm687 = vcmp.eq.s32.totalorder %v512, %v77
  %vm688 = vcmp.eq.s32.totalorder %v515, %v76
  %vm689 = vcmp.eq.s32.totalorder %v515, %v77
  %vm690 = vcmp.eq.s32.totalorder %v518, %v76
  %vm691 = vcmp.eq.s32.totalorder %v518, %v77
  %vm692 = vcmp.eq.s32.totalorder %v521, %v76
  %vm693 = vcmp.eq.s32.totalorder %v521, %v77
  %vm694 = vcmp.eq.s32.totalorder %v524, %v76
  %vm695 = vcmp.eq.s32.totalorder %v524, %v77
  %vm696 = vcmp.eq.s32.totalorder %v527, %v76
  %vm697 = vcmp.eq.s32.totalorder %v527, %v77
  %vm698 = vcmp.eq.s32.totalorder %v530, %v76
  %vm699 = vcmp.eq.s32.totalorder %v530, %v77
  %vm700 = vcmp.eq.s32.totalorder %v533, %v76
  %vm701 = vcmp.eq.s32.totalorder %v533, %v77
  %vm702 = vcmp.eq.s32.totalorder %v536, %v76
  %vm703 = vcmp.eq.s32.totalorder %v536, %v77
  %vm704 = vcmp.eq.s32.totalorder %v539, %v76
  %vm705 = vcmp.eq.s32.totalorder %v539, %v77
  %vm706 = vcmp.eq.s32.totalorder %v542, %v76
  %vm707 = vcmp.eq.s32.totalorder %v542, %v77
  %vm708 = vcmp.eq.s32.totalorder %v545, %v76
  %vm709 = vcmp.eq.s32.totalorder %v545, %v77
  %vm710 = vcmp.eq.s32.totalorder %v548, %v76
  %vm711 = vcmp.eq.s32.totalorder %v548, %v77
  %vm712 = vcmp.eq.s32.totalorder %v551, %v76
  %vm713 = vcmp.eq.s32.totalorder %v551, %v77
  %vm714 = vcmp.eq.s32.totalorder %v554, %v76
  %vm715 = vcmp.eq.s32.totalorder %v554, %v77
  %vm716 = vcmp.eq.s32.totalorder %v557, %v76
  %vm717 = vcmp.eq.s32.totalorder %v557, %v77
  %vm718 = vcmp.eq.s32.totalorder %v560, %v76
  %vm719 = vcmp.eq.s32.totalorder %v560, %v77
  %vm720 = vcmp.eq.s32.totalorder %v563, %v76
  %vm721 = vcmp.eq.s32.totalorder %v563, %v77
  %vm722 = vcmp.eq.s32.totalorder %v566, %v76
  %vm723 = vcmp.eq.s32.totalorder %v566, %v77
  %vm724 = vcmp.eq.s32.totalorder %v569, %v76
  %vm725 = vcmp.eq.s32.totalorder %v569, %v77
  %vm726 = vcmp.eq.s32.totalorder %v572, %v76
  %vm727 = vcmp.eq.s32.totalorder %v572, %v77
  %vm728 = vcmp.eq.s32.totalorder %v575, %v76
  %vm729 = vcmp.eq.s32.totalorder %v575, %v77
  %vm730 = vcmp.eq.s32.totalorder %v578, %v76
  %vm731 = vcmp.eq.s32.totalorder %v578, %v77
  %vm732 = vcmp.eq.s32.totalorder %v581, %v76
  %vm733 = vcmp.eq.s32.totalorder %v581, %v77
  %vm734 = vcmp.eq.s32.totalorder %v584, %v76
  %vm735 = vcmp.eq.s32.totalorder %v584, %v77
  %vm736 = vcmp.eq.s32.totalorder %v587, %v76
  %vm737 = vcmp.eq.s32.totalorder %v587, %v77
  %vm738 = vcmp.eq.s32.totalorder %v590, %v76
  %vm739 = vcmp.eq.s32.totalorder %v590, %v77
  %vm740 = vcmp.eq.s32.totalorder %v593, %v76
  %vm741 = vcmp.eq.s32.totalorder %v593, %v77
  %vm742 = vcmp.eq.s32.totalorder %v596, %v76
  %vm743 = vcmp.eq.s32.totalorder %v596, %v77
  %vm744 = vcmp.eq.s32.totalorder %v599, %v76
  %vm745 = vcmp.eq.s32.totalorder %v599, %v77
  %vm746 = vcmp.eq.s32.totalorder %v602, %v76
  %vm747 = vcmp.eq.s32.totalorder %v602, %v77
  %vm748 = vcmp.eq.s32.totalorder %v605, %v76
  %vm749 = vcmp.eq.s32.totalorder %v605, %v77
  %vm750 = vcmp.eq.s32.totalorder %v608, %v76
  %vm751 = vcmp.eq.s32.totalorder %v608, %v77
  %vm752 = vcmp.eq.s32.totalorder %v611, %v76
  %vm753 = vcmp.eq.s32.totalorder %v611, %v77
  %vm754 = vcmp.eq.s32.totalorder %v614, %v76
  %vm755 = vcmp.eq.s32.totalorder %v614, %v77
  %vm756 = vcmp.eq.s32.totalorder %v617, %v76
  %vm757 = vcmp.eq.s32.totalorder %v617, %v77
  %vm758 = vcmp.eq.s32.totalorder %v620, %v76
  %vm759 = vcmp.eq.s32.totalorder %v620, %v77
  %vm760 = vcmp.eq.s32.totalorder %v623, %v76
  %vm761 = vcmp.eq.s32.totalorder %v623, %v77
  %vm762 = vcmp.eq.s32.totalorder %v626, %v76
  %vm763 = vcmp.eq.s32.totalorder %v626, %v77
  %vm764 = vcmp.eq.s32.totalorder %v629, %v76
  %vm765 = vcmp.eq.s32.totalorder %v629, %v77
  %vm766 = vcmp.eq.s32.totalorder %v632, %v76
  %vm767 = vcmp.eq.s32.totalorder %v632, %v77
  %vm768 = vcmp.eq.s32.totalorder %v635, %v76
  %vm769 = vcmp.eq.s32.totalorder %v635, %v77
  %vm770 = vcmp.eq.s32.totalorder %v638, %v76
  %vm771 = vcmp.eq.s32.totalorder %v638, %v77
  %vm772 = vcmp.eq.s32.totalorder %v641, %v76
  %vm773 = vcmp.eq.s32.totalorder %v641, %v77
  %vm774 = vcmp.eq.s32.totalorder %v644, %v76
  %vm775 = vcmp.eq.s32.totalorder %v644, %v77
  %vm776 = vcmp.eq.s32.totalorder %v647, %v76
  %vm777 = vcmp.eq.s32.totalorder %v647, %v77
  %vm778 = vcmp.eq.s32.totalorder %v650, %v76
  %vm779 = vcmp.eq.s32.totalorder %v650, %v77
  %vm780 = vcmp.eq.s32.totalorder %v653, %v76
  %vm781 = vcmp.eq.s32.totalorder %v653, %v77
  %vm782 = vmor %vm270, %vm654
  %vm783 = vmor %vm271, %vm655
  %vm784 = vmor %vm272, %vm656
  %vm785 = vmor %vm273, %vm657
  %vm786 = vmor %vm274, %vm658
  %vm787 = vmor %vm275, %vm659
  %vm788 = vmor %vm276, %vm660
  %vm789 = vmor %vm277, %vm661
  %vm790 = vmor %vm278, %vm662
  %vm791 = vmor %vm279, %vm663
  %vm792 = vmor %vm280, %vm664
  %vm793 = vmor %vm281, %vm665
  %vm794 = vmor %vm282, %vm666
  %vm795 = vmor %vm283, %vm667
  %vm796 = vmor %vm284, %vm668
  %vm797 = vmor %vm285, %vm669
  %vm798 = vmor %vm286, %vm670
  %vm799 = vmor %vm287, %vm671
  %vm800 = vmor %vm288, %vm672
  %vm801 = vmor %vm289, %vm673
  %vm802 = vmor %vm290, %vm674
  %vm803 = vmor %vm291, %vm675
  %vm804 = vmor %vm292, %vm676
  %vm805 = vmor %vm293, %vm677
  %vm806 = vmor %vm294, %vm678
  %vm807 = vmor %vm295, %vm679
  %vm808 = vmor %vm296, %vm680
  %vm809 = vmor %vm297, %vm681
  %vm810 = vmor %vm298, %vm682
  %vm811 = vmor %vm299, %vm683
  %vm812 = vmor %vm300, %vm684
  %vm813 = vmor %vm301, %vm685
  %vm814 = vmor %vm302, %vm686
  %vm815 = vmor %vm303, %vm687
  %vm816 = vmor %vm304, %vm688
  %vm817 = vmor %vm305, %vm689
  %vm818 = vmor %vm306, %vm690
  %vm819 = vmor %vm307, %vm691
  %vm820 = vmor %vm308, %vm692
  %vm821 = vmor %vm309, %vm693
  %vm822 = vmor %vm310, %vm694
  %vm823 = vmor %vm311, %vm695
  %vm824 = vmor %vm312, %vm696
  %vm825 = vmor %vm313, %vm697
  %vm826 = vmor %vm314, %vm698
  %vm827 = vmor %vm315, %vm699
  %vm828 = vmor %vm316, %vm700
  %vm829 = vmor %vm317, %vm701
  %vm830 = vmor %vm318, %vm702
  %vm831 = vmor %vm319, %vm703
  %vm832 = vmor %vm320, %vm704
  %vm833 = vmor %vm321, %vm705
  %vm834 = vmor %vm322, %vm706
  %vm835 = vmor %vm323, %vm707
  %vm836 = vmor %vm324, %vm708
  %vm837 = vmor %vm325, %vm709
  %vm838 = vmor %vm326, %vm710
  %vm839 = vmor %vm327, %vm711
  %vm840 = vmor %vm328, %vm712
  %vm841 = vmor %vm329, %vm713
  %vm842 = vmor %vm330, %vm714
  %vm843 = vmor %vm331, %vm715
  %vm844 = vmor %vm332, %vm716
  %vm845 = vmor %vm333, %vm717
  %vm846 = vmor %vm334, %vm718
  %vm847 = vmor %vm335, %vm719
  %vm848 = vmor %vm336, %vm720
  %vm849 = vmor %vm337, %vm721
  %vm850 = vmor %vm338, %vm722
  %vm851 = vmor %vm339, %vm723
  %vm852 = vmor %vm340, %vm724
  %vm853 = vmor %vm341, %vm725
  %vm854 = vmor %vm342, %vm726
  %vm855 = vmor %vm343, %vm727
  %vm856 = vmor %vm344, %vm728
  %vm857 = vmor %vm345, %vm729
  %vm858 = vmor %vm346, %vm730
  %vm859 = vmor %vm347, %vm731
  %vm860 = vmor %vm348, %vm732
  %vm861 = vmor %vm349, %vm733
  %vm862 = vmor %vm350, %vm734
  %vm863 = vmor %vm351, %vm735
  %vm864 = vmor %vm352, %vm736
  %vm865 = vmor %vm353, %vm737
  %vm866 = vmor %vm354, %vm738
  %vm867 = vmor %vm355, %vm739
  %vm868 = vmor %vm356, %vm740
  %vm869 = vmor %vm357, %vm741
  %vm870 = vmor %vm358, %vm742
  %vm871 = vmor %vm359, %vm743
  %vm872 = vmor %vm360, %vm744
  %vm873 = vmor %vm361, %vm745
  %vm874 = vmor %vm362, %vm746
  %vm875 = vmor %vm363, %vm747
  %vm876 = vmor %vm364, %vm748
  %vm877 = vmor %vm365, %vm749
  %vm878 = vmor %vm366, %vm750
  %vm879 = vmor %vm367, %vm751
  %vm880 = vmor %vm368, %vm752
  %vm881 = vmor %vm369, %vm753
  %vm882 = vmor %vm370, %vm754
  %vm883 = vmor %vm371, %vm755
  %vm884 = vmor %vm372, %vm756
  %vm885 = vmor %vm373, %vm757
  %vm886 = vmor %vm374, %vm758
  %vm887 = vmor %vm375, %vm759
  %vm888 = vmor %vm376, %vm760
  %vm889 = vmor %vm377, %vm761
  %vm890 = vmor %vm378, %vm762
  %vm891 = vmor %vm379, %vm763
  %vm892 = vmor %vm380, %vm764
  %vm893 = vmor %vm381, %vm765
  %vm894 = vmor %vm382, %vm766
  %vm895 = vmor %vm383, %vm767
  %vm896 = vmor %vm384, %vm768
  %vm897 = vmor %vm385, %vm769
  %vm898 = vmor %vm386, %vm770
  %vm899 = vmor %vm387, %vm771
  %vm900 = vmor %vm388, %vm772
  %vm901 = vmor %vm389, %vm773
  %vm902 = vmor %vm390, %vm774
  %vm903 = vmor %vm391, %vm775
  %vm904 = vmor %vm392, %vm776
  %vm905 = vmor %vm393, %vm777
  %vm906 = vmor %vm394, %vm778
  %vm907 = vmor %vm395, %vm779
  %vm908 = vmor %vm396, %vm780
  %vm909 = vmor %vm397, %vm781
  %v910 = vadd.s32 %v11, 124
  %v911 = vadd.s32 %v12, 124
  %v912 = vadd.s32 %v13, 124
  %v913 = vadd.s32 %v14, 124
  %v914 = vadd.s32 %v15, 124
  %v915 = vadd.s32 %v16, 124
  %v916 = vadd.s32 %v17, 124
  %v917 = vadd.s32 %v18, 124
  %v918 = vadd.s32 %v19, 124
  %v919 = vadd.s32 %v20, 124
  %v920 = vadd.s32 %v21, 124
  %v921 = vadd.s32 %v22, 124
  %v922 = vadd.s32 %v23, 124
  %v923 = vadd.s32 %v24, 124
  %v924 = vadd.s32 %v25, 124
  %v925 = vadd.s32 %v26, 124
  %v926 = vadd.s32 %v27, 124
  %v927 = vadd.s32 %v28, 124
  %v928 = vadd.s32 %v29, 124
  %v929 = vadd.s32 %v30, 124
  %v930 = vadd.s32 %v31, 124
  %v931 = vadd.s32 %v32, 124
  %v932 = vadd.s32 %v33, 124
  %v933 = vadd.s32 %v34, 124
  %v934 = vadd.s32 %v35, 124
  %v935 = vadd.s32 %v36, 124
  %v936 = vadd.s32 %v37, 124
  %v937 = vadd.s32 %v38, 124
  %v938 = vadd.s32 %v39, 124
  %v939 = vadd.s32 %v40, 124
  %v940 = vadd.s32 %v41, 124
  %v941 = vadd.s32 %v42, 124
  %v942 = vadd.s32 %v43, 124
  %v943 = vadd.s32 %v44, 124
  %v944 = vadd.s32 %v45, 124
  %v945 = vadd.s32 %v46, 124
  %v946 = vadd.s32 %v47, 124
  %v947 = vadd.s32 %v48, 124
  %v948 = vadd.s32 %v49, 124
  %v949 = vadd.s32 %v50, 124
  %v950 = vadd.s32 %v51, 124
  %v951 = vadd.s32 %v52, 124
  %v952 = vadd.s32 %v53, 124
  %v953 = vadd.s32 %v54, 124
  %v954 = vadd.s32 %v55, 124
  %v955 = vadd.s32 %v56, 124
  %v956 = vadd.s32 %v57, 124
  %v957 = vadd.s32 %v58, 124
  %v958 = vadd.s32 %v59, 124
  %v959 = vadd.s32 %v60, 124
  %v960 = vadd.s32 %v61, 124
  %v961 = vadd.s32 %v62, 124
  %v962 = vadd.s32 %v63, 124
  %v963 = vadd.s32 %v64, 124
  %v964 = vadd.s32 %v65, 124
  %v965 = vadd.s32 %v66, 124
  %v966 = vadd.s32 %v67, 124
  %v967 = vadd.s32 %v68, 124
  %v968 = vadd.s32 %v69, 124
  %v969 = vadd.s32 %v70, 124
  %v970 = vadd.s32 %v71, 124
  %v971 = vadd.s32 %v72, 124
  %v972 = vadd.s32 %v73, 124
  %v973 = vadd.s32 %v74, 124
  %974 = vset.pattern.permute.xlu0 2
  %975 = vperm.xlu0 %974, %v910
  %v976 = vpop.permute.xlu0 %975
  %977 = vset.pattern.permute.xlu0 2
  %978 = vperm.xlu0 %977, %v911
  %v979 = vpop.permute.xlu0 %978
  %980 = vset.pattern.permute.xlu0 2
  %981 = vperm.xlu0 %980, %v912
  %v982 = vpop.permute.xlu0 %981
  %983 = vset.pattern.permute.xlu0 2
  %984 = vperm.xlu0 %983, %v913
  %v985 = vpop.permute.xlu0 %984
  %986 = vset.pattern.permute.xlu0 2
  %987 = vperm.xlu0 %986, %v914
  %v988 = vpop.permute.xlu0 %987
  %989 = vset.pattern.permute.xlu0 2
  %990 = vperm.xlu0 %989, %v915
  %v991 = vpop.permute.xlu0 %990
  %992 = vset.pattern.permute.xlu0 2
  %993 = vperm.xlu0 %992, %v916
  %v994 = vpop.permute.xlu0 %993
  %995 = vset.pattern.permute.xlu0 2
  %996 = vperm.xlu0 %995, %v917
  %v997 = vpop.permute.xlu0 %996
  %998 = vset.pattern.permute.xlu0 2
  %999 = vperm.xlu0 %998, %v918
  %v1000 = vpop.permute.xlu0 %999
  %1001 = vset.pattern.permute.xlu0 2
  %1002 = vperm.xlu0 %1001, %v919
  %v1003 = vpop.permute.xlu0 %1002
  %1004 = vset.pattern.permute.xlu0 2
  %1005 = vperm.xlu0 %1004, %v920
  %v1006 = vpop.permute.xlu0 %1005
  %1007 = vset.pattern.permute.xlu0 2
  %1008 = vperm.xlu0 %1007, %v921
  %v1009 = vpop.permute.xlu0 %1008
  %1010 = vset.pattern.permute.xlu0 2
  %1011 = vperm.xlu0 %1010, %v922
  %v1012 = vpop.permute.xlu0 %1011
  %1013 = vset.pattern.permute.xlu0 2
  %1014 = vperm.xlu0 %1013, %v923
  %v1015 = vpop.permute.xlu0 %1014
  %1016 = vset.pattern.permute.xlu0 2
  %1017 = vperm.xlu0 %1016, %v924
  %v1018 = vpop.permute.xlu0 %1017
  %1019 = vset.pattern.permute.xlu0 2
  %1020 = vperm.xlu0 %1019, %v925
  %v1021 = vpop.permute.xlu0 %1020
  %1022 = vset.pattern.permute.xlu0 2
  %1023 = vperm.xlu0 %1022, %v926
  %v1024 = vpop.permute.xlu0 %1023
  %1025 = vset.pattern.permute.xlu0 2
  %1026 = vperm.xlu0 %1025, %v927
  %v1027 = vpop.permute.xlu0 %1026
  %1028 = vset.pattern.permute.xlu0 2
  %1029 = vperm.xlu0 %1028, %v928
  %v1030 = vpop.permute.xlu0 %1029
  %1031 = vset.pattern.permute.xlu0 2
  %1032 = vperm.xlu0 %1031, %v929
  %v1033 = vpop.permute.xlu0 %1032
  %1034 = vset.pattern.permute.xlu0 2
  %1035 = vperm.xlu0 %1034, %v930
  %v1036 = vpop.permute.xlu0 %1035
  %1037 = vset.pattern.permute.xlu0 2
  %1038 = vperm.xlu0 %1037, %v931
  %v1039 = vpop.permute.xlu0 %1038
  %1040 = vset.pattern.permute.xlu0 2
  %1041 = vperm.xlu0 %1040, %v932
  %v1042 = vpop.permute.xlu0 %1041
  %1043 = vset.pattern.permute.xlu0 2
  %1044 = vperm.xlu0 %1043, %v933
  %v1045 = vpop.permute.xlu0 %1044
  %1046 = vset.pattern.permute.xlu0 2
  %1047 = vperm.xlu0 %1046, %v934
  %v1048 = vpop.permute.xlu0 %1047
  %1049 = vset.pattern.permute.xlu0 2
  %1050 = vperm.xlu0 %1049, %v935
  %v1051 = vpop.permute.xlu0 %1050
  %1052 = vset.pattern.permute.xlu0 2
  %1053 = vperm.xlu0 %1052, %v936
  %v1054 = vpop.permute.xlu0 %1053
  %1055 = vset.pattern.permute.xlu0 2
  %1056 = vperm.xlu0 %1055, %v937
  %v1057 = vpop.permute.xlu0 %1056
  %1058 = vset.pattern.permute.xlu0 2
  %1059 = vperm.xlu0 %1058, %v938
  %v1060 = vpop.permute.xlu0 %1059
  %1061 = vset.pattern.permute.xlu0 2
  %1062 = vperm.xlu0 %1061, %v939
  %v1063 = vpop.permute.xlu0 %1062
  %1064 = vset.pattern.permute.xlu0 2
  %1065 = vperm.xlu0 %1064, %v940
  %v1066 = vpop.permute.xlu0 %1065
  %1067 = vset.pattern.permute.xlu0 2
  %1068 = vperm.xlu0 %1067, %v941
  %v1069 = vpop.permute.xlu0 %1068
  %1070 = vset.pattern.permute.xlu0 2
  %1071 = vperm.xlu0 %1070, %v942
  %v1072 = vpop.permute.xlu0 %1071
  %1073 = vset.pattern.permute.xlu0 2
  %1074 = vperm.xlu0 %1073, %v943
  %v1075 = vpop.permute.xlu0 %1074
  %1076 = vset.pattern.permute.xlu0 2
  %1077 = vperm.xlu0 %1076, %v944
  %v1078 = vpop.permute.xlu0 %1077
  %1079 = vset.pattern.permute.xlu0 2
  %1080 = vperm.xlu0 %1079, %v945
  %v1081 = vpop.permute.xlu0 %1080
  %1082 = vset.pattern.permute.xlu0 2
  %1083 = vperm.xlu0 %1082, %v946
  %v1084 = vpop.permute.xlu0 %1083
  %1085 = vset.pattern.permute.xlu0 2
  %1086 = vperm.xlu0 %1085, %v947
  %v1087 = vpop.permute.xlu0 %1086
  %1088 = vset.pattern.permute.xlu0 2
  %1089 = vperm.xlu0 %1088, %v948
  %v1090 = vpop.permute.xlu0 %1089
  %1091 = vset.pattern.permute.xlu0 2
  %1092 = vperm.xlu0 %1091, %v949
  %v1093 = vpop.permute.xlu0 %1092
  %1094 = vset.pattern.permute.xlu0 2
  %1095 = vperm.xlu0 %1094, %v950
  %v1096 = vpop.permute.xlu0 %1095
  %1097 = vset.pattern.permute.xlu0 2
  %1098 = vperm.xlu0 %1097, %v951
  %v1099 = vpop.permute.xlu0 %1098
  %1100 = vset.pattern.permute.xlu0 2
  %1101 = vperm.xlu0 %1100, %v952
  %v1102 = vpop.permute.xlu0 %1101
  %1103 = vset.pattern.permute.xlu0 2
  %1104 = vperm.xlu0 %1103, %v953
  %v1105 = vpop.permute.xlu0 %1104
  %1106 = vset.pattern.permute.xlu0 2
  %1107 = vperm.xlu0 %1106, %v954
  %v1108 = vpop.permute.xlu0 %1107
  %1109 = vset.pattern.permute.xlu0 2
  %1110 = vperm.xlu0 %1109, %v955
  %v1111 = vpop.permute.xlu0 %1110
  %1112 = vset.pattern.permute.xlu0 2
  %1113 = vperm.xlu0 %1112, %v956
  %v1114 = vpop.permute.xlu0 %1113
  %1115 = vset.pattern.permute.xlu0 2
  %1116 = vperm.xlu0 %1115, %v957
  %v1117 = vpop.permute.xlu0 %1116
  %1118 = vset.pattern.permute.xlu0 2
  %1119 = vperm.xlu0 %1118, %v958
  %v1120 = vpop.permute.xlu0 %1119
  %1121 = vset.pattern.permute.xlu0 2
  %1122 = vperm.xlu0 %1121, %v959
  %v1123 = vpop.permute.xlu0 %1122
  %1124 = vset.pattern.permute.xlu0 2
  %1125 = vperm.xlu0 %1124, %v960
  %v1126 = vpop.permute.xlu0 %1125
  %1127 = vset.pattern.permute.xlu0 2
  %1128 = vperm.xlu0 %1127, %v961
  %v1129 = vpop.permute.xlu0 %1128
  %1130 = vset.pattern.permute.xlu0 2
  %1131 = vperm.xlu0 %1130, %v962
  %v1132 = vpop.permute.xlu0 %1131
  %1133 = vset.pattern.permute.xlu0 2
  %1134 = vperm.xlu0 %1133, %v963
  %v1135 = vpop.permute.xlu0 %1134
  %1136 = vset.pattern.permute.xlu0 2
  %1137 = vperm.xlu0 %1136, %v964
  %v1138 = vpop.permute.xlu0 %1137
  %1139 = vset.pattern.permute.xlu0 2
  %1140 = vperm.xlu0 %1139, %v965
  %v1141 = vpop.permute.xlu0 %1140
  %1142 = vset.pattern.permute.xlu0 2
  %1143 = vperm.xlu0 %1142, %v966
  %v1144 = vpop.permute.xlu0 %1143
  %1145 = vset.pattern.permute.xlu0 2
  %1146 = vperm.xlu0 %1145, %v967
  %v1147 = vpop.permute.xlu0 %1146
  %1148 = vset.pattern.permute.xlu0 2
  %1149 = vperm.xlu0 %1148, %v968
  %v1150 = vpop.permute.xlu0 %1149
  %1151 = vset.pattern.permute.xlu0 2
  %1152 = vperm.xlu0 %1151, %v969
  %v1153 = vpop.permute.xlu0 %1152
  %1154 = vset.pattern.permute.xlu0 2
  %1155 = vperm.xlu0 %1154, %v970
  %v1156 = vpop.permute.xlu0 %1155
  %1157 = vset.pattern.permute.xlu0 2
  %1158 = vperm.xlu0 %1157, %v971
  %v1159 = vpop.permute.xlu0 %1158
  %1160 = vset.pattern.permute.xlu0 2
  %1161 = vperm.xlu0 %1160, %v972
  %v1162 = vpop.permute.xlu0 %1161
  %1163 = vset.pattern.permute.xlu0 2
  %1164 = vperm.xlu0 %1163, %v973
  %v1165 = vpop.permute.xlu0 %1164
  %vm1166 = vcmp.eq.s32.totalorder %v976, %v76
  %vm1167 = vcmp.eq.s32.totalorder %v976, %v77
  %vm1168 = vcmp.eq.s32.totalorder %v979, %v76
  %vm1169 = vcmp.eq.s32.totalorder %v979, %v77
  %vm1170 = vcmp.eq.s32.totalorder %v982, %v76
  %vm1171 = vcmp.eq.s32.totalorder %v982, %v77
  %vm1172 = vcmp.eq.s32.totalorder %v985, %v76
  %vm1173 = vcmp.eq.s32.totalorder %v985, %v77
  %vm1174 = vcmp.eq.s32.totalorder %v988, %v76
  %vm1175 = vcmp.eq.s32.totalorder %v988, %v77
  %vm1176 = vcmp.eq.s32.totalorder %v991, %v76
  %vm1177 = vcmp.eq.s32.totalorder %v991, %v77
  %vm1178 = vcmp.eq.s32.totalorder %v994, %v76
  %vm1179 = vcmp.eq.s32.totalorder %v994, %v77
  %vm1180 = vcmp.eq.s32.totalorder %v997, %v76
  %vm1181 = vcmp.eq.s32.totalorder %v997, %v77
  %vm1182 = vcmp.eq.s32.totalorder %v1000, %v76
  %vm1183 = vcmp.eq.s32.totalorder %v1000, %v77
  %vm1184 = vcmp.eq.s32.totalorder %v1003, %v76
  %vm1185 = vcmp.eq.s32.totalorder %v1003, %v77
  %vm1186 = vcmp.eq.s32.totalorder %v1006, %v76
  %vm1187 = vcmp.eq.s32.totalorder %v1006, %v77
  %vm1188 = vcmp.eq.s32.totalorder %v1009, %v76
  %vm1189 = vcmp.eq.s32.totalorder %v1009, %v77
  %vm1190 = vcmp.eq.s32.totalorder %v1012, %v76
  %vm1191 = vcmp.eq.s32.totalorder %v1012, %v77
  %vm1192 = vcmp.eq.s32.totalorder %v1015, %v76
  %vm1193 = vcmp.eq.s32.totalorder %v1015, %v77
  %vm1194 = vcmp.eq.s32.totalorder %v1018, %v76
  %vm1195 = vcmp.eq.s32.totalorder %v1018, %v77
  %vm1196 = vcmp.eq.s32.totalorder %v1021, %v76
  %vm1197 = vcmp.eq.s32.totalorder %v1021, %v77
  %vm1198 = vcmp.eq.s32.totalorder %v1024, %v76
  %vm1199 = vcmp.eq.s32.totalorder %v1024, %v77
  %vm1200 = vcmp.eq.s32.totalorder %v1027, %v76
  %vm1201 = vcmp.eq.s32.totalorder %v1027, %v77
  %vm1202 = vcmp.eq.s32.totalorder %v1030, %v76
  %vm1203 = vcmp.eq.s32.totalorder %v1030, %v77
  %vm1204 = vcmp.eq.s32.totalorder %v1033, %v76
  %vm1205 = vcmp.eq.s32.totalorder %v1033, %v77
  %vm1206 = vcmp.eq.s32.totalorder %v1036, %v76
  %vm1207 = vcmp.eq.s32.totalorder %v1036, %v77
  %vm1208 = vcmp.eq.s32.totalorder %v1039, %v76
  %vm1209 = vcmp.eq.s32.totalorder %v1039, %v77
  %vm1210 = vcmp.eq.s32.totalorder %v1042, %v76
  %vm1211 = vcmp.eq.s32.totalorder %v1042, %v77
  %vm1212 = vcmp.eq.s32.totalorder %v1045, %v76
  %vm1213 = vcmp.eq.s32.totalorder %v1045, %v77
  %vm1214 = vcmp.eq.s32.totalorder %v1048, %v76
  %vm1215 = vcmp.eq.s32.totalorder %v1048, %v77
  %vm1216 = vcmp.eq.s32.totalorder %v1051, %v76
  %vm1217 = vcmp.eq.s32.totalorder %v1051, %v77
  %vm1218 = vcmp.eq.s32.totalorder %v1054, %v76
  %vm1219 = vcmp.eq.s32.totalorder %v1054, %v77
  %vm1220 = vcmp.eq.s32.totalorder %v1057, %v76
  %vm1221 = vcmp.eq.s32.totalorder %v1057, %v77
  %vm1222 = vcmp.eq.s32.totalorder %v1060, %v76
  %vm1223 = vcmp.eq.s32.totalorder %v1060, %v77
  %vm1224 = vcmp.eq.s32.totalorder %v1063, %v76
  %vm1225 = vcmp.eq.s32.totalorder %v1063, %v77
  %vm1226 = vcmp.eq.s32.totalorder %v1066, %v76
  %vm1227 = vcmp.eq.s32.totalorder %v1066, %v77
  %vm1228 = vcmp.eq.s32.totalorder %v1069, %v76
  %vm1229 = vcmp.eq.s32.totalorder %v1069, %v77
  %vm1230 = vcmp.eq.s32.totalorder %v1072, %v76
  %vm1231 = vcmp.eq.s32.totalorder %v1072, %v77
  %vm1232 = vcmp.eq.s32.totalorder %v1075, %v76
  %vm1233 = vcmp.eq.s32.totalorder %v1075, %v77
  %vm1234 = vcmp.eq.s32.totalorder %v1078, %v76
  %vm1235 = vcmp.eq.s32.totalorder %v1078, %v77
  %vm1236 = vcmp.eq.s32.totalorder %v1081, %v76
  %vm1237 = vcmp.eq.s32.totalorder %v1081, %v77
  %vm1238 = vcmp.eq.s32.totalorder %v1084, %v76
  %vm1239 = vcmp.eq.s32.totalorder %v1084, %v77
  %vm1240 = vcmp.eq.s32.totalorder %v1087, %v76
  %vm1241 = vcmp.eq.s32.totalorder %v1087, %v77
  %vm1242 = vcmp.eq.s32.totalorder %v1090, %v76
  %vm1243 = vcmp.eq.s32.totalorder %v1090, %v77
  %vm1244 = vcmp.eq.s32.totalorder %v1093, %v76
  %vm1245 = vcmp.eq.s32.totalorder %v1093, %v77
  %vm1246 = vcmp.eq.s32.totalorder %v1096, %v76
  %vm1247 = vcmp.eq.s32.totalorder %v1096, %v77
  %vm1248 = vcmp.eq.s32.totalorder %v1099, %v76
  %vm1249 = vcmp.eq.s32.totalorder %v1099, %v77
  %vm1250 = vcmp.eq.s32.totalorder %v1102, %v76
  %vm1251 = vcmp.eq.s32.totalorder %v1102, %v77
  %vm1252 = vcmp.eq.s32.totalorder %v1105, %v76
  %vm1253 = vcmp.eq.s32.totalorder %v1105, %v77
  %vm1254 = vcmp.eq.s32.totalorder %v1108, %v76
  %vm1255 = vcmp.eq.s32.totalorder %v1108, %v77
  %vm1256 = vcmp.eq.s32.totalorder %v1111, %v76
  %vm1257 = vcmp.eq.s32.totalorder %v1111, %v77
  %vm1258 = vcmp.eq.s32.totalorder %v1114, %v76
  %vm1259 = vcmp.eq.s32.totalorder %v1114, %v77
  %vm1260 = vcmp.eq.s32.totalorder %v1117, %v76
  %vm1261 = vcmp.eq.s32.totalorder %v1117, %v77
  %vm1262 = vcmp.eq.s32.totalorder %v1120, %v76
  %vm1263 = vcmp.eq.s32.totalorder %v1120, %v77
  %vm1264 = vcmp.eq.s32.totalorder %v1123, %v76
  %vm1265 = vcmp.eq.s32.totalorder %v1123, %v77
  %vm1266 = vcmp.eq.s32.totalorder %v1126, %v76
  %vm1267 = vcmp.eq.s32.totalorder %v1126, %v77
  %vm1268 = vcmp.eq.s32.totalorder %v1129, %v76
  %vm1269 = vcmp.eq.s32.totalorder %v1129, %v77
  %vm1270 = vcmp.eq.s32.totalorder %v1132, %v76
  %vm1271 = vcmp.eq.s32.totalorder %v1132, %v77
  %vm1272 = vcmp.eq.s32.totalorder %v1135, %v76
  %vm1273 = vcmp.eq.s32.totalorder %v1135, %v77
  %vm1274 = vcmp.eq.s32.totalorder %v1138, %v76
  %vm1275 = vcmp.eq.s32.totalorder %v1138, %v77
  %vm1276 = vcmp.eq.s32.totalorder %v1141, %v76
  %vm1277 = vcmp.eq.s32.totalorder %v1141, %v77
  %vm1278 = vcmp.eq.s32.totalorder %v1144, %v76
  %vm1279 = vcmp.eq.s32.totalorder %v1144, %v77
  %vm1280 = vcmp.eq.s32.totalorder %v1147, %v76
  %vm1281 = vcmp.eq.s32.totalorder %v1147, %v77
  %vm1282 = vcmp.eq.s32.totalorder %v1150, %v76
  %vm1283 = vcmp.eq.s32.totalorder %v1150, %v77
  %vm1284 = vcmp.eq.s32.totalorder %v1153, %v76
  %vm1285 = vcmp.eq.s32.totalorder %v1153, %v77
  %vm1286 = vcmp.eq.s32.totalorder %v1156, %v76
  %vm1287 = vcmp.eq.s32.totalorder %v1156, %v77
  %vm1288 = vcmp.eq.s32.totalorder %v1159, %v76
  %vm1289 = vcmp.eq.s32.totalorder %v1159, %v77
  %vm1290 = vcmp.eq.s32.totalorder %v1162, %v76
  %vm1291 = vcmp.eq.s32.totalorder %v1162, %v77
  %vm1292 = vcmp.eq.s32.totalorder %v1165, %v76
  %vm1293 = vcmp.eq.s32.totalorder %v1165, %v77
  %vm1294 = vmor %vm782, %vm1166
  %vm1295 = vmor %vm783, %vm1167
  %vm1296 = vmor %vm784, %vm1168
  %vm1297 = vmor %vm785, %vm1169
  %vm1298 = vmor %vm786, %vm1170
  %vm1299 = vmor %vm787, %vm1171
  %vm1300 = vmor %vm788, %vm1172
  %vm1301 = vmor %vm789, %vm1173
  %vm1302 = vmor %vm790, %vm1174
  %vm1303 = vmor %vm791, %vm1175
  %vm1304 = vmor %vm792, %vm1176
  %vm1305 = vmor %vm793, %vm1177
  %vm1306 = vmor %vm794, %vm1178
  %vm1307 = vmor %vm795, %vm1179
  %vm1308 = vmor %vm796, %vm1180
  %vm1309 = vmor %vm797, %vm1181
  %vm1310 = vmor %vm798, %vm1182
  %vm1311 = vmor %vm799, %vm1183
  %vm1312 = vmor %vm800, %vm1184
  %vm1313 = vmor %vm801, %vm1185
  %vm1314 = vmor %vm802, %vm1186
  %vm1315 = vmor %vm803, %vm1187
  %vm1316 = vmor %vm804, %vm1188
  %vm1317 = vmor %vm805, %vm1189
  %vm1318 = vmor %vm806, %vm1190
  %vm1319 = vmor %vm807, %vm1191
  %vm1320 = vmor %vm808, %vm1192
  %vm1321 = vmor %vm809, %vm1193
  %vm1322 = vmor %vm810, %vm1194
  %vm1323 = vmor %vm811, %vm1195
  %vm1324 = vmor %vm812, %vm1196
  %vm1325 = vmor %vm813, %vm1197
  %vm1326 = vmor %vm814, %vm1198
  %vm1327 = vmor %vm815, %vm1199
  %vm1328 = vmor %vm816, %vm1200
  %vm1329 = vmor %vm817, %vm1201
  %vm1330 = vmor %vm818, %vm1202
  %vm1331 = vmor %vm819, %vm1203
  %vm1332 = vmor %vm820, %vm1204
  %vm1333 = vmor %vm821, %vm1205
  %vm1334 = vmor %vm822, %vm1206
  %vm1335 = vmor %vm823, %vm1207
  %vm1336 = vmor %vm824, %vm1208
  %vm1337 = vmor %vm825, %vm1209
  %vm1338 = vmor %vm826, %vm1210
  %vm1339 = vmor %vm827, %vm1211
  %vm1340 = vmor %vm828, %vm1212
  %vm1341 = vmor %vm829, %vm1213
  %vm1342 = vmor %vm830, %vm1214
  %vm1343 = vmor %vm831, %vm1215
  %vm1344 = vmor %vm832, %vm1216
  %vm1345 = vmor %vm833, %vm1217
  %vm1346 = vmor %vm834, %vm1218
  %vm1347 = vmor %vm835, %vm1219
  %vm1348 = vmor %vm836, %vm1220
  %vm1349 = vmor %vm837, %vm1221
  %vm1350 = vmor %vm838, %vm1222
  %vm1351 = vmor %vm839, %vm1223
  %vm1352 = vmor %vm840, %vm1224
  %vm1353 = vmor %vm841, %vm1225
  %vm1354 = vmor %vm842, %vm1226
  %vm1355 = vmor %vm843, %vm1227
  %vm1356 = vmor %vm844, %vm1228
  %vm1357 = vmor %vm845, %vm1229
  %vm1358 = vmor %vm846, %vm1230
  %vm1359 = vmor %vm847, %vm1231
  %vm1360 = vmor %vm848, %vm1232
  %vm1361 = vmor %vm849, %vm1233
  %vm1362 = vmor %vm850, %vm1234
  %vm1363 = vmor %vm851, %vm1235
  %vm1364 = vmor %vm852, %vm1236
  %vm1365 = vmor %vm853, %vm1237
  %vm1366 = vmor %vm854, %vm1238
  %vm1367 = vmor %vm855, %vm1239
  %vm1368 = vmor %vm856, %vm1240
  %vm1369 = vmor %vm857, %vm1241
  %vm1370 = vmor %vm858, %vm1242
  %vm1371 = vmor %vm859, %vm1243
  %vm1372 = vmor %vm860, %vm1244
  %vm1373 = vmor %vm861, %vm1245
  %vm1374 = vmor %vm862, %vm1246
  %vm1375 = vmor %vm863, %vm1247
  %vm1376 = vmor %vm864, %vm1248
  %vm1377 = vmor %vm865, %vm1249
  %vm1378 = vmor %vm866, %vm1250
  %vm1379 = vmor %vm867, %vm1251
  %vm1380 = vmor %vm868, %vm1252
  %vm1381 = vmor %vm869, %vm1253
  %vm1382 = vmor %vm870, %vm1254
  %vm1383 = vmor %vm871, %vm1255
  %vm1384 = vmor %vm872, %vm1256
  %vm1385 = vmor %vm873, %vm1257
  %vm1386 = vmor %vm874, %vm1258
  %vm1387 = vmor %vm875, %vm1259
  %vm1388 = vmor %vm876, %vm1260
  %vm1389 = vmor %vm877, %vm1261
  %vm1390 = vmor %vm878, %vm1262
  %vm1391 = vmor %vm879, %vm1263
  %vm1392 = vmor %vm880, %vm1264
  %vm1393 = vmor %vm881, %vm1265
  %vm1394 = vmor %vm882, %vm1266
  %vm1395 = vmor %vm883, %vm1267
  %vm1396 = vmor %vm884, %vm1268
  %vm1397 = vmor %vm885, %vm1269
  %vm1398 = vmor %vm886, %vm1270
  %vm1399 = vmor %vm887, %vm1271
  %vm1400 = vmor %vm888, %vm1272
  %vm1401 = vmor %vm889, %vm1273
  %vm1402 = vmor %vm890, %vm1274
  %vm1403 = vmor %vm891, %vm1275
  %vm1404 = vmor %vm892, %vm1276
  %vm1405 = vmor %vm893, %vm1277
  %vm1406 = vmor %vm894, %vm1278
  %vm1407 = vmor %vm895, %vm1279
  %vm1408 = vmor %vm896, %vm1280
  %vm1409 = vmor %vm897, %vm1281
  %vm1410 = vmor %vm898, %vm1282
  %vm1411 = vmor %vm899, %vm1283
  %vm1412 = vmor %vm900, %vm1284
  %vm1413 = vmor %vm901, %vm1285
  %vm1414 = vmor %vm902, %vm1286
  %vm1415 = vmor %vm903, %vm1287
  %vm1416 = vmor %vm904, %vm1288
  %vm1417 = vmor %vm905, %vm1289
  %vm1418 = vmor %vm906, %vm1290
  %vm1419 = vmor %vm907, %vm1291
  %vm1420 = vmor %vm908, %vm1292
  %vm1421 = vmor %vm909, %vm1293
  %v1422 = vadd.s32 %v11, 136
  %v1423 = vadd.s32 %v12, 136
  %v1424 = vadd.s32 %v13, 136
  %v1425 = vadd.s32 %v14, 136
  %v1426 = vadd.s32 %v15, 136
  %v1427 = vadd.s32 %v16, 136
  %v1428 = vadd.s32 %v17, 136
  %v1429 = vadd.s32 %v18, 136
  %v1430 = vadd.s32 %v19, 136
  %v1431 = vadd.s32 %v20, 136
  %v1432 = vadd.s32 %v21, 136
  %v1433 = vadd.s32 %v22, 136
  %v1434 = vadd.s32 %v23, 136
  %v1435 = vadd.s32 %v24, 136
  %v1436 = vadd.s32 %v25, 136
  %v1437 = vadd.s32 %v26, 136
  %v1438 = vadd.s32 %v27, 136
  %v1439 = vadd.s32 %v28, 136
  %v1440 = vadd.s32 %v29, 136
  %v1441 = vadd.s32 %v30, 136
  %v1442 = vadd.s32 %v31, 136
  %v1443 = vadd.s32 %v32, 136
  %v1444 = vadd.s32 %v33, 136
  %v1445 = vadd.s32 %v34, 136
  %v1446 = vadd.s32 %v35, 136
  %v1447 = vadd.s32 %v36, 136
  %v1448 = vadd.s32 %v37, 136
  %v1449 = vadd.s32 %v38, 136
  %v1450 = vadd.s32 %v39, 136
  %v1451 = vadd.s32 %v40, 136
  %v1452 = vadd.s32 %v41, 136
  %v1453 = vadd.s32 %v42, 136
  %v1454 = vadd.s32 %v43, 136
  %v1455 = vadd.s32 %v44, 136
  %v1456 = vadd.s32 %v45, 136
  %v1457 = vadd.s32 %v46, 136
  %v1458 = vadd.s32 %v47, 136
  %v1459 = vadd.s32 %v48, 136
  %v1460 = vadd.s32 %v49, 136
  %v1461 = vadd.s32 %v50, 136
  %v1462 = vadd.s32 %v51, 136
  %v1463 = vadd.s32 %v52, 136
  %v1464 = vadd.s32 %v53, 136
  %v1465 = vadd.s32 %v54, 136
  %v1466 = vadd.s32 %v55, 136
  %v1467 = vadd.s32 %v56, 136
  %v1468 = vadd.s32 %v57, 136
  %v1469 = vadd.s32 %v58, 136
  %v1470 = vadd.s32 %v59, 136
  %v1471 = vadd.s32 %v60, 136
  %v1472 = vadd.s32 %v61, 136
  %v1473 = vadd.s32 %v62, 136
  %v1474 = vadd.s32 %v63, 136
  %v1475 = vadd.s32 %v64, 136
  %v1476 = vadd.s32 %v65, 136
  %v1477 = vadd.s32 %v66, 136
  %v1478 = vadd.s32 %v67, 136
  %v1479 = vadd.s32 %v68, 136
  %v1480 = vadd.s32 %v69, 136
  %v1481 = vadd.s32 %v70, 136
  %v1482 = vadd.s32 %v71, 136
  %v1483 = vadd.s32 %v72, 136
  %v1484 = vadd.s32 %v73, 136
  %v1485 = vadd.s32 %v74, 136
  %1486 = vset.pattern.permute.xlu0 3
  %1487 = vperm.xlu0 %1486, %v1422
  %v1488 = vpop.permute.xlu0 %1487
  %1489 = vset.pattern.permute.xlu0 3
  %1490 = vperm.xlu0 %1489, %v1423
  %v1491 = vpop.permute.xlu0 %1490
  %1492 = vset.pattern.permute.xlu0 3
  %1493 = vperm.xlu0 %1492, %v1424
  %v1494 = vpop.permute.xlu0 %1493
  %1495 = vset.pattern.permute.xlu0 3
  %1496 = vperm.xlu0 %1495, %v1425
  %v1497 = vpop.permute.xlu0 %1496
  %1498 = vset.pattern.permute.xlu0 3
  %1499 = vperm.xlu0 %1498, %v1426
  %v1500 = vpop.permute.xlu0 %1499
  %1501 = vset.pattern.permute.xlu0 3
  %1502 = vperm.xlu0 %1501, %v1427
  %v1503 = vpop.permute.xlu0 %1502
  %1504 = vset.pattern.permute.xlu0 3
  %1505 = vperm.xlu0 %1504, %v1428
  %v1506 = vpop.permute.xlu0 %1505
  %1507 = vset.pattern.permute.xlu0 3
  %1508 = vperm.xlu0 %1507, %v1429
  %v1509 = vpop.permute.xlu0 %1508
  %1510 = vset.pattern.permute.xlu0 3
  %1511 = vperm.xlu0 %1510, %v1430
  %v1512 = vpop.permute.xlu0 %1511
  %1513 = vset.pattern.permute.xlu0 3
  %1514 = vperm.xlu0 %1513, %v1431
  %v1515 = vpop.permute.xlu0 %1514
  %1516 = vset.pattern.permute.xlu0 3
  %1517 = vperm.xlu0 %1516, %v1432
  %v1518 = vpop.permute.xlu0 %1517
  %1519 = vset.pattern.permute.xlu0 3
  %1520 = vperm.xlu0 %1519, %v1433
  %v1521 = vpop.permute.xlu0 %1520
  %1522 = vset.pattern.permute.xlu0 3
  %1523 = vperm.xlu0 %1522, %v1434
  %v1524 = vpop.permute.xlu0 %1523
  %1525 = vset.pattern.permute.xlu0 3
  %1526 = vperm.xlu0 %1525, %v1435
  %v1527 = vpop.permute.xlu0 %1526
  %1528 = vset.pattern.permute.xlu0 3
  %1529 = vperm.xlu0 %1528, %v1436
  %v1530 = vpop.permute.xlu0 %1529
  %1531 = vset.pattern.permute.xlu0 3
  %1532 = vperm.xlu0 %1531, %v1437
  %v1533 = vpop.permute.xlu0 %1532
  %1534 = vset.pattern.permute.xlu0 3
  %1535 = vperm.xlu0 %1534, %v1438
  %v1536 = vpop.permute.xlu0 %1535
  %1537 = vset.pattern.permute.xlu0 3
  %1538 = vperm.xlu0 %1537, %v1439
  %v1539 = vpop.permute.xlu0 %1538
  %1540 = vset.pattern.permute.xlu0 3
  %1541 = vperm.xlu0 %1540, %v1440
  %v1542 = vpop.permute.xlu0 %1541
  %1543 = vset.pattern.permute.xlu0 3
  %1544 = vperm.xlu0 %1543, %v1441
  %v1545 = vpop.permute.xlu0 %1544
  %1546 = vset.pattern.permute.xlu0 3
  %1547 = vperm.xlu0 %1546, %v1442
  %v1548 = vpop.permute.xlu0 %1547
  %1549 = vset.pattern.permute.xlu0 3
  %1550 = vperm.xlu0 %1549, %v1443
  %v1551 = vpop.permute.xlu0 %1550
  %1552 = vset.pattern.permute.xlu0 3
  %1553 = vperm.xlu0 %1552, %v1444
  %v1554 = vpop.permute.xlu0 %1553
  %1555 = vset.pattern.permute.xlu0 3
  %1556 = vperm.xlu0 %1555, %v1445
  %v1557 = vpop.permute.xlu0 %1556
  %1558 = vset.pattern.permute.xlu0 3
  %1559 = vperm.xlu0 %1558, %v1446
  %v1560 = vpop.permute.xlu0 %1559
  %1561 = vset.pattern.permute.xlu0 3
  %1562 = vperm.xlu0 %1561, %v1447
  %v1563 = vpop.permute.xlu0 %1562
  %1564 = vset.pattern.permute.xlu0 3
  %1565 = vperm.xlu0 %1564, %v1448
  %v1566 = vpop.permute.xlu0 %1565
  %1567 = vset.pattern.permute.xlu0 3
  %1568 = vperm.xlu0 %1567, %v1449
  %v1569 = vpop.permute.xlu0 %1568
  %1570 = vset.pattern.permute.xlu0 3
  %1571 = vperm.xlu0 %1570, %v1450
  %v1572 = vpop.permute.xlu0 %1571
  %1573 = vset.pattern.permute.xlu0 3
  %1574 = vperm.xlu0 %1573, %v1451
  %v1575 = vpop.permute.xlu0 %1574
  %1576 = vset.pattern.permute.xlu0 3
  %1577 = vperm.xlu0 %1576, %v1452
  %v1578 = vpop.permute.xlu0 %1577
  %1579 = vset.pattern.permute.xlu0 3
  %1580 = vperm.xlu0 %1579, %v1453
  %v1581 = vpop.permute.xlu0 %1580
  %1582 = vset.pattern.permute.xlu0 3
  %1583 = vperm.xlu0 %1582, %v1454
  %v1584 = vpop.permute.xlu0 %1583
  %1585 = vset.pattern.permute.xlu0 3
  %1586 = vperm.xlu0 %1585, %v1455
  %v1587 = vpop.permute.xlu0 %1586
  %1588 = vset.pattern.permute.xlu0 3
  %1589 = vperm.xlu0 %1588, %v1456
  %v1590 = vpop.permute.xlu0 %1589
  %1591 = vset.pattern.permute.xlu0 3
  %1592 = vperm.xlu0 %1591, %v1457
  %v1593 = vpop.permute.xlu0 %1592
  %1594 = vset.pattern.permute.xlu0 3
  %1595 = vperm.xlu0 %1594, %v1458
  %v1596 = vpop.permute.xlu0 %1595
  %1597 = vset.pattern.permute.xlu0 3
  %1598 = vperm.xlu0 %1597, %v1459
  %v1599 = vpop.permute.xlu0 %1598
  %1600 = vset.pattern.permute.xlu0 3
  %1601 = vperm.xlu0 %1600, %v1460
  %v1602 = vpop.permute.xlu0 %1601
  %1603 = vset.pattern.permute.xlu0 3
  %1604 = vperm.xlu0 %1603, %v1461
  %v1605 = vpop.permute.xlu0 %1604
  %1606 = vset.pattern.permute.xlu0 3
  %1607 = vperm.xlu0 %1606, %v1462
  %v1608 = vpop.permute.xlu0 %1607
  %1609 = vset.pattern.permute.xlu0 3
  %1610 = vperm.xlu0 %1609, %v1463
  %v1611 = vpop.permute.xlu0 %1610
  %1612 = vset.pattern.permute.xlu0 3
  %1613 = vperm.xlu0 %1612, %v1464
  %v1614 = vpop.permute.xlu0 %1613
  %1615 = vset.pattern.permute.xlu0 3
  %1616 = vperm.xlu0 %1615, %v1465
  %v1617 = vpop.permute.xlu0 %1616
  %1618 = vset.pattern.permute.xlu0 3
  %1619 = vperm.xlu0 %1618, %v1466
  %v1620 = vpop.permute.xlu0 %1619
  %1621 = vset.pattern.permute.xlu0 3
  %1622 = vperm.xlu0 %1621, %v1467
  %v1623 = vpop.permute.xlu0 %1622
  %1624 = vset.pattern.permute.xlu0 3
  %1625 = vperm.xlu0 %1624, %v1468
  %v1626 = vpop.permute.xlu0 %1625
  %1627 = vset.pattern.permute.xlu0 3
  %1628 = vperm.xlu0 %1627, %v1469
  %v1629 = vpop.permute.xlu0 %1628
  %1630 = vset.pattern.permute.xlu0 3
  %1631 = vperm.xlu0 %1630, %v1470
  %v1632 = vpop.permute.xlu0 %1631
  %1633 = vset.pattern.permute.xlu0 3
  %1634 = vperm.xlu0 %1633, %v1471
  %v1635 = vpop.permute.xlu0 %1634
  %1636 = vset.pattern.permute.xlu0 3
  %1637 = vperm.xlu0 %1636, %v1472
  %v1638 = vpop.permute.xlu0 %1637
  %1639 = vset.pattern.permute.xlu0 3
  %1640 = vperm.xlu0 %1639, %v1473
  %v1641 = vpop.permute.xlu0 %1640
  %1642 = vset.pattern.permute.xlu0 3
  %1643 = vperm.xlu0 %1642, %v1474
  %v1644 = vpop.permute.xlu0 %1643
  %1645 = vset.pattern.permute.xlu0 3
  %1646 = vperm.xlu0 %1645, %v1475
  %v1647 = vpop.permute.xlu0 %1646
  %1648 = vset.pattern.permute.xlu0 3
  %1649 = vperm.xlu0 %1648, %v1476
  %v1650 = vpop.permute.xlu0 %1649
  %1651 = vset.pattern.permute.xlu0 3
  %1652 = vperm.xlu0 %1651, %v1477
  %v1653 = vpop.permute.xlu0 %1652
  %1654 = vset.pattern.permute.xlu0 3
  %1655 = vperm.xlu0 %1654, %v1478
  %v1656 = vpop.permute.xlu0 %1655
  %1657 = vset.pattern.permute.xlu0 3
  %1658 = vperm.xlu0 %1657, %v1479
  %v1659 = vpop.permute.xlu0 %1658
  %1660 = vset.pattern.permute.xlu0 3
  %1661 = vperm.xlu0 %1660, %v1480
  %v1662 = vpop.permute.xlu0 %1661
  %1663 = vset.pattern.permute.xlu0 3
  %1664 = vperm.xlu0 %1663, %v1481
  %v1665 = vpop.permute.xlu0 %1664
  %1666 = vset.pattern.permute.xlu0 3
  %1667 = vperm.xlu0 %1666, %v1482
  %v1668 = vpop.permute.xlu0 %1667
  %1669 = vset.pattern.permute.xlu0 3
  %1670 = vperm.xlu0 %1669, %v1483
  %v1671 = vpop.permute.xlu0 %1670
  %1672 = vset.pattern.permute.xlu0 3
  %1673 = vperm.xlu0 %1672, %v1484
  %v1674 = vpop.permute.xlu0 %1673
  %1675 = vset.pattern.permute.xlu0 3
  %1676 = vperm.xlu0 %1675, %v1485
  %v1677 = vpop.permute.xlu0 %1676
  %vm1678 = vcmp.eq.s32.totalorder %v1488, %v76
  %vm1679 = vcmp.eq.s32.totalorder %v1488, %v77
  %vm1680 = vcmp.eq.s32.totalorder %v1491, %v76
  %vm1681 = vcmp.eq.s32.totalorder %v1491, %v77
  %vm1682 = vcmp.eq.s32.totalorder %v1494, %v76
  %vm1683 = vcmp.eq.s32.totalorder %v1494, %v77
  %vm1684 = vcmp.eq.s32.totalorder %v1497, %v76
  %vm1685 = vcmp.eq.s32.totalorder %v1497, %v77
  %vm1686 = vcmp.eq.s32.totalorder %v1500, %v76
  %vm1687 = vcmp.eq.s32.totalorder %v1500, %v77
  %vm1688 = vcmp.eq.s32.totalorder %v1503, %v76
  %vm1689 = vcmp.eq.s32.totalorder %v1503, %v77
  %vm1690 = vcmp.eq.s32.totalorder %v1506, %v76
  %vm1691 = vcmp.eq.s32.totalorder %v1506, %v77
  %vm1692 = vcmp.eq.s32.totalorder %v1509, %v76
  %vm1693 = vcmp.eq.s32.totalorder %v1509, %v77
  %vm1694 = vcmp.eq.s32.totalorder %v1512, %v76
  %vm1695 = vcmp.eq.s32.totalorder %v1512, %v77
  %vm1696 = vcmp.eq.s32.totalorder %v1515, %v76
  %vm1697 = vcmp.eq.s32.totalorder %v1515, %v77
  %vm1698 = vcmp.eq.s32.totalorder %v1518, %v76
  %vm1699 = vcmp.eq.s32.totalorder %v1518, %v77
  %vm1700 = vcmp.eq.s32.totalorder %v1521, %v76
  %vm1701 = vcmp.eq.s32.totalorder %v1521, %v77
  %vm1702 = vcmp.eq.s32.totalorder %v1524, %v76
  %vm1703 = vcmp.eq.s32.totalorder %v1524, %v77
  %vm1704 = vcmp.eq.s32.totalorder %v1527, %v76
  %vm1705 = vcmp.eq.s32.totalorder %v1527, %v77
  %vm1706 = vcmp.eq.s32.totalorder %v1530, %v76
  %vm1707 = vcmp.eq.s32.totalorder %v1530, %v77
  %vm1708 = vcmp.eq.s32.totalorder %v1533, %v76
  %vm1709 = vcmp.eq.s32.totalorder %v1533, %v77
  %vm1710 = vcmp.eq.s32.totalorder %v1536, %v76
  %vm1711 = vcmp.eq.s32.totalorder %v1536, %v77
  %vm1712 = vcmp.eq.s32.totalorder %v1539, %v76
  %vm1713 = vcmp.eq.s32.totalorder %v1539, %v77
  %vm1714 = vcmp.eq.s32.totalorder %v1542, %v76
  %vm1715 = vcmp.eq.s32.totalorder %v1542, %v77
  %vm1716 = vcmp.eq.s32.totalorder %v1545, %v76
  %vm1717 = vcmp.eq.s32.totalorder %v1545, %v77
  %vm1718 = vcmp.eq.s32.totalorder %v1548, %v76
  %vm1719 = vcmp.eq.s32.totalorder %v1548, %v77
  %vm1720 = vcmp.eq.s32.totalorder %v1551, %v76
  %vm1721 = vcmp.eq.s32.totalorder %v1551, %v77
  %vm1722 = vcmp.eq.s32.totalorder %v1554, %v76
  %vm1723 = vcmp.eq.s32.totalorder %v1554, %v77
  %vm1724 = vcmp.eq.s32.totalorder %v1557, %v76
  %vm1725 = vcmp.eq.s32.totalorder %v1557, %v77
  %vm1726 = vcmp.eq.s32.totalorder %v1560, %v76
  %vm1727 = vcmp.eq.s32.totalorder %v1560, %v77
  %vm1728 = vcmp.eq.s32.totalorder %v1563, %v76
  %vm1729 = vcmp.eq.s32.totalorder %v1563, %v77
  %vm1730 = vcmp.eq.s32.totalorder %v1566, %v76
  %vm1731 = vcmp.eq.s32.totalorder %v1566, %v77
  %vm1732 = vcmp.eq.s32.totalorder %v1569, %v76
  %vm1733 = vcmp.eq.s32.totalorder %v1569, %v77
  %vm1734 = vcmp.eq.s32.totalorder %v1572, %v76
  %vm1735 = vcmp.eq.s32.totalorder %v1572, %v77
  %vm1736 = vcmp.eq.s32.totalorder %v1575, %v76
  %vm1737 = vcmp.eq.s32.totalorder %v1575, %v77
  %vm1738 = vcmp.eq.s32.totalorder %v1578, %v76
  %vm1739 = vcmp.eq.s32.totalorder %v1578, %v77
  %vm1740 = vcmp.eq.s32.totalorder %v1581, %v76
  %vm1741 = vcmp.eq.s32.totalorder %v1581, %v77
  %vm1742 = vcmp.eq.s32.totalorder %v1584, %v76
  %vm1743 = vcmp.eq.s32.totalorder %v1584, %v77
  %vm1744 = vcmp.eq.s32.totalorder %v1587, %v76
  %vm1745 = vcmp.eq.s32.totalorder %v1587, %v77
  %vm1746 = vcmp.eq.s32.totalorder %v1590, %v76
  %vm1747 = vcmp.eq.s32.totalorder %v1590, %v77
  %vm1748 = vcmp.eq.s32.totalorder %v1593, %v76
  %vm1749 = vcmp.eq.s32.totalorder %v1593, %v77
  %vm1750 = vcmp.eq.s32.totalorder %v1596, %v76
  %vm1751 = vcmp.eq.s32.totalorder %v1596, %v77
  %vm1752 = vcmp.eq.s32.totalorder %v1599, %v76
  %vm1753 = vcmp.eq.s32.totalorder %v1599, %v77
  %vm1754 = vcmp.eq.s32.totalorder %v1602, %v76
  %vm1755 = vcmp.eq.s32.totalorder %v1602, %v77
  %vm1756 = vcmp.eq.s32.totalorder %v1605, %v76
  %vm1757 = vcmp.eq.s32.totalorder %v1605, %v77
  %vm1758 = vcmp.eq.s32.totalorder %v1608, %v76
  %vm1759 = vcmp.eq.s32.totalorder %v1608, %v77
  %vm1760 = vcmp.eq.s32.totalorder %v1611, %v76
  %vm1761 = vcmp.eq.s32.totalorder %v1611, %v77
  %vm1762 = vcmp.eq.s32.totalorder %v1614, %v76
  %vm1763 = vcmp.eq.s32.totalorder %v1614, %v77
  %vm1764 = vcmp.eq.s32.totalorder %v1617, %v76
  %vm1765 = vcmp.eq.s32.totalorder %v1617, %v77
  %vm1766 = vcmp.eq.s32.totalorder %v1620, %v76
  %vm1767 = vcmp.eq.s32.totalorder %v1620, %v77
  %vm1768 = vcmp.eq.s32.totalorder %v1623, %v76
  %vm1769 = vcmp.eq.s32.totalorder %v1623, %v77
  %vm1770 = vcmp.eq.s32.totalorder %v1626, %v76
  %vm1771 = vcmp.eq.s32.totalorder %v1626, %v77
  %vm1772 = vcmp.eq.s32.totalorder %v1629, %v76
  %vm1773 = vcmp.eq.s32.totalorder %v1629, %v77
  %vm1774 = vcmp.eq.s32.totalorder %v1632, %v76
  %vm1775 = vcmp.eq.s32.totalorder %v1632, %v77
  %vm1776 = vcmp.eq.s32.totalorder %v1635, %v76
  %vm1777 = vcmp.eq.s32.totalorder %v1635, %v77
  %vm1778 = vcmp.eq.s32.totalorder %v1638, %v76
  %vm1779 = vcmp.eq.s32.totalorder %v1638, %v77
  %vm1780 = vcmp.eq.s32.totalorder %v1641, %v76
  %vm1781 = vcmp.eq.s32.totalorder %v1641, %v77
  %vm1782 = vcmp.eq.s32.totalorder %v1644, %v76
  %vm1783 = vcmp.eq.s32.totalorder %v1644, %v77
  %vm1784 = vcmp.eq.s32.totalorder %v1647, %v76
  %vm1785 = vcmp.eq.s32.totalorder %v1647, %v77
  %vm1786 = vcmp.eq.s32.totalorder %v1650, %v76
  %vm1787 = vcmp.eq.s32.totalorder %v1650, %v77
  %vm1788 = vcmp.eq.s32.totalorder %v1653, %v76
  %vm1789 = vcmp.eq.s32.totalorder %v1653, %v77
  %vm1790 = vcmp.eq.s32.totalorder %v1656, %v76
  %vm1791 = vcmp.eq.s32.totalorder %v1656, %v77
  %vm1792 = vcmp.eq.s32.totalorder %v1659, %v76
  %vm1793 = vcmp.eq.s32.totalorder %v1659, %v77
  %vm1794 = vcmp.eq.s32.totalorder %v1662, %v76
  %vm1795 = vcmp.eq.s32.totalorder %v1662, %v77
  %vm1796 = vcmp.eq.s32.totalorder %v1665, %v76
  %vm1797 = vcmp.eq.s32.totalorder %v1665, %v77
  %vm1798 = vcmp.eq.s32.totalorder %v1668, %v76
  %vm1799 = vcmp.eq.s32.totalorder %v1668, %v77
  %vm1800 = vcmp.eq.s32.totalorder %v1671, %v76
  %vm1801 = vcmp.eq.s32.totalorder %v1671, %v77
  %vm1802 = vcmp.eq.s32.totalorder %v1674, %v76
  %vm1803 = vcmp.eq.s32.totalorder %v1674, %v77
  %vm1804 = vcmp.eq.s32.totalorder %v1677, %v76
  %vm1805 = vcmp.eq.s32.totalorder %v1677, %v77
  %vm1806 = vmor %vm1294, %vm1678
  %vm1807 = vmor %vm1295, %vm1679
  %vm1808 = vmor %vm1296, %vm1680
  %vm1809 = vmor %vm1297, %vm1681
  %vm1810 = vmor %vm1298, %vm1682
  %vm1811 = vmor %vm1299, %vm1683
  %vm1812 = vmor %vm1300, %vm1684
  %vm1813 = vmor %vm1301, %vm1685
  %vm1814 = vmor %vm1302, %vm1686
  %vm1815 = vmor %vm1303, %vm1687
  %vm1816 = vmor %vm1304, %vm1688
  %vm1817 = vmor %vm1305, %vm1689
  %vm1818 = vmor %vm1306, %vm1690
  %vm1819 = vmor %vm1307, %vm1691
  %vm1820 = vmor %vm1308, %vm1692
  %vm1821 = vmor %vm1309, %vm1693
  %vm1822 = vmor %vm1310, %vm1694
  %vm1823 = vmor %vm1311, %vm1695
  %vm1824 = vmor %vm1312, %vm1696
  %vm1825 = vmor %vm1313, %vm1697
  %vm1826 = vmor %vm1314, %vm1698
  %vm1827 = vmor %vm1315, %vm1699
  %vm1828 = vmor %vm1316, %vm1700
  %vm1829 = vmor %vm1317, %vm1701
  %vm1830 = vmor %vm1318, %vm1702
  %vm1831 = vmor %vm1319, %vm1703
  %vm1832 = vmor %vm1320, %vm1704
  %vm1833 = vmor %vm1321, %vm1705
  %vm1834 = vmor %vm1322, %vm1706
  %vm1835 = vmor %vm1323, %vm1707
  %vm1836 = vmor %vm1324, %vm1708
  %vm1837 = vmor %vm1325, %vm1709
  %vm1838 = vmor %vm1326, %vm1710
  %vm1839 = vmor %vm1327, %vm1711
  %vm1840 = vmor %vm1328, %vm1712
  %vm1841 = vmor %vm1329, %vm1713
  %vm1842 = vmor %vm1330, %vm1714
  %vm1843 = vmor %vm1331, %vm1715
  %vm1844 = vmor %vm1332, %vm1716
  %vm1845 = vmor %vm1333, %vm1717
  %vm1846 = vmor %vm1334, %vm1718
  %vm1847 = vmor %vm1335, %vm1719
  %vm1848 = vmor %vm1336, %vm1720
  %vm1849 = vmor %vm1337, %vm1721
  %vm1850 = vmor %vm1338, %vm1722
  %vm1851 = vmor %vm1339, %vm1723
  %vm1852 = vmor %vm1340, %vm1724
  %vm1853 = vmor %vm1341, %vm1725
  %vm1854 = vmor %vm1342, %vm1726
  %vm1855 = vmor %vm1343, %vm1727
  %vm1856 = vmor %vm1344, %vm1728
  %vm1857 = vmor %vm1345, %vm1729
  %vm1858 = vmor %vm1346, %vm1730
  %vm1859 = vmor %vm1347, %vm1731
  %vm1860 = vmor %vm1348, %vm1732
  %vm1861 = vmor %vm1349, %vm1733
  %vm1862 = vmor %vm1350, %vm1734
  %vm1863 = vmor %vm1351, %vm1735
  %vm1864 = vmor %vm1352, %vm1736
  %vm1865 = vmor %vm1353, %vm1737
  %vm1866 = vmor %vm1354, %vm1738
  %vm1867 = vmor %vm1355, %vm1739
  %vm1868 = vmor %vm1356, %vm1740
  %vm1869 = vmor %vm1357, %vm1741
  %vm1870 = vmor %vm1358, %vm1742
  %vm1871 = vmor %vm1359, %vm1743
  %vm1872 = vmor %vm1360, %vm1744
  %vm1873 = vmor %vm1361, %vm1745
  %vm1874 = vmor %vm1362, %vm1746
  %vm1875 = vmor %vm1363, %vm1747
  %vm1876 = vmor %vm1364, %vm1748
  %vm1877 = vmor %vm1365, %vm1749
  %vm1878 = vmor %vm1366, %vm1750
  %vm1879 = vmor %vm1367, %vm1751
  %vm1880 = vmor %vm1368, %vm1752
  %vm1881 = vmor %vm1369, %vm1753
  %vm1882 = vmor %vm1370, %vm1754
  %vm1883 = vmor %vm1371, %vm1755
  %vm1884 = vmor %vm1372, %vm1756
  %vm1885 = vmor %vm1373, %vm1757
  %vm1886 = vmor %vm1374, %vm1758
  %vm1887 = vmor %vm1375, %vm1759
  %vm1888 = vmor %vm1376, %vm1760
  %vm1889 = vmor %vm1377, %vm1761
  %vm1890 = vmor %vm1378, %vm1762
  %vm1891 = vmor %vm1379, %vm1763
  %vm1892 = vmor %vm1380, %vm1764
  %vm1893 = vmor %vm1381, %vm1765
  %vm1894 = vmor %vm1382, %vm1766
  %vm1895 = vmor %vm1383, %vm1767
  %vm1896 = vmor %vm1384, %vm1768
  %vm1897 = vmor %vm1385, %vm1769
  %vm1898 = vmor %vm1386, %vm1770
  %vm1899 = vmor %vm1387, %vm1771
  %vm1900 = vmor %vm1388, %vm1772
  %vm1901 = vmor %vm1389, %vm1773
  %vm1902 = vmor %vm1390, %vm1774
  %vm1903 = vmor %vm1391, %vm1775
  %vm1904 = vmor %vm1392, %vm1776
  %vm1905 = vmor %vm1393, %vm1777
  %vm1906 = vmor %vm1394, %vm1778
  %vm1907 = vmor %vm1395, %vm1779
  %vm1908 = vmor %vm1396, %vm1780
  %vm1909 = vmor %vm1397, %vm1781
  %vm1910 = vmor %vm1398, %vm1782
  %vm1911 = vmor %vm1399, %vm1783
  %vm1912 = vmor %vm1400, %vm1784
  %vm1913 = vmor %vm1401, %vm1785
  %vm1914 = vmor %vm1402, %vm1786
  %vm1915 = vmor %vm1403, %vm1787
  %vm1916 = vmor %vm1404, %vm1788
  %vm1917 = vmor %vm1405, %vm1789
  %vm1918 = vmor %vm1406, %vm1790
  %vm1919 = vmor %vm1407, %vm1791
  %vm1920 = vmor %vm1408, %vm1792
  %vm1921 = vmor %vm1409, %vm1793
  %vm1922 = vmor %vm1410, %vm1794
  %vm1923 = vmor %vm1411, %vm1795
  %vm1924 = vmor %vm1412, %vm1796
  %vm1925 = vmor %vm1413, %vm1797
  %vm1926 = vmor %vm1414, %vm1798
  %vm1927 = vmor %vm1415, %vm1799
  %vm1928 = vmor %vm1416, %vm1800
  %vm1929 = vmor %vm1417, %vm1801
  %vm1930 = vmor %vm1418, %vm1802
  %vm1931 = vmor %vm1419, %vm1803
  %vm1932 = vmor %vm1420, %vm1804
  %vm1933 = vmor %vm1421, %vm1805
  %v1934 = vadd.s32 %v11, 148
  %v1935 = vadd.s32 %v12, 148
  %v1936 = vadd.s32 %v13, 148
  %v1937 = vadd.s32 %v14, 148
  %v1938 = vadd.s32 %v15, 148
  %v1939 = vadd.s32 %v16, 148
  %v1940 = vadd.s32 %v17, 148
  %v1941 = vadd.s32 %v18, 148
  %v1942 = vadd.s32 %v19, 148
  %v1943 = vadd.s32 %v20, 148
  %v1944 = vadd.s32 %v21, 148
  %v1945 = vadd.s32 %v22, 148
  %v1946 = vadd.s32 %v23, 148
  %v1947 = vadd.s32 %v24, 148
  %v1948 = vadd.s32 %v25, 148
  %v1949 = vadd.s32 %v26, 148
  %v1950 = vadd.s32 %v27, 148
  %v1951 = vadd.s32 %v28, 148
  %v1952 = vadd.s32 %v29, 148
  %v1953 = vadd.s32 %v30, 148
  %v1954 = vadd.s32 %v31, 148
  %v1955 = vadd.s32 %v32, 148
  %v1956 = vadd.s32 %v33, 148
  %v1957 = vadd.s32 %v34, 148
  %v1958 = vadd.s32 %v35, 148
  %v1959 = vadd.s32 %v36, 148
  %v1960 = vadd.s32 %v37, 148
  %v1961 = vadd.s32 %v38, 148
  %v1962 = vadd.s32 %v39, 148
  %v1963 = vadd.s32 %v40, 148
  %v1964 = vadd.s32 %v41, 148
  %v1965 = vadd.s32 %v42, 148
  %v1966 = vadd.s32 %v43, 148
  %v1967 = vadd.s32 %v44, 148
  %v1968 = vadd.s32 %v45, 148
  %v1969 = vadd.s32 %v46, 148
  %v1970 = vadd.s32 %v47, 148
  %v1971 = vadd.s32 %v48, 148
  %v1972 = vadd.s32 %v49, 148
  %v1973 = vadd.s32 %v50, 148
  %v1974 = vadd.s32 %v51, 148
  %v1975 = vadd.s32 %v52, 148
  %v1976 = vadd.s32 %v53, 148
  %v1977 = vadd.s32 %v54, 148
  %v1978 = vadd.s32 %v55, 148
  %v1979 = vadd.s32 %v56, 148
  %v1980 = vadd.s32 %v57, 148
  %v1981 = vadd.s32 %v58, 148
  %v1982 = vadd.s32 %v59, 148
  %v1983 = vadd.s32 %v60, 148
  %v1984 = vadd.s32 %v61, 148
  %v1985 = vadd.s32 %v62, 148
  %v1986 = vadd.s32 %v63, 148
  %v1987 = vadd.s32 %v64, 148
  %v1988 = vadd.s32 %v65, 148
  %v1989 = vadd.s32 %v66, 148
  %v1990 = vadd.s32 %v67, 148
  %v1991 = vadd.s32 %v68, 148
  %v1992 = vadd.s32 %v69, 148
  %v1993 = vadd.s32 %v70, 148
  %v1994 = vadd.s32 %v71, 148
  %v1995 = vadd.s32 %v72, 148
  %v1996 = vadd.s32 %v73, 148
  %v1997 = vadd.s32 %v74, 148
  %1998 = vset.pattern.permute.xlu0 4
  %1999 = vperm.xlu0 %1998, %v1934
  %v2000 = vpop.permute.xlu0 %1999
  %2001 = vset.pattern.permute.xlu0 4
  %2002 = vperm.xlu0 %2001, %v1935
  %v2003 = vpop.permute.xlu0 %2002
  %2004 = vset.pattern.permute.xlu0 4
  %2005 = vperm.xlu0 %2004, %v1936
  %v2006 = vpop.permute.xlu0 %2005
  %2007 = vset.pattern.permute.xlu0 4
  %2008 = vperm.xlu0 %2007, %v1937
  %v2009 = vpop.permute.xlu0 %2008
  %2010 = vset.pattern.permute.xlu0 4
  %2011 = vperm.xlu0 %2010, %v1938
  %v2012 = vpop.permute.xlu0 %2011
  %2013 = vset.pattern.permute.xlu0 4
  %2014 = vperm.xlu0 %2013, %v1939
  %v2015 = vpop.permute.xlu0 %2014
  %2016 = vset.pattern.permute.xlu0 4
  %2017 = vperm.xlu0 %2016, %v1940
  %v2018 = vpop.permute.xlu0 %2017
  %2019 = vset.pattern.permute.xlu0 4
  %2020 = vperm.xlu0 %2019, %v1941
  %v2021 = vpop.permute.xlu0 %2020
  %2022 = vset.pattern.permute.xlu0 4
  %2023 = vperm.xlu0 %2022, %v1942
  %v2024 = vpop.permute.xlu0 %2023
  %2025 = vset.pattern.permute.xlu0 4
  %2026 = vperm.xlu0 %2025, %v1943
  %v2027 = vpop.permute.xlu0 %2026
  %2028 = vset.pattern.permute.xlu0 4
  %2029 = vperm.xlu0 %2028, %v1944
  %v2030 = vpop.permute.xlu0 %2029
  %2031 = vset.pattern.permute.xlu0 4
  %2032 = vperm.xlu0 %2031, %v1945
  %v2033 = vpop.permute.xlu0 %2032
  %2034 = vset.pattern.permute.xlu0 4
  %2035 = vperm.xlu0 %2034, %v1946
  %v2036 = vpop.permute.xlu0 %2035
  %2037 = vset.pattern.permute.xlu0 4
  %2038 = vperm.xlu0 %2037, %v1947
  %v2039 = vpop.permute.xlu0 %2038
  %2040 = vset.pattern.permute.xlu0 4
  %2041 = vperm.xlu0 %2040, %v1948
  %v2042 = vpop.permute.xlu0 %2041
  %2043 = vset.pattern.permute.xlu0 4
  %2044 = vperm.xlu0 %2043, %v1949
  %v2045 = vpop.permute.xlu0 %2044
  %2046 = vset.pattern.permute.xlu0 4
  %2047 = vperm.xlu0 %2046, %v1950
  %v2048 = vpop.permute.xlu0 %2047
  %2049 = vset.pattern.permute.xlu0 4
  %2050 = vperm.xlu0 %2049, %v1951
  %v2051 = vpop.permute.xlu0 %2050
  %2052 = vset.pattern.permute.xlu0 4
  %2053 = vperm.xlu0 %2052, %v1952
  %v2054 = vpop.permute.xlu0 %2053
  %2055 = vset.pattern.permute.xlu0 4
  %2056 = vperm.xlu0 %2055, %v1953
  %v2057 = vpop.permute.xlu0 %2056
  %2058 = vset.pattern.permute.xlu0 4
  %2059 = vperm.xlu0 %2058, %v1954
  %v2060 = vpop.permute.xlu0 %2059
  %2061 = vset.pattern.permute.xlu0 4
  %2062 = vperm.xlu0 %2061, %v1955
  %v2063 = vpop.permute.xlu0 %2062
  %2064 = vset.pattern.permute.xlu0 4
  %2065 = vperm.xlu0 %2064, %v1956
  %v2066 = vpop.permute.xlu0 %2065
  %2067 = vset.pattern.permute.xlu0 4
  %2068 = vperm.xlu0 %2067, %v1957
  %v2069 = vpop.permute.xlu0 %2068
  %2070 = vset.pattern.permute.xlu0 4
  %2071 = vperm.xlu0 %2070, %v1958
  %v2072 = vpop.permute.xlu0 %2071
  %2073 = vset.pattern.permute.xlu0 4
  %2074 = vperm.xlu0 %2073, %v1959
  %v2075 = vpop.permute.xlu0 %2074
  %2076 = vset.pattern.permute.xlu0 4
  %2077 = vperm.xlu0 %2076, %v1960
  %v2078 = vpop.permute.xlu0 %2077
  %2079 = vset.pattern.permute.xlu0 4
  %2080 = vperm.xlu0 %2079, %v1961
  %v2081 = vpop.permute.xlu0 %2080
  %2082 = vset.pattern.permute.xlu0 4
  %2083 = vperm.xlu0 %2082, %v1962
  %v2084 = vpop.permute.xlu0 %2083
  %2085 = vset.pattern.permute.xlu0 4
  %2086 = vperm.xlu0 %2085, %v1963
  %v2087 = vpop.permute.xlu0 %2086
  %2088 = vset.pattern.permute.xlu0 4
  %2089 = vperm.xlu0 %2088, %v1964
  %v2090 = vpop.permute.xlu0 %2089
  %2091 = vset.pattern.permute.xlu0 4
  %2092 = vperm.xlu0 %2091, %v1965
  %v2093 = vpop.permute.xlu0 %2092
  %2094 = vset.pattern.permute.xlu0 4
  %2095 = vperm.xlu0 %2094, %v1966
  %v2096 = vpop.permute.xlu0 %2095
  %2097 = vset.pattern.permute.xlu0 4
  %2098 = vperm.xlu0 %2097, %v1967
  %v2099 = vpop.permute.xlu0 %2098
  %2100 = vset.pattern.permute.xlu0 4
  %2101 = vperm.xlu0 %2100, %v1968
  %v2102 = vpop.permute.xlu0 %2101
  %2103 = vset.pattern.permute.xlu0 4
  %2104 = vperm.xlu0 %2103, %v1969
  %v2105 = vpop.permute.xlu0 %2104
  %2106 = vset.pattern.permute.xlu0 4
  %2107 = vperm.xlu0 %2106, %v1970
  %v2108 = vpop.permute.xlu0 %2107
  %2109 = vset.pattern.permute.xlu0 4
  %2110 = vperm.xlu0 %2109, %v1971
  %v2111 = vpop.permute.xlu0 %2110
  %2112 = vset.pattern.permute.xlu0 4
  %2113 = vperm.xlu0 %2112, %v1972
  %v2114 = vpop.permute.xlu0 %2113
  %2115 = vset.pattern.permute.xlu0 4
  %2116 = vperm.xlu0 %2115, %v1973
  %v2117 = vpop.permute.xlu0 %2116
  %2118 = vset.pattern.permute.xlu0 4
  %2119 = vperm.xlu0 %2118, %v1974
  %v2120 = vpop.permute.xlu0 %2119
  %2121 = vset.pattern.permute.xlu0 4
  %2122 = vperm.xlu0 %2121, %v1975
  %v2123 = vpop.permute.xlu0 %2122
  %2124 = vset.pattern.permute.xlu0 4
  %2125 = vperm.xlu0 %2124, %v1976
  %v2126 = vpop.permute.xlu0 %2125
  %2127 = vset.pattern.permute.xlu0 4
  %2128 = vperm.xlu0 %2127, %v1977
  %v2129 = vpop.permute.xlu0 %2128
  %2130 = vset.pattern.permute.xlu0 4
  %2131 = vperm.xlu0 %2130, %v1978
  %v2132 = vpop.permute.xlu0 %2131
  %2133 = vset.pattern.permute.xlu0 4
  %2134 = vperm.xlu0 %2133, %v1979
  %v2135 = vpop.permute.xlu0 %2134
  %2136 = vset.pattern.permute.xlu0 4
  %2137 = vperm.xlu0 %2136, %v1980
  %v2138 = vpop.permute.xlu0 %2137
  %2139 = vset.pattern.permute.xlu0 4
  %2140 = vperm.xlu0 %2139, %v1981
  %v2141 = vpop.permute.xlu0 %2140
  %2142 = vset.pattern.permute.xlu0 4
  %2143 = vperm.xlu0 %2142, %v1982
  %v2144 = vpop.permute.xlu0 %2143
  %2145 = vset.pattern.permute.xlu0 4
  %2146 = vperm.xlu0 %2145, %v1983
  %v2147 = vpop.permute.xlu0 %2146
  %2148 = vset.pattern.permute.xlu0 4
  %2149 = vperm.xlu0 %2148, %v1984
  %v2150 = vpop.permute.xlu0 %2149
  %2151 = vset.pattern.permute.xlu0 4
  %2152 = vperm.xlu0 %2151, %v1985
  %v2153 = vpop.permute.xlu0 %2152
  %2154 = vset.pattern.permute.xlu0 4
  %2155 = vperm.xlu0 %2154, %v1986
  %v2156 = vpop.permute.xlu0 %2155
  %2157 = vset.pattern.permute.xlu0 4
  %2158 = vperm.xlu0 %2157, %v1987
  %v2159 = vpop.permute.xlu0 %2158
  %2160 = vset.pattern.permute.xlu0 4
  %2161 = vperm.xlu0 %2160, %v1988
  %v2162 = vpop.permute.xlu0 %2161
  %2163 = vset.pattern.permute.xlu0 4
  %2164 = vperm.xlu0 %2163, %v1989
  %v2165 = vpop.permute.xlu0 %2164
  %2166 = vset.pattern.permute.xlu0 4
  %2167 = vperm.xlu0 %2166, %v1990
  %v2168 = vpop.permute.xlu0 %2167
  %2169 = vset.pattern.permute.xlu0 4
  %2170 = vperm.xlu0 %2169, %v1991
  %v2171 = vpop.permute.xlu0 %2170
  %2172 = vset.pattern.permute.xlu0 4
  %2173 = vperm.xlu0 %2172, %v1992
  %v2174 = vpop.permute.xlu0 %2173
  %2175 = vset.pattern.permute.xlu0 4
  %2176 = vperm.xlu0 %2175, %v1993
  %v2177 = vpop.permute.xlu0 %2176
  %2178 = vset.pattern.permute.xlu0 4
  %2179 = vperm.xlu0 %2178, %v1994
  %v2180 = vpop.permute.xlu0 %2179
  %2181 = vset.pattern.permute.xlu0 4
  %2182 = vperm.xlu0 %2181, %v1995
  %v2183 = vpop.permute.xlu0 %2182
  %2184 = vset.pattern.permute.xlu0 4
  %2185 = vperm.xlu0 %2184, %v1996
  %v2186 = vpop.permute.xlu0 %2185
  %2187 = vset.pattern.permute.xlu0 4
  %2188 = vperm.xlu0 %2187, %v1997
  %v2189 = vpop.permute.xlu0 %2188
  %vm2190 = vcmp.eq.s32.totalorder %v2000, %v76
  %vm2191 = vcmp.eq.s32.totalorder %v2000, %v77
  %vm2192 = vcmp.eq.s32.totalorder %v2003, %v76
  %vm2193 = vcmp.eq.s32.totalorder %v2003, %v77
  %vm2194 = vcmp.eq.s32.totalorder %v2006, %v76
  %vm2195 = vcmp.eq.s32.totalorder %v2006, %v77
  %vm2196 = vcmp.eq.s32.totalorder %v2009, %v76
  %vm2197 = vcmp.eq.s32.totalorder %v2009, %v77
  %vm2198 = vcmp.eq.s32.totalorder %v2012, %v76
  %vm2199 = vcmp.eq.s32.totalorder %v2012, %v77
  %vm2200 = vcmp.eq.s32.totalorder %v2015, %v76
  %vm2201 = vcmp.eq.s32.totalorder %v2015, %v77
  %vm2202 = vcmp.eq.s32.totalorder %v2018, %v76
  %vm2203 = vcmp.eq.s32.totalorder %v2018, %v77
  %vm2204 = vcmp.eq.s32.totalorder %v2021, %v76
  %vm2205 = vcmp.eq.s32.totalorder %v2021, %v77
  %vm2206 = vcmp.eq.s32.totalorder %v2024, %v76
  %vm2207 = vcmp.eq.s32.totalorder %v2024, %v77
  %vm2208 = vcmp.eq.s32.totalorder %v2027, %v76
  %vm2209 = vcmp.eq.s32.totalorder %v2027, %v77
  %vm2210 = vcmp.eq.s32.totalorder %v2030, %v76
  %vm2211 = vcmp.eq.s32.totalorder %v2030, %v77
  %vm2212 = vcmp.eq.s32.totalorder %v2033, %v76
  %vm2213 = vcmp.eq.s32.totalorder %v2033, %v77
  %vm2214 = vcmp.eq.s32.totalorder %v2036, %v76
  %vm2215 = vcmp.eq.s32.totalorder %v2036, %v77
  %vm2216 = vcmp.eq.s32.totalorder %v2039, %v76
  %vm2217 = vcmp.eq.s32.totalorder %v2039, %v77
  %vm2218 = vcmp.eq.s32.totalorder %v2042, %v76
  %vm2219 = vcmp.eq.s32.totalorder %v2042, %v77
  %vm2220 = vcmp.eq.s32.totalorder %v2045, %v76
  %vm2221 = vcmp.eq.s32.totalorder %v2045, %v77
  %vm2222 = vcmp.eq.s32.totalorder %v2048, %v76
  %vm2223 = vcmp.eq.s32.totalorder %v2048, %v77
  %vm2224 = vcmp.eq.s32.totalorder %v2051, %v76
  %vm2225 = vcmp.eq.s32.totalorder %v2051, %v77
  %vm2226 = vcmp.eq.s32.totalorder %v2054, %v76
  %vm2227 = vcmp.eq.s32.totalorder %v2054, %v77
  %vm2228 = vcmp.eq.s32.totalorder %v2057, %v76
  %vm2229 = vcmp.eq.s32.totalorder %v2057, %v77
  %vm2230 = vcmp.eq.s32.totalorder %v2060, %v76
  %vm2231 = vcmp.eq.s32.totalorder %v2060, %v77
  %vm2232 = vcmp.eq.s32.totalorder %v2063, %v76
  %vm2233 = vcmp.eq.s32.totalorder %v2063, %v77
  %vm2234 = vcmp.eq.s32.totalorder %v2066, %v76
  %vm2235 = vcmp.eq.s32.totalorder %v2066, %v77
  %vm2236 = vcmp.eq.s32.totalorder %v2069, %v76
  %vm2237 = vcmp.eq.s32.totalorder %v2069, %v77
  %vm2238 = vcmp.eq.s32.totalorder %v2072, %v76
  %vm2239 = vcmp.eq.s32.totalorder %v2072, %v77
  %vm2240 = vcmp.eq.s32.totalorder %v2075, %v76
  %vm2241 = vcmp.eq.s32.totalorder %v2075, %v77
  %vm2242 = vcmp.eq.s32.totalorder %v2078, %v76
  %vm2243 = vcmp.eq.s32.totalorder %v2078, %v77
  %vm2244 = vcmp.eq.s32.totalorder %v2081, %v76
  %vm2245 = vcmp.eq.s32.totalorder %v2081, %v77
  %vm2246 = vcmp.eq.s32.totalorder %v2084, %v76
  %vm2247 = vcmp.eq.s32.totalorder %v2084, %v77
  %vm2248 = vcmp.eq.s32.totalorder %v2087, %v76
  %vm2249 = vcmp.eq.s32.totalorder %v2087, %v77
  %vm2250 = vcmp.eq.s32.totalorder %v2090, %v76
  %vm2251 = vcmp.eq.s32.totalorder %v2090, %v77
  %vm2252 = vcmp.eq.s32.totalorder %v2093, %v76
  %vm2253 = vcmp.eq.s32.totalorder %v2093, %v77
  %vm2254 = vcmp.eq.s32.totalorder %v2096, %v76
  %vm2255 = vcmp.eq.s32.totalorder %v2096, %v77
  %vm2256 = vcmp.eq.s32.totalorder %v2099, %v76
  %vm2257 = vcmp.eq.s32.totalorder %v2099, %v77
  %vm2258 = vcmp.eq.s32.totalorder %v2102, %v76
  %vm2259 = vcmp.eq.s32.totalorder %v2102, %v77
  %vm2260 = vcmp.eq.s32.totalorder %v2105, %v76
  %vm2261 = vcmp.eq.s32.totalorder %v2105, %v77
  %vm2262 = vcmp.eq.s32.totalorder %v2108, %v76
  %vm2263 = vcmp.eq.s32.totalorder %v2108, %v77
  %vm2264 = vcmp.eq.s32.totalorder %v2111, %v76
  %vm2265 = vcmp.eq.s32.totalorder %v2111, %v77
  %vm2266 = vcmp.eq.s32.totalorder %v2114, %v76
  %vm2267 = vcmp.eq.s32.totalorder %v2114, %v77
  %vm2268 = vcmp.eq.s32.totalorder %v2117, %v76
  %vm2269 = vcmp.eq.s32.totalorder %v2117, %v77
  %vm2270 = vcmp.eq.s32.totalorder %v2120, %v76
  %vm2271 = vcmp.eq.s32.totalorder %v2120, %v77
  %vm2272 = vcmp.eq.s32.totalorder %v2123, %v76
  %vm2273 = vcmp.eq.s32.totalorder %v2123, %v77
  %vm2274 = vcmp.eq.s32.totalorder %v2126, %v76
  %vm2275 = vcmp.eq.s32.totalorder %v2126, %v77
  %vm2276 = vcmp.eq.s32.totalorder %v2129, %v76
  %vm2277 = vcmp.eq.s32.totalorder %v2129, %v77
  %vm2278 = vcmp.eq.s32.totalorder %v2132, %v76
  %vm2279 = vcmp.eq.s32.totalorder %v2132, %v77
  %vm2280 = vcmp.eq.s32.totalorder %v2135, %v76
  %vm2281 = vcmp.eq.s32.totalorder %v2135, %v77
  %vm2282 = vcmp.eq.s32.totalorder %v2138, %v76
  %vm2283 = vcmp.eq.s32.totalorder %v2138, %v77
  %vm2284 = vcmp.eq.s32.totalorder %v2141, %v76
  %vm2285 = vcmp.eq.s32.totalorder %v2141, %v77
  %vm2286 = vcmp.eq.s32.totalorder %v2144, %v76
  %vm2287 = vcmp.eq.s32.totalorder %v2144, %v77
  %vm2288 = vcmp.eq.s32.totalorder %v2147, %v76
  %vm2289 = vcmp.eq.s32.totalorder %v2147, %v77
  %vm2290 = vcmp.eq.s32.totalorder %v2150, %v76
  %vm2291 = vcmp.eq.s32.totalorder %v2150, %v77
  %vm2292 = vcmp.eq.s32.totalorder %v2153, %v76
  %vm2293 = vcmp.eq.s32.totalorder %v2153, %v77
  %vm2294 = vcmp.eq.s32.totalorder %v2156, %v76
  %vm2295 = vcmp.eq.s32.totalorder %v2156, %v77
  %vm2296 = vcmp.eq.s32.totalorder %v2159, %v76
  %vm2297 = vcmp.eq.s32.totalorder %v2159, %v77
  %vm2298 = vcmp.eq.s32.totalorder %v2162, %v76
  %vm2299 = vcmp.eq.s32.totalorder %v2162, %v77
  %vm2300 = vcmp.eq.s32.totalorder %v2165, %v76
  %vm2301 = vcmp.eq.s32.totalorder %v2165, %v77
  %vm2302 = vcmp.eq.s32.totalorder %v2168, %v76
  %vm2303 = vcmp.eq.s32.totalorder %v2168, %v77
  %vm2304 = vcmp.eq.s32.totalorder %v2171, %v76
  %vm2305 = vcmp.eq.s32.totalorder %v2171, %v77
  %vm2306 = vcmp.eq.s32.totalorder %v2174, %v76
  %vm2307 = vcmp.eq.s32.totalorder %v2174, %v77
  %vm2308 = vcmp.eq.s32.totalorder %v2177, %v76
  %vm2309 = vcmp.eq.s32.totalorder %v2177, %v77
  %vm2310 = vcmp.eq.s32.totalorder %v2180, %v76
  %vm2311 = vcmp.eq.s32.totalorder %v2180, %v77
  %vm2312 = vcmp.eq.s32.totalorder %v2183, %v76
  %vm2313 = vcmp.eq.s32.totalorder %v2183, %v77
  %vm2314 = vcmp.eq.s32.totalorder %v2186, %v76
  %vm2315 = vcmp.eq.s32.totalorder %v2186, %v77
  %vm2316 = vcmp.eq.s32.totalorder %v2189, %v76
  %vm2317 = vcmp.eq.s32.totalorder %v2189, %v77
  %vm2318 = vmor %vm1806, %vm2190
  %vm2319 = vmor %vm1807, %vm2191
  %vm2320 = vmor %vm1808, %vm2192
  %vm2321 = vmor %vm1809, %vm2193
  %vm2322 = vmor %vm1810, %vm2194
  %vm2323 = vmor %vm1811, %vm2195
  %vm2324 = vmor %vm1812, %vm2196
  %vm2325 = vmor %vm1813, %vm2197
  %vm2326 = vmor %vm1814, %vm2198
  %vm2327 = vmor %vm1815, %vm2199
  %vm2328 = vmor %vm1816, %vm2200
  %vm2329 = vmor %vm1817, %vm2201
  %vm2330 = vmor %vm1818, %vm2202
  %vm2331 = vmor %vm1819, %vm2203
  %vm2332 = vmor %vm1820, %vm2204
  %vm2333 = vmor %vm1821, %vm2205
  %vm2334 = vmor %vm1822, %vm2206
  %vm2335 = vmor %vm1823, %vm2207
  %vm2336 = vmor %vm1824, %vm2208
  %vm2337 = vmor %vm1825, %vm2209
  %vm2338 = vmor %vm1826, %vm2210
  %vm2339 = vmor %vm1827, %vm2211
  %vm2340 = vmor %vm1828, %vm2212
  %vm2341 = vmor %vm1829, %vm2213
  %vm2342 = vmor %vm1830, %vm2214
  %vm2343 = vmor %vm1831, %vm2215
  %vm2344 = vmor %vm1832, %vm2216
  %vm2345 = vmor %vm1833, %vm2217
  %vm2346 = vmor %vm1834, %vm2218
  %vm2347 = vmor %vm1835, %vm2219
  %vm2348 = vmor %vm1836, %vm2220
  %vm2349 = vmor %vm1837, %vm2221
  %vm2350 = vmor %vm1838, %vm2222
  %vm2351 = vmor %vm1839, %vm2223
  %vm2352 = vmor %vm1840, %vm2224
  %vm2353 = vmor %vm1841, %vm2225
  %vm2354 = vmor %vm1842, %vm2226
  %vm2355 = vmor %vm1843, %vm2227
  %vm2356 = vmor %vm1844, %vm2228
  %vm2357 = vmor %vm1845, %vm2229
  %vm2358 = vmor %vm1846, %vm2230
  %vm2359 = vmor %vm1847, %vm2231
  %vm2360 = vmor %vm1848, %vm2232
  %vm2361 = vmor %vm1849, %vm2233
  %vm2362 = vmor %vm1850, %vm2234
  %vm2363 = vmor %vm1851, %vm2235
  %vm2364 = vmor %vm1852, %vm2236
  %vm2365 = vmor %vm1853, %vm2237
  %vm2366 = vmor %vm1854, %vm2238
  %vm2367 = vmor %vm1855, %vm2239
  %vm2368 = vmor %vm1856, %vm2240
  %vm2369 = vmor %vm1857, %vm2241
  %vm2370 = vmor %vm1858, %vm2242
  %vm2371 = vmor %vm1859, %vm2243
  %vm2372 = vmor %vm1860, %vm2244
  %vm2373 = vmor %vm1861, %vm2245
  %vm2374 = vmor %vm1862, %vm2246
  %vm2375 = vmor %vm1863, %vm2247
  %vm2376 = vmor %vm1864, %vm2248
  %vm2377 = vmor %vm1865, %vm2249
  %vm2378 = vmor %vm1866, %vm2250
  %vm2379 = vmor %vm1867, %vm2251
  %vm2380 = vmor %vm1868, %vm2252
  %vm2381 = vmor %vm1869, %vm2253
  %vm2382 = vmor %vm1870, %vm2254
  %vm2383 = vmor %vm1871, %vm2255
  %vm2384 = vmor %vm1872, %vm2256
  %vm2385 = vmor %vm1873, %vm2257
  %vm2386 = vmor %vm1874, %vm2258
  %vm2387 = vmor %vm1875, %vm2259
  %vm2388 = vmor %vm1876, %vm2260
  %vm2389 = vmor %vm1877, %vm2261
  %vm2390 = vmor %vm1878, %vm2262
  %vm2391 = vmor %vm1879, %vm2263
  %vm2392 = vmor %vm1880, %vm2264
  %vm2393 = vmor %vm1881, %vm2265
  %vm2394 = vmor %vm1882, %vm2266
  %vm2395 = vmor %vm1883, %vm2267
  %vm2396 = vmor %vm1884, %vm2268
  %vm2397 = vmor %vm1885, %vm2269
  %vm2398 = vmor %vm1886, %vm2270
  %vm2399 = vmor %vm1887, %vm2271
  %vm2400 = vmor %vm1888, %vm2272
  %vm2401 = vmor %vm1889, %vm2273
  %vm2402 = vmor %vm1890, %vm2274
  %vm2403 = vmor %vm1891, %vm2275
  %vm2404 = vmor %vm1892, %vm2276
  %vm2405 = vmor %vm1893, %vm2277
  %vm2406 = vmor %vm1894, %vm2278
  %vm2407 = vmor %vm1895, %vm2279
  %vm2408 = vmor %vm1896, %vm2280
  %vm2409 = vmor %vm1897, %vm2281
  %vm2410 = vmor %vm1898, %vm2282
  %vm2411 = vmor %vm1899, %vm2283
  %vm2412 = vmor %vm1900, %vm2284
  %vm2413 = vmor %vm1901, %vm2285
  %vm2414 = vmor %vm1902, %vm2286
  %vm2415 = vmor %vm1903, %vm2287
  %vm2416 = vmor %vm1904, %vm2288
  %vm2417 = vmor %vm1905, %vm2289
  %vm2418 = vmor %vm1906, %vm2290
  %vm2419 = vmor %vm1907, %vm2291
  %vm2420 = vmor %vm1908, %vm2292
  %vm2421 = vmor %vm1909, %vm2293
  %vm2422 = vmor %vm1910, %vm2294
  %vm2423 = vmor %vm1911, %vm2295
  %vm2424 = vmor %vm1912, %vm2296
  %vm2425 = vmor %vm1913, %vm2297
  %vm2426 = vmor %vm1914, %vm2298
  %vm2427 = vmor %vm1915, %vm2299
  %vm2428 = vmor %vm1916, %vm2300
  %vm2429 = vmor %vm1917, %vm2301
  %vm2430 = vmor %vm1918, %vm2302
  %vm2431 = vmor %vm1919, %vm2303
  %vm2432 = vmor %vm1920, %vm2304
  %vm2433 = vmor %vm1921, %vm2305
  %vm2434 = vmor %vm1922, %vm2306
  %vm2435 = vmor %vm1923, %vm2307
  %vm2436 = vmor %vm1924, %vm2308
  %vm2437 = vmor %vm1925, %vm2309
  %vm2438 = vmor %vm1926, %vm2310
  %vm2439 = vmor %vm1927, %vm2311
  %vm2440 = vmor %vm1928, %vm2312
  %vm2441 = vmor %vm1929, %vm2313
  %vm2442 = vmor %vm1930, %vm2314
  %vm2443 = vmor %vm1931, %vm2315
  %vm2444 = vmor %vm1932, %vm2316
  %vm2445 = vmor %vm1933, %vm2317
  %v2446 = vadd.s32 %v11, 158
  %v2447 = vadd.s32 %v12, 158
  %v2448 = vadd.s32 %v13, 158
  %v2449 = vadd.s32 %v14, 158
  %v2450 = vadd.s32 %v15, 158
  %v2451 = vadd.s32 %v16, 158
  %v2452 = vadd.s32 %v17, 158
  %v2453 = vadd.s32 %v18, 158
  %v2454 = vadd.s32 %v19, 158
  %v2455 = vadd.s32 %v20, 158
  %v2456 = vadd.s32 %v21, 158
  %v2457 = vadd.s32 %v22, 158
  %v2458 = vadd.s32 %v23, 158
  %v2459 = vadd.s32 %v24, 158
  %v2460 = vadd.s32 %v25, 158
  %v2461 = vadd.s32 %v26, 158
  %v2462 = vadd.s32 %v27, 158
  %v2463 = vadd.s32 %v28, 158
  %v2464 = vadd.s32 %v29, 158
  %v2465 = vadd.s32 %v30, 158
  %v2466 = vadd.s32 %v31, 158
  %v2467 = vadd.s32 %v32, 158
  %v2468 = vadd.s32 %v33, 158
  %v2469 = vadd.s32 %v34, 158
  %v2470 = vadd.s32 %v35, 158
  %v2471 = vadd.s32 %v36, 158
  %v2472 = vadd.s32 %v37, 158
  %v2473 = vadd.s32 %v38, 158
  %v2474 = vadd.s32 %v39, 158
  %v2475 = vadd.s32 %v40, 158
  %v2476 = vadd.s32 %v41, 158
  %v2477 = vadd.s32 %v42, 158
  %v2478 = vadd.s32 %v43, 158
  %v2479 = vadd.s32 %v44, 158
  %v2480 = vadd.s32 %v45, 158
  %v2481 = vadd.s32 %v46, 158
  %v2482 = vadd.s32 %v47, 158
  %v2483 = vadd.s32 %v48, 158
  %v2484 = vadd.s32 %v49, 158
  %v2485 = vadd.s32 %v50, 158
  %v2486 = vadd.s32 %v51, 158
  %v2487 = vadd.s32 %v52, 158
  %v2488 = vadd.s32 %v53, 158
  %v2489 = vadd.s32 %v54, 158
  %v2490 = vadd.s32 %v55, 158
  %v2491 = vadd.s32 %v56, 158
  %v2492 = vadd.s32 %v57, 158
  %v2493 = vadd.s32 %v58, 158
  %v2494 = vadd.s32 %v59, 158
  %v2495 = vadd.s32 %v60, 158
  %v2496 = vadd.s32 %v61, 158
  %v2497 = vadd.s32 %v62, 158
  %v2498 = vadd.s32 %v63, 158
  %v2499 = vadd.s32 %v64, 158
  %v2500 = vadd.s32 %v65, 158
  %v2501 = vadd.s32 %v66, 158
  %v2502 = vadd.s32 %v67, 158
  %v2503 = vadd.s32 %v68, 158
  %v2504 = vadd.s32 %v69, 158
  %v2505 = vadd.s32 %v70, 158
  %v2506 = vadd.s32 %v71, 158
  %v2507 = vadd.s32 %v72, 158
  %v2508 = vadd.s32 %v73, 158
  %v2509 = vadd.s32 %v74, 158
  %2510 = vset.pattern.permute.xlu0 5
  %2511 = vperm.xlu0 %2510, %v2446
  %v2512 = vpop.permute.xlu0 %2511
  %2513 = vset.pattern.permute.xlu0 5
  %2514 = vperm.xlu0 %2513, %v2447
  %v2515 = vpop.permute.xlu0 %2514
  %2516 = vset.pattern.permute.xlu0 5
  %2517 = vperm.xlu0 %2516, %v2448
  %v2518 = vpop.permute.xlu0 %2517
  %2519 = vset.pattern.permute.xlu0 5
  %2520 = vperm.xlu0 %2519, %v2449
  %v2521 = vpop.permute.xlu0 %2520
  %2522 = vset.pattern.permute.xlu0 5
  %2523 = vperm.xlu0 %2522, %v2450
  %v2524 = vpop.permute.xlu0 %2523
  %2525 = vset.pattern.permute.xlu0 5
  %2526 = vperm.xlu0 %2525, %v2451
  %v2527 = vpop.permute.xlu0 %2526
  %2528 = vset.pattern.permute.xlu0 5
  %2529 = vperm.xlu0 %2528, %v2452
  %v2530 = vpop.permute.xlu0 %2529
  %2531 = vset.pattern.permute.xlu0 5
  %2532 = vperm.xlu0 %2531, %v2453
  %v2533 = vpop.permute.xlu0 %2532
  %2534 = vset.pattern.permute.xlu0 5
  %2535 = vperm.xlu0 %2534, %v2454
  %v2536 = vpop.permute.xlu0 %2535
  %2537 = vset.pattern.permute.xlu0 5
  %2538 = vperm.xlu0 %2537, %v2455
  %v2539 = vpop.permute.xlu0 %2538
  %2540 = vset.pattern.permute.xlu0 5
  %2541 = vperm.xlu0 %2540, %v2456
  %v2542 = vpop.permute.xlu0 %2541
  %2543 = vset.pattern.permute.xlu0 5
  %2544 = vperm.xlu0 %2543, %v2457
  %v2545 = vpop.permute.xlu0 %2544
  %2546 = vset.pattern.permute.xlu0 5
  %2547 = vperm.xlu0 %2546, %v2458
  %v2548 = vpop.permute.xlu0 %2547
  %2549 = vset.pattern.permute.xlu0 5
  %2550 = vperm.xlu0 %2549, %v2459
  %v2551 = vpop.permute.xlu0 %2550
  %2552 = vset.pattern.permute.xlu0 5
  %2553 = vperm.xlu0 %2552, %v2460
  %v2554 = vpop.permute.xlu0 %2553
  %2555 = vset.pattern.permute.xlu0 5
  %2556 = vperm.xlu0 %2555, %v2461
  %v2557 = vpop.permute.xlu0 %2556
  %2558 = vset.pattern.permute.xlu0 5
  %2559 = vperm.xlu0 %2558, %v2462
  %v2560 = vpop.permute.xlu0 %2559
  %2561 = vset.pattern.permute.xlu0 5
  %2562 = vperm.xlu0 %2561, %v2463
  %v2563 = vpop.permute.xlu0 %2562
  %2564 = vset.pattern.permute.xlu0 5
  %2565 = vperm.xlu0 %2564, %v2464
  %v2566 = vpop.permute.xlu0 %2565
  %2567 = vset.pattern.permute.xlu0 5
  %2568 = vperm.xlu0 %2567, %v2465
  %v2569 = vpop.permute.xlu0 %2568
  %2570 = vset.pattern.permute.xlu0 5
  %2571 = vperm.xlu0 %2570, %v2466
  %v2572 = vpop.permute.xlu0 %2571
  %2573 = vset.pattern.permute.xlu0 5
  %2574 = vperm.xlu0 %2573, %v2467
  %v2575 = vpop.permute.xlu0 %2574
  %2576 = vset.pattern.permute.xlu0 5
  %2577 = vperm.xlu0 %2576, %v2468
  %v2578 = vpop.permute.xlu0 %2577
  %2579 = vset.pattern.permute.xlu0 5
  %2580 = vperm.xlu0 %2579, %v2469
  %v2581 = vpop.permute.xlu0 %2580
  %2582 = vset.pattern.permute.xlu0 5
  %2583 = vperm.xlu0 %2582, %v2470
  %v2584 = vpop.permute.xlu0 %2583
  %2585 = vset.pattern.permute.xlu0 5
  %2586 = vperm.xlu0 %2585, %v2471
  %v2587 = vpop.permute.xlu0 %2586
  %2588 = vset.pattern.permute.xlu0 5
  %2589 = vperm.xlu0 %2588, %v2472
  %v2590 = vpop.permute.xlu0 %2589
  %2591 = vset.pattern.permute.xlu0 5
  %2592 = vperm.xlu0 %2591, %v2473
  %v2593 = vpop.permute.xlu0 %2592
  %2594 = vset.pattern.permute.xlu0 5
  %2595 = vperm.xlu0 %2594, %v2474
  %v2596 = vpop.permute.xlu0 %2595
  %2597 = vset.pattern.permute.xlu0 5
  %2598 = vperm.xlu0 %2597, %v2475
  %v2599 = vpop.permute.xlu0 %2598
  %2600 = vset.pattern.permute.xlu0 5
  %2601 = vperm.xlu0 %2600, %v2476
  %v2602 = vpop.permute.xlu0 %2601
  %2603 = vset.pattern.permute.xlu0 5
  %2604 = vperm.xlu0 %2603, %v2477
  %v2605 = vpop.permute.xlu0 %2604
  %2606 = vset.pattern.permute.xlu0 5
  %2607 = vperm.xlu0 %2606, %v2478
  %v2608 = vpop.permute.xlu0 %2607
  %2609 = vset.pattern.permute.xlu0 5
  %2610 = vperm.xlu0 %2609, %v2479
  %v2611 = vpop.permute.xlu0 %2610
  %2612 = vset.pattern.permute.xlu0 5
  %2613 = vperm.xlu0 %2612, %v2480
  %v2614 = vpop.permute.xlu0 %2613
  %2615 = vset.pattern.permute.xlu0 5
  %2616 = vperm.xlu0 %2615, %v2481
  %v2617 = vpop.permute.xlu0 %2616
  %2618 = vset.pattern.permute.xlu0 5
  %2619 = vperm.xlu0 %2618, %v2482
  %v2620 = vpop.permute.xlu0 %2619
  %2621 = vset.pattern.permute.xlu0 5
  %2622 = vperm.xlu0 %2621, %v2483
  %v2623 = vpop.permute.xlu0 %2622
  %2624 = vset.pattern.permute.xlu0 5
  %2625 = vperm.xlu0 %2624, %v2484
  %v2626 = vpop.permute.xlu0 %2625
  %2627 = vset.pattern.permute.xlu0 5
  %2628 = vperm.xlu0 %2627, %v2485
  %v2629 = vpop.permute.xlu0 %2628
  %2630 = vset.pattern.permute.xlu0 5
  %2631 = vperm.xlu0 %2630, %v2486
  %v2632 = vpop.permute.xlu0 %2631
  %2633 = vset.pattern.permute.xlu0 5
  %2634 = vperm.xlu0 %2633, %v2487
  %v2635 = vpop.permute.xlu0 %2634
  %2636 = vset.pattern.permute.xlu0 5
  %2637 = vperm.xlu0 %2636, %v2488
  %v2638 = vpop.permute.xlu0 %2637
  %2639 = vset.pattern.permute.xlu0 5
  %2640 = vperm.xlu0 %2639, %v2489
  %v2641 = vpop.permute.xlu0 %2640
  %2642 = vset.pattern.permute.xlu0 5
  %2643 = vperm.xlu0 %2642, %v2490
  %v2644 = vpop.permute.xlu0 %2643
  %2645 = vset.pattern.permute.xlu0 5
  %2646 = vperm.xlu0 %2645, %v2491
  %v2647 = vpop.permute.xlu0 %2646
  %2648 = vset.pattern.permute.xlu0 5
  %2649 = vperm.xlu0 %2648, %v2492
  %v2650 = vpop.permute.xlu0 %2649
  %2651 = vset.pattern.permute.xlu0 5
  %2652 = vperm.xlu0 %2651, %v2493
  %v2653 = vpop.permute.xlu0 %2652
  %2654 = vset.pattern.permute.xlu0 5
  %2655 = vperm.xlu0 %2654, %v2494
  %v2656 = vpop.permute.xlu0 %2655
  %2657 = vset.pattern.permute.xlu0 5
  %2658 = vperm.xlu0 %2657, %v2495
  %v2659 = vpop.permute.xlu0 %2658
  %2660 = vset.pattern.permute.xlu0 5
  %2661 = vperm.xlu0 %2660, %v2496
  %v2662 = vpop.permute.xlu0 %2661
  %2663 = vset.pattern.permute.xlu0 5
  %2664 = vperm.xlu0 %2663, %v2497
  %v2665 = vpop.permute.xlu0 %2664
  %2666 = vset.pattern.permute.xlu0 5
  %2667 = vperm.xlu0 %2666, %v2498
  %v2668 = vpop.permute.xlu0 %2667
  %2669 = vset.pattern.permute.xlu0 5
  %2670 = vperm.xlu0 %2669, %v2499
  %v2671 = vpop.permute.xlu0 %2670
  %2672 = vset.pattern.permute.xlu0 5
  %2673 = vperm.xlu0 %2672, %v2500
  %v2674 = vpop.permute.xlu0 %2673
  %2675 = vset.pattern.permute.xlu0 5
  %2676 = vperm.xlu0 %2675, %v2501
  %v2677 = vpop.permute.xlu0 %2676
  %2678 = vset.pattern.permute.xlu0 5
  %2679 = vperm.xlu0 %2678, %v2502
  %v2680 = vpop.permute.xlu0 %2679
  %2681 = vset.pattern.permute.xlu0 5
  %2682 = vperm.xlu0 %2681, %v2503
  %v2683 = vpop.permute.xlu0 %2682
  %2684 = vset.pattern.permute.xlu0 5
  %2685 = vperm.xlu0 %2684, %v2504
  %v2686 = vpop.permute.xlu0 %2685
  %2687 = vset.pattern.permute.xlu0 5
  %2688 = vperm.xlu0 %2687, %v2505
  %v2689 = vpop.permute.xlu0 %2688
  %2690 = vset.pattern.permute.xlu0 5
  %2691 = vperm.xlu0 %2690, %v2506
  %v2692 = vpop.permute.xlu0 %2691
  %2693 = vset.pattern.permute.xlu0 5
  %2694 = vperm.xlu0 %2693, %v2507
  %v2695 = vpop.permute.xlu0 %2694
  %2696 = vset.pattern.permute.xlu0 5
  %2697 = vperm.xlu0 %2696, %v2508
  %v2698 = vpop.permute.xlu0 %2697
  %2699 = vset.pattern.permute.xlu0 5
  %2700 = vperm.xlu0 %2699, %v2509
  %v2701 = vpop.permute.xlu0 %2700
  %vm2702 = vcmp.eq.s32.totalorder %v2512, %v76
  %vm2703 = vcmp.eq.s32.totalorder %v2512, %v77
  %vm2704 = vcmp.eq.s32.totalorder %v2515, %v76
  %vm2705 = vcmp.eq.s32.totalorder %v2515, %v77
  %vm2706 = vcmp.eq.s32.totalorder %v2518, %v76
  %vm2707 = vcmp.eq.s32.totalorder %v2518, %v77
  %vm2708 = vcmp.eq.s32.totalorder %v2521, %v76
  %vm2709 = vcmp.eq.s32.totalorder %v2521, %v77
  %vm2710 = vcmp.eq.s32.totalorder %v2524, %v76
  %vm2711 = vcmp.eq.s32.totalorder %v2524, %v77
  %vm2712 = vcmp.eq.s32.totalorder %v2527, %v76
  %vm2713 = vcmp.eq.s32.totalorder %v2527, %v77
  %vm2714 = vcmp.eq.s32.totalorder %v2530, %v76
  %vm2715 = vcmp.eq.s32.totalorder %v2530, %v77
  %vm2716 = vcmp.eq.s32.totalorder %v2533, %v76
  %vm2717 = vcmp.eq.s32.totalorder %v2533, %v77
  %vm2718 = vcmp.eq.s32.totalorder %v2536, %v76
  %vm2719 = vcmp.eq.s32.totalorder %v2536, %v77
  %vm2720 = vcmp.eq.s32.totalorder %v2539, %v76
  %vm2721 = vcmp.eq.s32.totalorder %v2539, %v77
  %vm2722 = vcmp.eq.s32.totalorder %v2542, %v76
  %vm2723 = vcmp.eq.s32.totalorder %v2542, %v77
  %vm2724 = vcmp.eq.s32.totalorder %v2545, %v76
  %vm2725 = vcmp.eq.s32.totalorder %v2545, %v77
  %vm2726 = vcmp.eq.s32.totalorder %v2548, %v76
  %vm2727 = vcmp.eq.s32.totalorder %v2548, %v77
  %vm2728 = vcmp.eq.s32.totalorder %v2551, %v76
  %vm2729 = vcmp.eq.s32.totalorder %v2551, %v77
  %vm2730 = vcmp.eq.s32.totalorder %v2554, %v76
  %vm2731 = vcmp.eq.s32.totalorder %v2554, %v77
  %vm2732 = vcmp.eq.s32.totalorder %v2557, %v76
  %vm2733 = vcmp.eq.s32.totalorder %v2557, %v77
  %vm2734 = vcmp.eq.s32.totalorder %v2560, %v76
  %vm2735 = vcmp.eq.s32.totalorder %v2560, %v77
  %vm2736 = vcmp.eq.s32.totalorder %v2563, %v76
  %vm2737 = vcmp.eq.s32.totalorder %v2563, %v77
  %vm2738 = vcmp.eq.s32.totalorder %v2566, %v76
  %vm2739 = vcmp.eq.s32.totalorder %v2566, %v77
  %vm2740 = vcmp.eq.s32.totalorder %v2569, %v76
  %vm2741 = vcmp.eq.s32.totalorder %v2569, %v77
  %vm2742 = vcmp.eq.s32.totalorder %v2572, %v76
  %vm2743 = vcmp.eq.s32.totalorder %v2572, %v77
  %vm2744 = vcmp.eq.s32.totalorder %v2575, %v76
  %vm2745 = vcmp.eq.s32.totalorder %v2575, %v77
  %vm2746 = vcmp.eq.s32.totalorder %v2578, %v76
  %vm2747 = vcmp.eq.s32.totalorder %v2578, %v77
  %vm2748 = vcmp.eq.s32.totalorder %v2581, %v76
  %vm2749 = vcmp.eq.s32.totalorder %v2581, %v77
  %vm2750 = vcmp.eq.s32.totalorder %v2584, %v76
  %vm2751 = vcmp.eq.s32.totalorder %v2584, %v77
  %vm2752 = vcmp.eq.s32.totalorder %v2587, %v76
  %vm2753 = vcmp.eq.s32.totalorder %v2587, %v77
  %vm2754 = vcmp.eq.s32.totalorder %v2590, %v76
  %vm2755 = vcmp.eq.s32.totalorder %v2590, %v77
  %vm2756 = vcmp.eq.s32.totalorder %v2593, %v76
  %vm2757 = vcmp.eq.s32.totalorder %v2593, %v77
  %vm2758 = vcmp.eq.s32.totalorder %v2596, %v76
  %vm2759 = vcmp.eq.s32.totalorder %v2596, %v77
  %vm2760 = vcmp.eq.s32.totalorder %v2599, %v76
  %vm2761 = vcmp.eq.s32.totalorder %v2599, %v77
  %vm2762 = vcmp.eq.s32.totalorder %v2602, %v76
  %vm2763 = vcmp.eq.s32.totalorder %v2602, %v77
  %vm2764 = vcmp.eq.s32.totalorder %v2605, %v76
  %vm2765 = vcmp.eq.s32.totalorder %v2605, %v77
  %vm2766 = vcmp.eq.s32.totalorder %v2608, %v76
  %vm2767 = vcmp.eq.s32.totalorder %v2608, %v77
  %vm2768 = vcmp.eq.s32.totalorder %v2611, %v76
  %vm2769 = vcmp.eq.s32.totalorder %v2611, %v77
  %vm2770 = vcmp.eq.s32.totalorder %v2614, %v76
  %vm2771 = vcmp.eq.s32.totalorder %v2614, %v77
  %vm2772 = vcmp.eq.s32.totalorder %v2617, %v76
  %vm2773 = vcmp.eq.s32.totalorder %v2617, %v77
  %vm2774 = vcmp.eq.s32.totalorder %v2620, %v76
  %vm2775 = vcmp.eq.s32.totalorder %v2620, %v77
  %vm2776 = vcmp.eq.s32.totalorder %v2623, %v76
  %vm2777 = vcmp.eq.s32.totalorder %v2623, %v77
  %vm2778 = vcmp.eq.s32.totalorder %v2626, %v76
  %vm2779 = vcmp.eq.s32.totalorder %v2626, %v77
  %vm2780 = vcmp.eq.s32.totalorder %v2629, %v76
  %vm2781 = vcmp.eq.s32.totalorder %v2629, %v77
  %vm2782 = vcmp.eq.s32.totalorder %v2632, %v76
  %vm2783 = vcmp.eq.s32.totalorder %v2632, %v77
  %vm2784 = vcmp.eq.s32.totalorder %v2635, %v76
  %vm2785 = vcmp.eq.s32.totalorder %v2635, %v77
  %vm2786 = vcmp.eq.s32.totalorder %v2638, %v76
  %vm2787 = vcmp.eq.s32.totalorder %v2638, %v77
  %vm2788 = vcmp.eq.s32.totalorder %v2641, %v76
  %vm2789 = vcmp.eq.s32.totalorder %v2641, %v77
  %vm2790 = vcmp.eq.s32.totalorder %v2644, %v76
  %vm2791 = vcmp.eq.s32.totalorder %v2644, %v77
  %vm2792 = vcmp.eq.s32.totalorder %v2647, %v76
  %vm2793 = vcmp.eq.s32.totalorder %v2647, %v77
  %vm2794 = vcmp.eq.s32.totalorder %v2650, %v76
  %vm2795 = vcmp.eq.s32.totalorder %v2650, %v77
  %vm2796 = vcmp.eq.s32.totalorder %v2653, %v76
  %vm2797 = vcmp.eq.s32.totalorder %v2653, %v77
  %vm2798 = vcmp.eq.s32.totalorder %v2656, %v76
  %vm2799 = vcmp.eq.s32.totalorder %v2656, %v77
  %vm2800 = vcmp.eq.s32.totalorder %v2659, %v76
  %vm2801 = vcmp.eq.s32.totalorder %v2659, %v77
  %vm2802 = vcmp.eq.s32.totalorder %v2662, %v76
  %vm2803 = vcmp.eq.s32.totalorder %v2662, %v77
  %vm2804 = vcmp.eq.s32.totalorder %v2665, %v76
  %vm2805 = vcmp.eq.s32.totalorder %v2665, %v77
  %vm2806 = vcmp.eq.s32.totalorder %v2668, %v76
  %vm2807 = vcmp.eq.s32.totalorder %v2668, %v77
  %vm2808 = vcmp.eq.s32.totalorder %v2671, %v76
  %vm2809 = vcmp.eq.s32.totalorder %v2671, %v77
  %vm2810 = vcmp.eq.s32.totalorder %v2674, %v76
  %vm2811 = vcmp.eq.s32.totalorder %v2674, %v77
  %vm2812 = vcmp.eq.s32.totalorder %v2677, %v76
  %vm2813 = vcmp.eq.s32.totalorder %v2677, %v77
  %vm2814 = vcmp.eq.s32.totalorder %v2680, %v76
  %vm2815 = vcmp.eq.s32.totalorder %v2680, %v77
  %vm2816 = vcmp.eq.s32.totalorder %v2683, %v76
  %vm2817 = vcmp.eq.s32.totalorder %v2683, %v77
  %vm2818 = vcmp.eq.s32.totalorder %v2686, %v76
  %vm2819 = vcmp.eq.s32.totalorder %v2686, %v77
  %vm2820 = vcmp.eq.s32.totalorder %v2689, %v76
  %vm2821 = vcmp.eq.s32.totalorder %v2689, %v77
  %vm2822 = vcmp.eq.s32.totalorder %v2692, %v76
  %vm2823 = vcmp.eq.s32.totalorder %v2692, %v77
  %vm2824 = vcmp.eq.s32.totalorder %v2695, %v76
  %vm2825 = vcmp.eq.s32.totalorder %v2695, %v77
  %vm2826 = vcmp.eq.s32.totalorder %v2698, %v76
  %vm2827 = vcmp.eq.s32.totalorder %v2698, %v77
  %vm2828 = vcmp.eq.s32.totalorder %v2701, %v76
  %vm2829 = vcmp.eq.s32.totalorder %v2701, %v77
  %vm2830 = vmor %vm2318, %vm2702
  %vm2831 = vmor %vm2319, %vm2703
  %vm2832 = vmor %vm2320, %vm2704
  %vm2833 = vmor %vm2321, %vm2705
  %vm2834 = vmor %vm2322, %vm2706
  %vm2835 = vmor %vm2323, %vm2707
  %vm2836 = vmor %vm2324, %vm2708
  %vm2837 = vmor %vm2325, %vm2709
  %vm2838 = vmor %vm2326, %vm2710
  %vm2839 = vmor %vm2327, %vm2711
  %vm2840 = vmor %vm2328, %vm2712
  %vm2841 = vmor %vm2329, %vm2713
  %vm2842 = vmor %vm2330, %vm2714
  %vm2843 = vmor %vm2331, %vm2715
  %vm2844 = vmor %vm2332, %vm2716
  %vm2845 = vmor %vm2333, %vm2717
  %vm2846 = vmor %vm2334, %vm2718
  %vm2847 = vmor %vm2335, %vm2719
  %vm2848 = vmor %vm2336, %vm2720
  %vm2849 = vmor %vm2337, %vm2721
  %vm2850 = vmor %vm2338, %vm2722
  %vm2851 = vmor %vm2339, %vm2723
  %vm2852 = vmor %vm2340, %vm2724
  %vm2853 = vmor %vm2341, %vm2725
  %vm2854 = vmor %vm2342, %vm2726
  %vm2855 = vmor %vm2343, %vm2727
  %vm2856 = vmor %vm2344, %vm2728
  %vm2857 = vmor %vm2345, %vm2729
  %vm2858 = vmor %vm2346, %vm2730
  %vm2859 = vmor %vm2347, %vm2731
  %vm2860 = vmor %vm2348, %vm2732
  %vm2861 = vmor %vm2349, %vm2733
  %vm2862 = vmor %vm2350, %vm2734
  %vm2863 = vmor %vm2351, %vm2735
  %vm2864 = vmor %vm2352, %vm2736
  %vm2865 = vmor %vm2353, %vm2737
  %vm2866 = vmor %vm2354, %vm2738
  %vm2867 = vmor %vm2355, %vm2739
  %vm2868 = vmor %vm2356, %vm2740
  %vm2869 = vmor %vm2357, %vm2741
  %vm2870 = vmor %vm2358, %vm2742
  %vm2871 = vmor %vm2359, %vm2743
  %vm2872 = vmor %vm2360, %vm2744
  %vm2873 = vmor %vm2361, %vm2745
  %vm2874 = vmor %vm2362, %vm2746
  %vm2875 = vmor %vm2363, %vm2747
  %vm2876 = vmor %vm2364, %vm2748
  %vm2877 = vmor %vm2365, %vm2749
  %vm2878 = vmor %vm2366, %vm2750
  %vm2879 = vmor %vm2367, %vm2751
  %vm2880 = vmor %vm2368, %vm2752
  %vm2881 = vmor %vm2369, %vm2753
  %vm2882 = vmor %vm2370, %vm2754
  %vm2883 = vmor %vm2371, %vm2755
  %vm2884 = vmor %vm2372, %vm2756
  %vm2885 = vmor %vm2373, %vm2757
  %vm2886 = vmor %vm2374, %vm2758
  %vm2887 = vmor %vm2375, %vm2759
  %vm2888 = vmor %vm2376, %vm2760
  %vm2889 = vmor %vm2377, %vm2761
  %vm2890 = vmor %vm2378, %vm2762
  %vm2891 = vmor %vm2379, %vm2763
  %vm2892 = vmor %vm2380, %vm2764
  %vm2893 = vmor %vm2381, %vm2765
  %vm2894 = vmor %vm2382, %vm2766
  %vm2895 = vmor %vm2383, %vm2767
  %vm2896 = vmor %vm2384, %vm2768
  %vm2897 = vmor %vm2385, %vm2769
  %vm2898 = vmor %vm2386, %vm2770
  %vm2899 = vmor %vm2387, %vm2771
  %vm2900 = vmor %vm2388, %vm2772
  %vm2901 = vmor %vm2389, %vm2773
  %vm2902 = vmor %vm2390, %vm2774
  %vm2903 = vmor %vm2391, %vm2775
  %vm2904 = vmor %vm2392, %vm2776
  %vm2905 = vmor %vm2393, %vm2777
  %vm2906 = vmor %vm2394, %vm2778
  %vm2907 = vmor %vm2395, %vm2779
  %vm2908 = vmor %vm2396, %vm2780
  %vm2909 = vmor %vm2397, %vm2781
  %vm2910 = vmor %vm2398, %vm2782
  %vm2911 = vmor %vm2399, %vm2783
  %vm2912 = vmor %vm2400, %vm2784
  %vm2913 = vmor %vm2401, %vm2785
  %vm2914 = vmor %vm2402, %vm2786
  %vm2915 = vmor %vm2403, %vm2787
  %vm2916 = vmor %vm2404, %vm2788
  %vm2917 = vmor %vm2405, %vm2789
  %vm2918 = vmor %vm2406, %vm2790
  %vm2919 = vmor %vm2407, %vm2791
  %vm2920 = vmor %vm2408, %vm2792
  %vm2921 = vmor %vm2409, %vm2793
  %vm2922 = vmor %vm2410, %vm2794
  %vm2923 = vmor %vm2411, %vm2795
  %vm2924 = vmor %vm2412, %vm2796
  %vm2925 = vmor %vm2413, %vm2797
  %vm2926 = vmor %vm2414, %vm2798
  %vm2927 = vmor %vm2415, %vm2799
  %vm2928 = vmor %vm2416, %vm2800
  %vm2929 = vmor %vm2417, %vm2801
  %vm2930 = vmor %vm2418, %vm2802
  %vm2931 = vmor %vm2419, %vm2803
  %vm2932 = vmor %vm2420, %vm2804
  %vm2933 = vmor %vm2421, %vm2805
  %vm2934 = vmor %vm2422, %vm2806
  %vm2935 = vmor %vm2423, %vm2807
  %vm2936 = vmor %vm2424, %vm2808
  %vm2937 = vmor %vm2425, %vm2809
  %vm2938 = vmor %vm2426, %vm2810
  %vm2939 = vmor %vm2427, %vm2811
  %vm2940 = vmor %vm2428, %vm2812
  %vm2941 = vmor %vm2429, %vm2813
  %vm2942 = vmor %vm2430, %vm2814
  %vm2943 = vmor %vm2431, %vm2815
  %vm2944 = vmor %vm2432, %vm2816
  %vm2945 = vmor %vm2433, %vm2817
  %vm2946 = vmor %vm2434, %vm2818
  %vm2947 = vmor %vm2435, %vm2819
  %vm2948 = vmor %vm2436, %vm2820
  %vm2949 = vmor %vm2437, %vm2821
  %vm2950 = vmor %vm2438, %vm2822
  %vm2951 = vmor %vm2439, %vm2823
  %vm2952 = vmor %vm2440, %vm2824
  %vm2953 = vmor %vm2441, %vm2825
  %vm2954 = vmor %vm2442, %vm2826
  %vm2955 = vmor %vm2443, %vm2827
  %vm2956 = vmor %vm2444, %vm2828
  %vm2957 = vmor %vm2445, %vm2829
  %v2958 = vadd.s32 %v11, 164
  %v2959 = vadd.s32 %v12, 164
  %v2960 = vadd.s32 %v13, 164
  %v2961 = vadd.s32 %v14, 164
  %v2962 = vadd.s32 %v15, 164
  %v2963 = vadd.s32 %v16, 164
  %v2964 = vadd.s32 %v17, 164
  %v2965 = vadd.s32 %v18, 164
  %v2966 = vadd.s32 %v19, 164
  %v2967 = vadd.s32 %v20, 164
  %v2968 = vadd.s32 %v21, 164
  %v2969 = vadd.s32 %v22, 164
  %v2970 = vadd.s32 %v23, 164
  %v2971 = vadd.s32 %v24, 164
  %v2972 = vadd.s32 %v25, 164
  %v2973 = vadd.s32 %v26, 164
  %v2974 = vadd.s32 %v27, 164
  %v2975 = vadd.s32 %v28, 164
  %v2976 = vadd.s32 %v29, 164
  %v2977 = vadd.s32 %v30, 164
  %v2978 = vadd.s32 %v31, 164
  %v2979 = vadd.s32 %v32, 164
  %v2980 = vadd.s32 %v33, 164
  %v2981 = vadd.s32 %v34, 164
  %v2982 = vadd.s32 %v35, 164
  %v2983 = vadd.s32 %v36, 164
  %v2984 = vadd.s32 %v37, 164
  %v2985 = vadd.s32 %v38, 164
  %v2986 = vadd.s32 %v39, 164
  %v2987 = vadd.s32 %v40, 164
  %v2988 = vadd.s32 %v41, 164
  %v2989 = vadd.s32 %v42, 164
  %v2990 = vadd.s32 %v43, 164
  %v2991 = vadd.s32 %v44, 164
  %v2992 = vadd.s32 %v45, 164
  %v2993 = vadd.s32 %v46, 164
  %v2994 = vadd.s32 %v47, 164
  %v2995 = vadd.s32 %v48, 164
  %v2996 = vadd.s32 %v49, 164
  %v2997 = vadd.s32 %v50, 164
  %v2998 = vadd.s32 %v51, 164
  %v2999 = vadd.s32 %v52, 164
  %v3000 = vadd.s32 %v53, 164
  %v3001 = vadd.s32 %v54, 164
  %v3002 = vadd.s32 %v55, 164
  %v3003 = vadd.s32 %v56, 164
  %v3004 = vadd.s32 %v57, 164
  %v3005 = vadd.s32 %v58, 164
  %v3006 = vadd.s32 %v59, 164
  %v3007 = vadd.s32 %v60, 164
  %v3008 = vadd.s32 %v61, 164
  %v3009 = vadd.s32 %v62, 164
  %v3010 = vadd.s32 %v63, 164
  %v3011 = vadd.s32 %v64, 164
  %v3012 = vadd.s32 %v65, 164
  %v3013 = vadd.s32 %v66, 164
  %v3014 = vadd.s32 %v67, 164
  %v3015 = vadd.s32 %v68, 164
  %v3016 = vadd.s32 %v69, 164
  %v3017 = vadd.s32 %v70, 164
  %v3018 = vadd.s32 %v71, 164
  %v3019 = vadd.s32 %v72, 164
  %v3020 = vadd.s32 %v73, 164
  %v3021 = vadd.s32 %v74, 164
  %3022 = vset.pattern.permute.xlu0 6
  %3023 = vperm.xlu0 %3022, %v2958
  %v3024 = vpop.permute.xlu0 %3023
  %3025 = vset.pattern.permute.xlu0 6
  %3026 = vperm.xlu0 %3025, %v2959
  %v3027 = vpop.permute.xlu0 %3026
  %3028 = vset.pattern.permute.xlu0 6
  %3029 = vperm.xlu0 %3028, %v2960
  %v3030 = vpop.permute.xlu0 %3029
  %3031 = vset.pattern.permute.xlu0 6
  %3032 = vperm.xlu0 %3031, %v2961
  %v3033 = vpop.permute.xlu0 %3032
  %3034 = vset.pattern.permute.xlu0 6
  %3035 = vperm.xlu0 %3034, %v2962
  %v3036 = vpop.permute.xlu0 %3035
  %3037 = vset.pattern.permute.xlu0 6
  %3038 = vperm.xlu0 %3037, %v2963
  %v3039 = vpop.permute.xlu0 %3038
  %3040 = vset.pattern.permute.xlu0 6
  %3041 = vperm.xlu0 %3040, %v2964
  %v3042 = vpop.permute.xlu0 %3041
  %3043 = vset.pattern.permute.xlu0 6
  %3044 = vperm.xlu0 %3043, %v2965
  %v3045 = vpop.permute.xlu0 %3044
  %3046 = vset.pattern.permute.xlu0 6
  %3047 = vperm.xlu0 %3046, %v2966
  %v3048 = vpop.permute.xlu0 %3047
  %3049 = vset.pattern.permute.xlu0 6
  %3050 = vperm.xlu0 %3049, %v2967
  %v3051 = vpop.permute.xlu0 %3050
  %3052 = vset.pattern.permute.xlu0 6
  %3053 = vperm.xlu0 %3052, %v2968
  %v3054 = vpop.permute.xlu0 %3053
  %3055 = vset.pattern.permute.xlu0 6
  %3056 = vperm.xlu0 %3055, %v2969
  %v3057 = vpop.permute.xlu0 %3056
  %3058 = vset.pattern.permute.xlu0 6
  %3059 = vperm.xlu0 %3058, %v2970
  %v3060 = vpop.permute.xlu0 %3059
  %3061 = vset.pattern.permute.xlu0 6
  %3062 = vperm.xlu0 %3061, %v2971
  %v3063 = vpop.permute.xlu0 %3062
  %3064 = vset.pattern.permute.xlu0 6
  %3065 = vperm.xlu0 %3064, %v2972
  %v3066 = vpop.permute.xlu0 %3065
  %3067 = vset.pattern.permute.xlu0 6
  %3068 = vperm.xlu0 %3067, %v2973
  %v3069 = vpop.permute.xlu0 %3068
  %3070 = vset.pattern.permute.xlu0 6
  %3071 = vperm.xlu0 %3070, %v2974
  %v3072 = vpop.permute.xlu0 %3071
  %3073 = vset.pattern.permute.xlu0 6
  %3074 = vperm.xlu0 %3073, %v2975
  %v3075 = vpop.permute.xlu0 %3074
  %3076 = vset.pattern.permute.xlu0 6
  %3077 = vperm.xlu0 %3076, %v2976
  %v3078 = vpop.permute.xlu0 %3077
  %3079 = vset.pattern.permute.xlu0 6
  %3080 = vperm.xlu0 %3079, %v2977
  %v3081 = vpop.permute.xlu0 %3080
  %3082 = vset.pattern.permute.xlu0 6
  %3083 = vperm.xlu0 %3082, %v2978
  %v3084 = vpop.permute.xlu0 %3083
  %3085 = vset.pattern.permute.xlu0 6
  %3086 = vperm.xlu0 %3085, %v2979
  %v3087 = vpop.permute.xlu0 %3086
  %3088 = vset.pattern.permute.xlu0 6
  %3089 = vperm.xlu0 %3088, %v2980
  %v3090 = vpop.permute.xlu0 %3089
  %3091 = vset.pattern.permute.xlu0 6
  %3092 = vperm.xlu0 %3091, %v2981
  %v3093 = vpop.permute.xlu0 %3092
  %3094 = vset.pattern.permute.xlu0 6
  %3095 = vperm.xlu0 %3094, %v2982
  %v3096 = vpop.permute.xlu0 %3095
  %3097 = vset.pattern.permute.xlu0 6
  %3098 = vperm.xlu0 %3097, %v2983
  %v3099 = vpop.permute.xlu0 %3098
  %3100 = vset.pattern.permute.xlu0 6
  %3101 = vperm.xlu0 %3100, %v2984
  %v3102 = vpop.permute.xlu0 %3101
  %3103 = vset.pattern.permute.xlu0 6
  %3104 = vperm.xlu0 %3103, %v2985
  %v3105 = vpop.permute.xlu0 %3104
  %3106 = vset.pattern.permute.xlu0 6
  %3107 = vperm.xlu0 %3106, %v2986
  %v3108 = vpop.permute.xlu0 %3107
  %3109 = vset.pattern.permute.xlu0 6
  %3110 = vperm.xlu0 %3109, %v2987
  %v3111 = vpop.permute.xlu0 %3110
  %3112 = vset.pattern.permute.xlu0 6
  %3113 = vperm.xlu0 %3112, %v2988
  %v3114 = vpop.permute.xlu0 %3113
  %3115 = vset.pattern.permute.xlu0 6
  %3116 = vperm.xlu0 %3115, %v2989
  %v3117 = vpop.permute.xlu0 %3116
  %3118 = vset.pattern.permute.xlu0 6
  %3119 = vperm.xlu0 %3118, %v2990
  %v3120 = vpop.permute.xlu0 %3119
  %3121 = vset.pattern.permute.xlu0 6
  %3122 = vperm.xlu0 %3121, %v2991
  %v3123 = vpop.permute.xlu0 %3122
  %3124 = vset.pattern.permute.xlu0 6
  %3125 = vperm.xlu0 %3124, %v2992
  %v3126 = vpop.permute.xlu0 %3125
  %3127 = vset.pattern.permute.xlu0 6
  %3128 = vperm.xlu0 %3127, %v2993
  %v3129 = vpop.permute.xlu0 %3128
  %3130 = vset.pattern.permute.xlu0 6
  %3131 = vperm.xlu0 %3130, %v2994
  %v3132 = vpop.permute.xlu0 %3131
  %3133 = vset.pattern.permute.xlu0 6
  %3134 = vperm.xlu0 %3133, %v2995
  %v3135 = vpop.permute.xlu0 %3134
  %3136 = vset.pattern.permute.xlu0 6
  %3137 = vperm.xlu0 %3136, %v2996
  %v3138 = vpop.permute.xlu0 %3137
  %3139 = vset.pattern.permute.xlu0 6
  %3140 = vperm.xlu0 %3139, %v2997
  %v3141 = vpop.permute.xlu0 %3140
  %3142 = vset.pattern.permute.xlu0 6
  %3143 = vperm.xlu0 %3142, %v2998
  %v3144 = vpop.permute.xlu0 %3143
  %3145 = vset.pattern.permute.xlu0 6
  %3146 = vperm.xlu0 %3145, %v2999
  %v3147 = vpop.permute.xlu0 %3146
  %3148 = vset.pattern.permute.xlu0 6
  %3149 = vperm.xlu0 %3148, %v3000
  %v3150 = vpop.permute.xlu0 %3149
  %3151 = vset.pattern.permute.xlu0 6
  %3152 = vperm.xlu0 %3151, %v3001
  %v3153 = vpop.permute.xlu0 %3152
  %3154 = vset.pattern.permute.xlu0 6
  %3155 = vperm.xlu0 %3154, %v3002
  %v3156 = vpop.permute.xlu0 %3155
  %3157 = vset.pattern.permute.xlu0 6
  %3158 = vperm.xlu0 %3157, %v3003
  %v3159 = vpop.permute.xlu0 %3158
  %3160 = vset.pattern.permute.xlu0 6
  %3161 = vperm.xlu0 %3160, %v3004
  %v3162 = vpop.permute.xlu0 %3161
  %3163 = vset.pattern.permute.xlu0 6
  %3164 = vperm.xlu0 %3163, %v3005
  %v3165 = vpop.permute.xlu0 %3164
  %3166 = vset.pattern.permute.xlu0 6
  %3167 = vperm.xlu0 %3166, %v3006
  %v3168 = vpop.permute.xlu0 %3167
  %3169 = vset.pattern.permute.xlu0 6
  %3170 = vperm.xlu0 %3169, %v3007
  %v3171 = vpop.permute.xlu0 %3170
  %3172 = vset.pattern.permute.xlu0 6
  %3173 = vperm.xlu0 %3172, %v3008
  %v3174 = vpop.permute.xlu0 %3173
  %3175 = vset.pattern.permute.xlu0 6
  %3176 = vperm.xlu0 %3175, %v3009
  %v3177 = vpop.permute.xlu0 %3176
  %3178 = vset.pattern.permute.xlu0 6
  %3179 = vperm.xlu0 %3178, %v3010
  %v3180 = vpop.permute.xlu0 %3179
  %3181 = vset.pattern.permute.xlu0 6
  %3182 = vperm.xlu0 %3181, %v3011
  %v3183 = vpop.permute.xlu0 %3182
  %3184 = vset.pattern.permute.xlu0 6
  %3185 = vperm.xlu0 %3184, %v3012
  %v3186 = vpop.permute.xlu0 %3185
  %3187 = vset.pattern.permute.xlu0 6
  %3188 = vperm.xlu0 %3187, %v3013
  %v3189 = vpop.permute.xlu0 %3188
  %3190 = vset.pattern.permute.xlu0 6
  %3191 = vperm.xlu0 %3190, %v3014
  %v3192 = vpop.permute.xlu0 %3191
  %3193 = vset.pattern.permute.xlu0 6
  %3194 = vperm.xlu0 %3193, %v3015
  %v3195 = vpop.permute.xlu0 %3194
  %3196 = vset.pattern.permute.xlu0 6
  %3197 = vperm.xlu0 %3196, %v3016
  %v3198 = vpop.permute.xlu0 %3197
  %3199 = vset.pattern.permute.xlu0 6
  %3200 = vperm.xlu0 %3199, %v3017
  %v3201 = vpop.permute.xlu0 %3200
  %3202 = vset.pattern.permute.xlu0 6
  %3203 = vperm.xlu0 %3202, %v3018
  %v3204 = vpop.permute.xlu0 %3203
  %3205 = vset.pattern.permute.xlu0 6
  %3206 = vperm.xlu0 %3205, %v3019
  %v3207 = vpop.permute.xlu0 %3206
  %3208 = vset.pattern.permute.xlu0 6
  %3209 = vperm.xlu0 %3208, %v3020
  %v3210 = vpop.permute.xlu0 %3209
  %3211 = vset.pattern.permute.xlu0 6
  %3212 = vperm.xlu0 %3211, %v3021
  %v3213 = vpop.permute.xlu0 %3212
  %vm3214 = vcmp.eq.s32.totalorder %v3024, %v76
  %vm3215 = vcmp.eq.s32.totalorder %v3024, %v77
  %vm3216 = vcmp.eq.s32.totalorder %v3027, %v76
  %vm3217 = vcmp.eq.s32.totalorder %v3027, %v77
  %vm3218 = vcmp.eq.s32.totalorder %v3030, %v76
  %vm3219 = vcmp.eq.s32.totalorder %v3030, %v77
  %vm3220 = vcmp.eq.s32.totalorder %v3033, %v76
  %vm3221 = vcmp.eq.s32.totalorder %v3033, %v77
  %vm3222 = vcmp.eq.s32.totalorder %v3036, %v76
  %vm3223 = vcmp.eq.s32.totalorder %v3036, %v77
  %vm3224 = vcmp.eq.s32.totalorder %v3039, %v76
  %vm3225 = vcmp.eq.s32.totalorder %v3039, %v77
  %vm3226 = vcmp.eq.s32.totalorder %v3042, %v76
  %vm3227 = vcmp.eq.s32.totalorder %v3042, %v77
  %vm3228 = vcmp.eq.s32.totalorder %v3045, %v76
  %vm3229 = vcmp.eq.s32.totalorder %v3045, %v77
  %vm3230 = vcmp.eq.s32.totalorder %v3048, %v76
  %vm3231 = vcmp.eq.s32.totalorder %v3048, %v77
  %vm3232 = vcmp.eq.s32.totalorder %v3051, %v76
  %vm3233 = vcmp.eq.s32.totalorder %v3051, %v77
  %vm3234 = vcmp.eq.s32.totalorder %v3054, %v76
  %vm3235 = vcmp.eq.s32.totalorder %v3054, %v77
  %vm3236 = vcmp.eq.s32.totalorder %v3057, %v76
  %vm3237 = vcmp.eq.s32.totalorder %v3057, %v77
  %vm3238 = vcmp.eq.s32.totalorder %v3060, %v76
  %vm3239 = vcmp.eq.s32.totalorder %v3060, %v77
  %vm3240 = vcmp.eq.s32.totalorder %v3063, %v76
  %vm3241 = vcmp.eq.s32.totalorder %v3063, %v77
  %vm3242 = vcmp.eq.s32.totalorder %v3066, %v76
  %vm3243 = vcmp.eq.s32.totalorder %v3066, %v77
  %vm3244 = vcmp.eq.s32.totalorder %v3069, %v76
  %vm3245 = vcmp.eq.s32.totalorder %v3069, %v77
  %vm3246 = vcmp.eq.s32.totalorder %v3072, %v76
  %vm3247 = vcmp.eq.s32.totalorder %v3072, %v77
  %vm3248 = vcmp.eq.s32.totalorder %v3075, %v76
  %vm3249 = vcmp.eq.s32.totalorder %v3075, %v77
  %vm3250 = vcmp.eq.s32.totalorder %v3078, %v76
  %vm3251 = vcmp.eq.s32.totalorder %v3078, %v77
  %vm3252 = vcmp.eq.s32.totalorder %v3081, %v76
  %vm3253 = vcmp.eq.s32.totalorder %v3081, %v77
  %vm3254 = vcmp.eq.s32.totalorder %v3084, %v76
  %vm3255 = vcmp.eq.s32.totalorder %v3084, %v77
  %vm3256 = vcmp.eq.s32.totalorder %v3087, %v76
  %vm3257 = vcmp.eq.s32.totalorder %v3087, %v77
  %vm3258 = vcmp.eq.s32.totalorder %v3090, %v76
  %vm3259 = vcmp.eq.s32.totalorder %v3090, %v77
  %vm3260 = vcmp.eq.s32.totalorder %v3093, %v76
  %vm3261 = vcmp.eq.s32.totalorder %v3093, %v77
  %vm3262 = vcmp.eq.s32.totalorder %v3096, %v76
  %vm3263 = vcmp.eq.s32.totalorder %v3096, %v77
  %vm3264 = vcmp.eq.s32.totalorder %v3099, %v76
  %vm3265 = vcmp.eq.s32.totalorder %v3099, %v77
  %vm3266 = vcmp.eq.s32.totalorder %v3102, %v76
  %vm3267 = vcmp.eq.s32.totalorder %v3102, %v77
  %vm3268 = vcmp.eq.s32.totalorder %v3105, %v76
  %vm3269 = vcmp.eq.s32.totalorder %v3105, %v77
  %vm3270 = vcmp.eq.s32.totalorder %v3108, %v76
  %vm3271 = vcmp.eq.s32.totalorder %v3108, %v77
  %vm3272 = vcmp.eq.s32.totalorder %v3111, %v76
  %vm3273 = vcmp.eq.s32.totalorder %v3111, %v77
  %vm3274 = vcmp.eq.s32.totalorder %v3114, %v76
  %vm3275 = vcmp.eq.s32.totalorder %v3114, %v77
  %vm3276 = vcmp.eq.s32.totalorder %v3117, %v76
  %vm3277 = vcmp.eq.s32.totalorder %v3117, %v77
  %vm3278 = vcmp.eq.s32.totalorder %v3120, %v76
  %vm3279 = vcmp.eq.s32.totalorder %v3120, %v77
  %vm3280 = vcmp.eq.s32.totalorder %v3123, %v76
  %vm3281 = vcmp.eq.s32.totalorder %v3123, %v77
  %vm3282 = vcmp.eq.s32.totalorder %v3126, %v76
  %vm3283 = vcmp.eq.s32.totalorder %v3126, %v77
  %vm3284 = vcmp.eq.s32.totalorder %v3129, %v76
  %vm3285 = vcmp.eq.s32.totalorder %v3129, %v77
  %vm3286 = vcmp.eq.s32.totalorder %v3132, %v76
  %vm3287 = vcmp.eq.s32.totalorder %v3132, %v77
  %vm3288 = vcmp.eq.s32.totalorder %v3135, %v76
  %vm3289 = vcmp.eq.s32.totalorder %v3135, %v77
  %vm3290 = vcmp.eq.s32.totalorder %v3138, %v76
  %vm3291 = vcmp.eq.s32.totalorder %v3138, %v77
  %vm3292 = vcmp.eq.s32.totalorder %v3141, %v76
  %vm3293 = vcmp.eq.s32.totalorder %v3141, %v77
  %vm3294 = vcmp.eq.s32.totalorder %v3144, %v76
  %vm3295 = vcmp.eq.s32.totalorder %v3144, %v77
  %vm3296 = vcmp.eq.s32.totalorder %v3147, %v76
  %vm3297 = vcmp.eq.s32.totalorder %v3147, %v77
  %vm3298 = vcmp.eq.s32.totalorder %v3150, %v76
  %vm3299 = vcmp.eq.s32.totalorder %v3150, %v77
  %vm3300 = vcmp.eq.s32.totalorder %v3153, %v76
  %vm3301 = vcmp.eq.s32.totalorder %v3153, %v77
  %vm3302 = vcmp.eq.s32.totalorder %v3156, %v76
  %vm3303 = vcmp.eq.s32.totalorder %v3156, %v77
  %vm3304 = vcmp.eq.s32.totalorder %v3159, %v76
  %vm3305 = vcmp.eq.s32.totalorder %v3159, %v77
  %vm3306 = vcmp.eq.s32.totalorder %v3162, %v76
  %vm3307 = vcmp.eq.s32.totalorder %v3162, %v77
  %vm3308 = vcmp.eq.s32.totalorder %v3165, %v76
  %vm3309 = vcmp.eq.s32.totalorder %v3165, %v77
  %vm3310 = vcmp.eq.s32.totalorder %v3168, %v76
  %vm3311 = vcmp.eq.s32.totalorder %v3168, %v77
  %vm3312 = vcmp.eq.s32.totalorder %v3171, %v76
  %vm3313 = vcmp.eq.s32.totalorder %v3171, %v77
  %vm3314 = vcmp.eq.s32.totalorder %v3174, %v76
  %vm3315 = vcmp.eq.s32.totalorder %v3174, %v77
  %vm3316 = vcmp.eq.s32.totalorder %v3177, %v76
  %vm3317 = vcmp.eq.s32.totalorder %v3177, %v77
  %vm3318 = vcmp.eq.s32.totalorder %v3180, %v76
  %vm3319 = vcmp.eq.s32.totalorder %v3180, %v77
  %vm3320 = vcmp.eq.s32.totalorder %v3183, %v76
  %vm3321 = vcmp.eq.s32.totalorder %v3183, %v77
  %vm3322 = vcmp.eq.s32.totalorder %v3186, %v76
  %vm3323 = vcmp.eq.s32.totalorder %v3186, %v77
  %vm3324 = vcmp.eq.s32.totalorder %v3189, %v76
  %vm3325 = vcmp.eq.s32.totalorder %v3189, %v77
  %vm3326 = vcmp.eq.s32.totalorder %v3192, %v76
  %vm3327 = vcmp.eq.s32.totalorder %v3192, %v77
  %vm3328 = vcmp.eq.s32.totalorder %v3195, %v76
  %vm3329 = vcmp.eq.s32.totalorder %v3195, %v77
  %vm3330 = vcmp.eq.s32.totalorder %v3198, %v76
  %vm3331 = vcmp.eq.s32.totalorder %v3198, %v77
  %vm3332 = vcmp.eq.s32.totalorder %v3201, %v76
  %vm3333 = vcmp.eq.s32.totalorder %v3201, %v77
  %vm3334 = vcmp.eq.s32.totalorder %v3204, %v76
  %vm3335 = vcmp.eq.s32.totalorder %v3204, %v77
  %vm3336 = vcmp.eq.s32.totalorder %v3207, %v76
  %vm3337 = vcmp.eq.s32.totalorder %v3207, %v77
  %vm3338 = vcmp.eq.s32.totalorder %v3210, %v76
  %vm3339 = vcmp.eq.s32.totalorder %v3210, %v77
  %vm3340 = vcmp.eq.s32.totalorder %v3213, %v76
  %vm3341 = vcmp.eq.s32.totalorder %v3213, %v77
  %vm3342 = vmor %vm2830, %vm3214
  %vm3343 = vmor %vm2831, %vm3215
  %vm3344 = vmor %vm2832, %vm3216
  %vm3345 = vmor %vm2833, %vm3217
  %vm3346 = vmor %vm2834, %vm3218
  %vm3347 = vmor %vm2835, %vm3219
  %vm3348 = vmor %vm2836, %vm3220
  %vm3349 = vmor %vm2837, %vm3221
  %vm3350 = vmor %vm2838, %vm3222
  %vm3351 = vmor %vm2839, %vm3223
  %vm3352 = vmor %vm2840, %vm3224
  %vm3353 = vmor %vm2841, %vm3225
  %vm3354 = vmor %vm2842, %vm3226
  %vm3355 = vmor %vm2843, %vm3227
  %vm3356 = vmor %vm2844, %vm3228
  %vm3357 = vmor %vm2845, %vm3229
  %vm3358 = vmor %vm2846, %vm3230
  %vm3359 = vmor %vm2847, %vm3231
  %vm3360 = vmor %vm2848, %vm3232
  %vm3361 = vmor %vm2849, %vm3233
  %vm3362 = vmor %vm2850, %vm3234
  %vm3363 = vmor %vm2851, %vm3235
  %vm3364 = vmor %vm2852, %vm3236
  %vm3365 = vmor %vm2853, %vm3237
  %vm3366 = vmor %vm2854, %vm3238
  %vm3367 = vmor %vm2855, %vm3239
  %vm3368 = vmor %vm2856, %vm3240
  %vm3369 = vmor %vm2857, %vm3241
  %vm3370 = vmor %vm2858, %vm3242
  %vm3371 = vmor %vm2859, %vm3243
  %vm3372 = vmor %vm2860, %vm3244
  %vm3373 = vmor %vm2861, %vm3245
  %vm3374 = vmor %vm2862, %vm3246
  %vm3375 = vmor %vm2863, %vm3247
  %vm3376 = vmor %vm2864, %vm3248
  %vm3377 = vmor %vm2865, %vm3249
  %vm3378 = vmor %vm2866, %vm3250
  %vm3379 = vmor %vm2867, %vm3251
  %vm3380 = vmor %vm2868, %vm3252
  %vm3381 = vmor %vm2869, %vm3253
  %vm3382 = vmor %vm2870, %vm3254
  %vm3383 = vmor %vm2871, %vm3255
  %vm3384 = vmor %vm2872, %vm3256
  %vm3385 = vmor %vm2873, %vm3257
  %vm3386 = vmor %vm2874, %vm3258
  %vm3387 = vmor %vm2875, %vm3259
  %vm3388 = vmor %vm2876, %vm3260
  %vm3389 = vmor %vm2877, %vm3261
  %vm3390 = vmor %vm2878, %vm3262
  %vm3391 = vmor %vm2879, %vm3263
  %vm3392 = vmor %vm2880, %vm3264
  %vm3393 = vmor %vm2881, %vm3265
  %vm3394 = vmor %vm2882, %vm3266
  %vm3395 = vmor %vm2883, %vm3267
  %vm3396 = vmor %vm2884, %vm3268
  %vm3397 = vmor %vm2885, %vm3269
  %vm3398 = vmor %vm2886, %vm3270
  %vm3399 = vmor %vm2887, %vm3271
  %vm3400 = vmor %vm2888, %vm3272
  %vm3401 = vmor %vm2889, %vm3273
  %vm3402 = vmor %vm2890, %vm3274
  %vm3403 = vmor %vm2891, %vm3275
  %vm3404 = vmor %vm2892, %vm3276
  %vm3405 = vmor %vm2893, %vm3277
  %vm3406 = vmor %vm2894, %vm3278
  %vm3407 = vmor %vm2895, %vm3279
  %vm3408 = vmor %vm2896, %vm3280
  %vm3409 = vmor %vm2897, %vm3281
  %vm3410 = vmor %vm2898, %vm3282
  %vm3411 = vmor %vm2899, %vm3283
  %vm3412 = vmor %vm2900, %vm3284
  %vm3413 = vmor %vm2901, %vm3285
  %vm3414 = vmor %vm2902, %vm3286
  %vm3415 = vmor %vm2903, %vm3287
  %vm3416 = vmor %vm2904, %vm3288
  %vm3417 = vmor %vm2905, %vm3289
  %vm3418 = vmor %vm2906, %vm3290
  %vm3419 = vmor %vm2907, %vm3291
  %vm3420 = vmor %vm2908, %vm3292
  %vm3421 = vmor %vm2909, %vm3293
  %vm3422 = vmor %vm2910, %vm3294
  %vm3423 = vmor %vm2911, %vm3295
  %vm3424 = vmor %vm2912, %vm3296
  %vm3425 = vmor %vm2913, %vm3297
  %vm3426 = vmor %vm2914, %vm3298
  %vm3427 = vmor %vm2915, %vm3299
  %vm3428 = vmor %vm2916, %vm3300
  %vm3429 = vmor %vm2917, %vm3301
  %vm3430 = vmor %vm2918, %vm3302
  %vm3431 = vmor %vm2919, %vm3303
  %vm3432 = vmor %vm2920, %vm3304
  %vm3433 = vmor %vm2921, %vm3305
  %vm3434 = vmor %vm2922, %vm3306
  %vm3435 = vmor %vm2923, %vm3307
  %vm3436 = vmor %vm2924, %vm3308
  %vm3437 = vmor %vm2925, %vm3309
  %vm3438 = vmor %vm2926, %vm3310
  %vm3439 = vmor %vm2927, %vm3311
  %vm3440 = vmor %vm2928, %vm3312
  %vm3441 = vmor %vm2929, %vm3313
  %vm3442 = vmor %vm2930, %vm3314
  %vm3443 = vmor %vm2931, %vm3315
  %vm3444 = vmor %vm2932, %vm3316
  %vm3445 = vmor %vm2933, %vm3317
  %vm3446 = vmor %vm2934, %vm3318
  %vm3447 = vmor %vm2935, %vm3319
  %vm3448 = vmor %vm2936, %vm3320
  %vm3449 = vmor %vm2937, %vm3321
  %vm3450 = vmor %vm2938, %vm3322
  %vm3451 = vmor %vm2939, %vm3323
  %vm3452 = vmor %vm2940, %vm3324
  %vm3453 = vmor %vm2941, %vm3325
  %vm3454 = vmor %vm2942, %vm3326
  %vm3455 = vmor %vm2943, %vm3327
  %vm3456 = vmor %vm2944, %vm3328
  %vm3457 = vmor %vm2945, %vm3329
  %vm3458 = vmor %vm2946, %vm3330
  %vm3459 = vmor %vm2947, %vm3331
  %vm3460 = vmor %vm2948, %vm3332
  %vm3461 = vmor %vm2949, %vm3333
  %vm3462 = vmor %vm2950, %vm3334
  %vm3463 = vmor %vm2951, %vm3335
  %vm3464 = vmor %vm2952, %vm3336
  %vm3465 = vmor %vm2953, %vm3337
  %vm3466 = vmor %vm2954, %vm3338
  %vm3467 = vmor %vm2955, %vm3339
  %vm3468 = vmor %vm2956, %vm3340
  %vm3469 = vmor %vm2957, %vm3341
  %v3470 = vadd.s32 %v11, 170
  %v3471 = vadd.s32 %v12, 170
  %v3472 = vadd.s32 %v13, 170
  %v3473 = vadd.s32 %v14, 170
  %v3474 = vadd.s32 %v15, 170
  %v3475 = vadd.s32 %v16, 170
  %v3476 = vadd.s32 %v17, 170
  %v3477 = vadd.s32 %v18, 170
  %v3478 = vadd.s32 %v19, 170
  %v3479 = vadd.s32 %v20, 170
  %v3480 = vadd.s32 %v21, 170
  %v3481 = vadd.s32 %v22, 170
  %v3482 = vadd.s32 %v23, 170
  %v3483 = vadd.s32 %v24, 170
  %v3484 = vadd.s32 %v25, 170
  %v3485 = vadd.s32 %v26, 170
  %v3486 = vadd.s32 %v27, 170
  %v3487 = vadd.s32 %v28, 170
  %v3488 = vadd.s32 %v29, 170
  %v3489 = vadd.s32 %v30, 170
  %v3490 = vadd.s32 %v31, 170
  %v3491 = vadd.s32 %v32, 170
  %v3492 = vadd.s32 %v33, 170
  %v3493 = vadd.s32 %v34, 170
  %v3494 = vadd.s32 %v35, 170
  %v3495 = vadd.s32 %v36, 170
  %v3496 = vadd.s32 %v37, 170
  %v3497 = vadd.s32 %v38, 170
  %v3498 = vadd.s32 %v39, 170
  %v3499 = vadd.s32 %v40, 170
  %v3500 = vadd.s32 %v41, 170
  %v3501 = vadd.s32 %v42, 170
  %v3502 = vadd.s32 %v43, 170
  %v3503 = vadd.s32 %v44, 170
  %v3504 = vadd.s32 %v45, 170
  %v3505 = vadd.s32 %v46, 170
  %v3506 = vadd.s32 %v47, 170
  %v3507 = vadd.s32 %v48, 170
  %v3508 = vadd.s32 %v49, 170
  %v3509 = vadd.s32 %v50, 170
  %v3510 = vadd.s32 %v51, 170
  %v3511 = vadd.s32 %v52, 170
  %v3512 = vadd.s32 %v53, 170
  %v3513 = vadd.s32 %v54, 170
  %v3514 = vadd.s32 %v55, 170
  %v3515 = vadd.s32 %v56, 170
  %v3516 = vadd.s32 %v57, 170
  %v3517 = vadd.s32 %v58, 170
  %v3518 = vadd.s32 %v59, 170
  %v3519 = vadd.s32 %v60, 170
  %v3520 = vadd.s32 %v61, 170
  %v3521 = vadd.s32 %v62, 170
  %v3522 = vadd.s32 %v63, 170
  %v3523 = vadd.s32 %v64, 170
  %v3524 = vadd.s32 %v65, 170
  %v3525 = vadd.s32 %v66, 170
  %v3526 = vadd.s32 %v67, 170
  %v3527 = vadd.s32 %v68, 170
  %v3528 = vadd.s32 %v69, 170
  %v3529 = vadd.s32 %v70, 170
  %v3530 = vadd.s32 %v71, 170
  %v3531 = vadd.s32 %v72, 170
  %v3532 = vadd.s32 %v73, 170
  %v3533 = vadd.s32 %v74, 170
  %3534 = vset.pattern.permute.xlu0 7
  %3535 = vperm.xlu0 %3534, %v3470
  %v3536 = vpop.permute.xlu0 %3535
  %3537 = vset.pattern.permute.xlu0 7
  %3538 = vperm.xlu0 %3537, %v3471
  %v3539 = vpop.permute.xlu0 %3538
  %3540 = vset.pattern.permute.xlu0 7
  %3541 = vperm.xlu0 %3540, %v3472
  %v3542 = vpop.permute.xlu0 %3541
  %3543 = vset.pattern.permute.xlu0 7
  %3544 = vperm.xlu0 %3543, %v3473
  %v3545 = vpop.permute.xlu0 %3544
  %3546 = vset.pattern.permute.xlu0 7
  %3547 = vperm.xlu0 %3546, %v3474
  %v3548 = vpop.permute.xlu0 %3547
  %3549 = vset.pattern.permute.xlu0 7
  %3550 = vperm.xlu0 %3549, %v3475
  %v3551 = vpop.permute.xlu0 %3550
  %3552 = vset.pattern.permute.xlu0 7
  %3553 = vperm.xlu0 %3552, %v3476
  %v3554 = vpop.permute.xlu0 %3553
  %3555 = vset.pattern.permute.xlu0 7
  %3556 = vperm.xlu0 %3555, %v3477
  %v3557 = vpop.permute.xlu0 %3556
  %3558 = vset.pattern.permute.xlu0 7
  %3559 = vperm.xlu0 %3558, %v3478
  %v3560 = vpop.permute.xlu0 %3559
  %3561 = vset.pattern.permute.xlu0 7
  %3562 = vperm.xlu0 %3561, %v3479
  %v3563 = vpop.permute.xlu0 %3562
  %3564 = vset.pattern.permute.xlu0 7
  %3565 = vperm.xlu0 %3564, %v3480
  %v3566 = vpop.permute.xlu0 %3565
  %3567 = vset.pattern.permute.xlu0 7
  %3568 = vperm.xlu0 %3567, %v3481
  %v3569 = vpop.permute.xlu0 %3568
  %3570 = vset.pattern.permute.xlu0 7
  %3571 = vperm.xlu0 %3570, %v3482
  %v3572 = vpop.permute.xlu0 %3571
  %3573 = vset.pattern.permute.xlu0 7
  %3574 = vperm.xlu0 %3573, %v3483
  %v3575 = vpop.permute.xlu0 %3574
  %3576 = vset.pattern.permute.xlu0 7
  %3577 = vperm.xlu0 %3576, %v3484
  %v3578 = vpop.permute.xlu0 %3577
  %3579 = vset.pattern.permute.xlu0 7
  %3580 = vperm.xlu0 %3579, %v3485
  %v3581 = vpop.permute.xlu0 %3580
  %3582 = vset.pattern.permute.xlu0 7
  %3583 = vperm.xlu0 %3582, %v3486
  %v3584 = vpop.permute.xlu0 %3583
  %3585 = vset.pattern.permute.xlu0 7
  %3586 = vperm.xlu0 %3585, %v3487
  %v3587 = vpop.permute.xlu0 %3586
  %3588 = vset.pattern.permute.xlu0 7
  %3589 = vperm.xlu0 %3588, %v3488
  %v3590 = vpop.permute.xlu0 %3589
  %3591 = vset.pattern.permute.xlu0 7
  %3592 = vperm.xlu0 %3591, %v3489
  %v3593 = vpop.permute.xlu0 %3592
  %3594 = vset.pattern.permute.xlu0 7
  %3595 = vperm.xlu0 %3594, %v3490
  %v3596 = vpop.permute.xlu0 %3595
  %3597 = vset.pattern.permute.xlu0 7
  %3598 = vperm.xlu0 %3597, %v3491
  %v3599 = vpop.permute.xlu0 %3598
  %3600 = vset.pattern.permute.xlu0 7
  %3601 = vperm.xlu0 %3600, %v3492
  %v3602 = vpop.permute.xlu0 %3601
  %3603 = vset.pattern.permute.xlu0 7
  %3604 = vperm.xlu0 %3603, %v3493
  %v3605 = vpop.permute.xlu0 %3604
  %3606 = vset.pattern.permute.xlu0 7
  %3607 = vperm.xlu0 %3606, %v3494
  %v3608 = vpop.permute.xlu0 %3607
  %3609 = vset.pattern.permute.xlu0 7
  %3610 = vperm.xlu0 %3609, %v3495
  %v3611 = vpop.permute.xlu0 %3610
  %3612 = vset.pattern.permute.xlu0 7
  %3613 = vperm.xlu0 %3612, %v3496
  %v3614 = vpop.permute.xlu0 %3613
  %3615 = vset.pattern.permute.xlu0 7
  %3616 = vperm.xlu0 %3615, %v3497
  %v3617 = vpop.permute.xlu0 %3616
  %3618 = vset.pattern.permute.xlu0 7
  %3619 = vperm.xlu0 %3618, %v3498
  %v3620 = vpop.permute.xlu0 %3619
  %3621 = vset.pattern.permute.xlu0 7
  %3622 = vperm.xlu0 %3621, %v3499
  %v3623 = vpop.permute.xlu0 %3622
  %3624 = vset.pattern.permute.xlu0 7
  %3625 = vperm.xlu0 %3624, %v3500
  %v3626 = vpop.permute.xlu0 %3625
  %3627 = vset.pattern.permute.xlu0 7
  %3628 = vperm.xlu0 %3627, %v3501
  %v3629 = vpop.permute.xlu0 %3628
  %3630 = vset.pattern.permute.xlu0 7
  %3631 = vperm.xlu0 %3630, %v3502
  %v3632 = vpop.permute.xlu0 %3631
  %3633 = vset.pattern.permute.xlu0 7
  %3634 = vperm.xlu0 %3633, %v3503
  %v3635 = vpop.permute.xlu0 %3634
  %3636 = vset.pattern.permute.xlu0 7
  %3637 = vperm.xlu0 %3636, %v3504
  %v3638 = vpop.permute.xlu0 %3637
  %3639 = vset.pattern.permute.xlu0 7
  %3640 = vperm.xlu0 %3639, %v3505
  %v3641 = vpop.permute.xlu0 %3640
  %3642 = vset.pattern.permute.xlu0 7
  %3643 = vperm.xlu0 %3642, %v3506
  %v3644 = vpop.permute.xlu0 %3643
  %3645 = vset.pattern.permute.xlu0 7
  %3646 = vperm.xlu0 %3645, %v3507
  %v3647 = vpop.permute.xlu0 %3646
  %3648 = vset.pattern.permute.xlu0 7
  %3649 = vperm.xlu0 %3648, %v3508
  %v3650 = vpop.permute.xlu0 %3649
  %3651 = vset.pattern.permute.xlu0 7
  %3652 = vperm.xlu0 %3651, %v3509
  %v3653 = vpop.permute.xlu0 %3652
  %3654 = vset.pattern.permute.xlu0 7
  %3655 = vperm.xlu0 %3654, %v3510
  %v3656 = vpop.permute.xlu0 %3655
  %3657 = vset.pattern.permute.xlu0 7
  %3658 = vperm.xlu0 %3657, %v3511
  %v3659 = vpop.permute.xlu0 %3658
  %3660 = vset.pattern.permute.xlu0 7
  %3661 = vperm.xlu0 %3660, %v3512
  %v3662 = vpop.permute.xlu0 %3661
  %3663 = vset.pattern.permute.xlu0 7
  %3664 = vperm.xlu0 %3663, %v3513
  %v3665 = vpop.permute.xlu0 %3664
  %3666 = vset.pattern.permute.xlu0 7
  %3667 = vperm.xlu0 %3666, %v3514
  %v3668 = vpop.permute.xlu0 %3667
  %3669 = vset.pattern.permute.xlu0 7
  %3670 = vperm.xlu0 %3669, %v3515
  %v3671 = vpop.permute.xlu0 %3670
  %3672 = vset.pattern.permute.xlu0 7
  %3673 = vperm.xlu0 %3672, %v3516
  %v3674 = vpop.permute.xlu0 %3673
  %3675 = vset.pattern.permute.xlu0 7
  %3676 = vperm.xlu0 %3675, %v3517
  %v3677 = vpop.permute.xlu0 %3676
  %3678 = vset.pattern.permute.xlu0 7
  %3679 = vperm.xlu0 %3678, %v3518
  %v3680 = vpop.permute.xlu0 %3679
  %3681 = vset.pattern.permute.xlu0 7
  %3682 = vperm.xlu0 %3681, %v3519
  %v3683 = vpop.permute.xlu0 %3682
  %3684 = vset.pattern.permute.xlu0 7
  %3685 = vperm.xlu0 %3684, %v3520
  %v3686 = vpop.permute.xlu0 %3685
  %3687 = vset.pattern.permute.xlu0 7
  %3688 = vperm.xlu0 %3687, %v3521
  %v3689 = vpop.permute.xlu0 %3688
  %3690 = vset.pattern.permute.xlu0 7
  %3691 = vperm.xlu0 %3690, %v3522
  %v3692 = vpop.permute.xlu0 %3691
  %3693 = vset.pattern.permute.xlu0 7
  %3694 = vperm.xlu0 %3693, %v3523
  %v3695 = vpop.permute.xlu0 %3694
  %3696 = vset.pattern.permute.xlu0 7
  %3697 = vperm.xlu0 %3696, %v3524
  %v3698 = vpop.permute.xlu0 %3697
  %3699 = vset.pattern.permute.xlu0 7
  %3700 = vperm.xlu0 %3699, %v3525
  %v3701 = vpop.permute.xlu0 %3700
  %3702 = vset.pattern.permute.xlu0 7
  %3703 = vperm.xlu0 %3702, %v3526
  %v3704 = vpop.permute.xlu0 %3703
  %3705 = vset.pattern.permute.xlu0 7
  %3706 = vperm.xlu0 %3705, %v3527
  %v3707 = vpop.permute.xlu0 %3706
  %3708 = vset.pattern.permute.xlu0 7
  %3709 = vperm.xlu0 %3708, %v3528
  %v3710 = vpop.permute.xlu0 %3709
  %3711 = vset.pattern.permute.xlu0 7
  %3712 = vperm.xlu0 %3711, %v3529
  %v3713 = vpop.permute.xlu0 %3712
  %3714 = vset.pattern.permute.xlu0 7
  %3715 = vperm.xlu0 %3714, %v3530
  %v3716 = vpop.permute.xlu0 %3715
  %3717 = vset.pattern.permute.xlu0 7
  %3718 = vperm.xlu0 %3717, %v3531
  %v3719 = vpop.permute.xlu0 %3718
  %3720 = vset.pattern.permute.xlu0 7
  %3721 = vperm.xlu0 %3720, %v3532
  %v3722 = vpop.permute.xlu0 %3721
  %3723 = vset.pattern.permute.xlu0 7
  %3724 = vperm.xlu0 %3723, %v3533
  %v3725 = vpop.permute.xlu0 %3724
  %vm3726 = vcmp.eq.s32.totalorder %v3536, %v76
  %vm3727 = vcmp.eq.s32.totalorder %v3536, %v77
  %vm3728 = vcmp.eq.s32.totalorder %v3539, %v76
  %vm3729 = vcmp.eq.s32.totalorder %v3539, %v77
  %vm3730 = vcmp.eq.s32.totalorder %v3542, %v76
  %vm3731 = vcmp.eq.s32.totalorder %v3542, %v77
  %vm3732 = vcmp.eq.s32.totalorder %v3545, %v76
  %vm3733 = vcmp.eq.s32.totalorder %v3545, %v77
  %vm3734 = vcmp.eq.s32.totalorder %v3548, %v76
  %vm3735 = vcmp.eq.s32.totalorder %v3548, %v77
  %vm3736 = vcmp.eq.s32.totalorder %v3551, %v76
  %vm3737 = vcmp.eq.s32.totalorder %v3551, %v77
  %vm3738 = vcmp.eq.s32.totalorder %v3554, %v76
  %vm3739 = vcmp.eq.s32.totalorder %v3554, %v77
  %vm3740 = vcmp.eq.s32.totalorder %v3557, %v76
  %vm3741 = vcmp.eq.s32.totalorder %v3557, %v77
  %vm3742 = vcmp.eq.s32.totalorder %v3560, %v76
  %vm3743 = vcmp.eq.s32.totalorder %v3560, %v77
  %vm3744 = vcmp.eq.s32.totalorder %v3563, %v76
  %vm3745 = vcmp.eq.s32.totalorder %v3563, %v77
  %vm3746 = vcmp.eq.s32.totalorder %v3566, %v76
  %vm3747 = vcmp.eq.s32.totalorder %v3566, %v77
  %vm3748 = vcmp.eq.s32.totalorder %v3569, %v76
  %vm3749 = vcmp.eq.s32.totalorder %v3569, %v77
  %vm3750 = vcmp.eq.s32.totalorder %v3572, %v76
  %vm3751 = vcmp.eq.s32.totalorder %v3572, %v77
  %vm3752 = vcmp.eq.s32.totalorder %v3575, %v76
  %vm3753 = vcmp.eq.s32.totalorder %v3575, %v77
  %vm3754 = vcmp.eq.s32.totalorder %v3578, %v76
  %vm3755 = vcmp.eq.s32.totalorder %v3578, %v77
  %vm3756 = vcmp.eq.s32.totalorder %v3581, %v76
  %vm3757 = vcmp.eq.s32.totalorder %v3581, %v77
  %vm3758 = vcmp.eq.s32.totalorder %v3584, %v76
  %vm3759 = vcmp.eq.s32.totalorder %v3584, %v77
  %vm3760 = vcmp.eq.s32.totalorder %v3587, %v76
  %vm3761 = vcmp.eq.s32.totalorder %v3587, %v77
  %vm3762 = vcmp.eq.s32.totalorder %v3590, %v76
  %vm3763 = vcmp.eq.s32.totalorder %v3590, %v77
  %vm3764 = vcmp.eq.s32.totalorder %v3593, %v76
  %vm3765 = vcmp.eq.s32.totalorder %v3593, %v77
  %vm3766 = vcmp.eq.s32.totalorder %v3596, %v76
  %vm3767 = vcmp.eq.s32.totalorder %v3596, %v77
  %vm3768 = vcmp.eq.s32.totalorder %v3599, %v76
  %vm3769 = vcmp.eq.s32.totalorder %v3599, %v77
  %vm3770 = vcmp.eq.s32.totalorder %v3602, %v76
  %vm3771 = vcmp.eq.s32.totalorder %v3602, %v77
  %vm3772 = vcmp.eq.s32.totalorder %v3605, %v76
  %vm3773 = vcmp.eq.s32.totalorder %v3605, %v77
  %vm3774 = vcmp.eq.s32.totalorder %v3608, %v76
  %vm3775 = vcmp.eq.s32.totalorder %v3608, %v77
  %vm3776 = vcmp.eq.s32.totalorder %v3611, %v76
  %vm3777 = vcmp.eq.s32.totalorder %v3611, %v77
  %vm3778 = vcmp.eq.s32.totalorder %v3614, %v76
  %vm3779 = vcmp.eq.s32.totalorder %v3614, %v77
  %vm3780 = vcmp.eq.s32.totalorder %v3617, %v76
  %vm3781 = vcmp.eq.s32.totalorder %v3617, %v77
  %vm3782 = vcmp.eq.s32.totalorder %v3620, %v76
  %vm3783 = vcmp.eq.s32.totalorder %v3620, %v77
  %vm3784 = vcmp.eq.s32.totalorder %v3623, %v76
  %vm3785 = vcmp.eq.s32.totalorder %v3623, %v77
  %vm3786 = vcmp.eq.s32.totalorder %v3626, %v76
  %vm3787 = vcmp.eq.s32.totalorder %v3626, %v77
  %vm3788 = vcmp.eq.s32.totalorder %v3629, %v76
  %vm3789 = vcmp.eq.s32.totalorder %v3629, %v77
  %vm3790 = vcmp.eq.s32.totalorder %v3632, %v76
  %vm3791 = vcmp.eq.s32.totalorder %v3632, %v77
  %vm3792 = vcmp.eq.s32.totalorder %v3635, %v76
  %vm3793 = vcmp.eq.s32.totalorder %v3635, %v77
  %vm3794 = vcmp.eq.s32.totalorder %v3638, %v76
  %vm3795 = vcmp.eq.s32.totalorder %v3638, %v77
  %vm3796 = vcmp.eq.s32.totalorder %v3641, %v76
  %vm3797 = vcmp.eq.s32.totalorder %v3641, %v77
  %vm3798 = vcmp.eq.s32.totalorder %v3644, %v76
  %vm3799 = vcmp.eq.s32.totalorder %v3644, %v77
  %vm3800 = vcmp.eq.s32.totalorder %v3647, %v76
  %vm3801 = vcmp.eq.s32.totalorder %v3647, %v77
  %vm3802 = vcmp.eq.s32.totalorder %v3650, %v76
  %vm3803 = vcmp.eq.s32.totalorder %v3650, %v77
  %vm3804 = vcmp.eq.s32.totalorder %v3653, %v76
  %vm3805 = vcmp.eq.s32.totalorder %v3653, %v77
  %vm3806 = vcmp.eq.s32.totalorder %v3656, %v76
  %vm3807 = vcmp.eq.s32.totalorder %v3656, %v77
  %vm3808 = vcmp.eq.s32.totalorder %v3659, %v76
  %vm3809 = vcmp.eq.s32.totalorder %v3659, %v77
  %vm3810 = vcmp.eq.s32.totalorder %v3662, %v76
  %vm3811 = vcmp.eq.s32.totalorder %v3662, %v77
  %vm3812 = vcmp.eq.s32.totalorder %v3665, %v76
  %vm3813 = vcmp.eq.s32.totalorder %v3665, %v77
  %vm3814 = vcmp.eq.s32.totalorder %v3668, %v76
  %vm3815 = vcmp.eq.s32.totalorder %v3668, %v77
  %vm3816 = vcmp.eq.s32.totalorder %v3671, %v76
  %vm3817 = vcmp.eq.s32.totalorder %v3671, %v77
  %vm3818 = vcmp.eq.s32.totalorder %v3674, %v76
  %vm3819 = vcmp.eq.s32.totalorder %v3674, %v77
  %vm3820 = vcmp.eq.s32.totalorder %v3677, %v76
  %vm3821 = vcmp.eq.s32.totalorder %v3677, %v77
  %vm3822 = vcmp.eq.s32.totalorder %v3680, %v76
  %vm3823 = vcmp.eq.s32.totalorder %v3680, %v77
  %vm3824 = vcmp.eq.s32.totalorder %v3683, %v76
  %vm3825 = vcmp.eq.s32.totalorder %v3683, %v77
  %vm3826 = vcmp.eq.s32.totalorder %v3686, %v76
  %vm3827 = vcmp.eq.s32.totalorder %v3686, %v77
  %vm3828 = vcmp.eq.s32.totalorder %v3689, %v76
  %vm3829 = vcmp.eq.s32.totalorder %v3689, %v77
  %vm3830 = vcmp.eq.s32.totalorder %v3692, %v76
  %vm3831 = vcmp.eq.s32.totalorder %v3692, %v77
  %vm3832 = vcmp.eq.s32.totalorder %v3695, %v76
  %vm3833 = vcmp.eq.s32.totalorder %v3695, %v77
  %vm3834 = vcmp.eq.s32.totalorder %v3698, %v76
  %vm3835 = vcmp.eq.s32.totalorder %v3698, %v77
  %vm3836 = vcmp.eq.s32.totalorder %v3701, %v76
  %vm3837 = vcmp.eq.s32.totalorder %v3701, %v77
  %vm3838 = vcmp.eq.s32.totalorder %v3704, %v76
  %vm3839 = vcmp.eq.s32.totalorder %v3704, %v77
  %vm3840 = vcmp.eq.s32.totalorder %v3707, %v76
  %vm3841 = vcmp.eq.s32.totalorder %v3707, %v77
  %vm3842 = vcmp.eq.s32.totalorder %v3710, %v76
  %vm3843 = vcmp.eq.s32.totalorder %v3710, %v77
  %vm3844 = vcmp.eq.s32.totalorder %v3713, %v76
  %vm3845 = vcmp.eq.s32.totalorder %v3713, %v77
  %vm3846 = vcmp.eq.s32.totalorder %v3716, %v76
  %vm3847 = vcmp.eq.s32.totalorder %v3716, %v77
  %vm3848 = vcmp.eq.s32.totalorder %v3719, %v76
  %vm3849 = vcmp.eq.s32.totalorder %v3719, %v77
  %vm3850 = vcmp.eq.s32.totalorder %v3722, %v76
  %vm3851 = vcmp.eq.s32.totalorder %v3722, %v77
  %vm3852 = vcmp.eq.s32.totalorder %v3725, %v76
  %vm3853 = vcmp.eq.s32.totalorder %v3725, %v77
  %vm3854 = vmor %vm3342, %vm3726
  %vm3855 = vmor %vm3343, %vm3727
  %vm3856 = vmor %vm3344, %vm3728
  %vm3857 = vmor %vm3345, %vm3729
  %vm3858 = vmor %vm3346, %vm3730
  %vm3859 = vmor %vm3347, %vm3731
  %vm3860 = vmor %vm3348, %vm3732
  %vm3861 = vmor %vm3349, %vm3733
  %vm3862 = vmor %vm3350, %vm3734
  %vm3863 = vmor %vm3351, %vm3735
  %vm3864 = vmor %vm3352, %vm3736
  %vm3865 = vmor %vm3353, %vm3737
  %vm3866 = vmor %vm3354, %vm3738
  %vm3867 = vmor %vm3355, %vm3739
  %vm3868 = vmor %vm3356, %vm3740
  %vm3869 = vmor %vm3357, %vm3741
  %vm3870 = vmor %vm3358, %vm3742
  %vm3871 = vmor %vm3359, %vm3743
  %vm3872 = vmor %vm3360, %vm3744
  %vm3873 = vmor %vm3361, %vm3745
  %vm3874 = vmor %vm3362, %vm3746
  %vm3875 = vmor %vm3363, %vm3747
  %vm3876 = vmor %vm3364, %vm3748
  %vm3877 = vmor %vm3365, %vm3749
  %vm3878 = vmor %vm3366, %vm3750
  %vm3879 = vmor %vm3367, %vm3751
  %vm3880 = vmor %vm3368, %vm3752
  %vm3881 = vmor %vm3369, %vm3753
  %vm3882 = vmor %vm3370, %vm3754
  %vm3883 = vmor %vm3371, %vm3755
  %vm3884 = vmor %vm3372, %vm3756
  %vm3885 = vmor %vm3373, %vm3757
  %vm3886 = vmor %vm3374, %vm3758
  %vm3887 = vmor %vm3375, %vm3759
  %vm3888 = vmor %vm3376, %vm3760
  %vm3889 = vmor %vm3377, %vm3761
  %vm3890 = vmor %vm3378, %vm3762
  %vm3891 = vmor %vm3379, %vm3763
  %vm3892 = vmor %vm3380, %vm3764
  %vm3893 = vmor %vm3381, %vm3765
  %vm3894 = vmor %vm3382, %vm3766
  %vm3895 = vmor %vm3383, %vm3767
  %vm3896 = vmor %vm3384, %vm3768
  %vm3897 = vmor %vm3385, %vm3769
  %vm3898 = vmor %vm3386, %vm3770
  %vm3899 = vmor %vm3387, %vm3771
  %vm3900 = vmor %vm3388, %vm3772
  %vm3901 = vmor %vm3389, %vm3773
  %vm3902 = vmor %vm3390, %vm3774
  %vm3903 = vmor %vm3391, %vm3775
  %vm3904 = vmor %vm3392, %vm3776
  %vm3905 = vmor %vm3393, %vm3777
  %vm3906 = vmor %vm3394, %vm3778
  %vm3907 = vmor %vm3395, %vm3779
  %vm3908 = vmor %vm3396, %vm3780
  %vm3909 = vmor %vm3397, %vm3781
  %vm3910 = vmor %vm3398, %vm3782
  %vm3911 = vmor %vm3399, %vm3783
  %vm3912 = vmor %vm3400, %vm3784
  %vm3913 = vmor %vm3401, %vm3785
  %vm3914 = vmor %vm3402, %vm3786
  %vm3915 = vmor %vm3403, %vm3787
  %vm3916 = vmor %vm3404, %vm3788
  %vm3917 = vmor %vm3405, %vm3789
  %vm3918 = vmor %vm3406, %vm3790
  %vm3919 = vmor %vm3407, %vm3791
  %vm3920 = vmor %vm3408, %vm3792
  %vm3921 = vmor %vm3409, %vm3793
  %vm3922 = vmor %vm3410, %vm3794
  %vm3923 = vmor %vm3411, %vm3795
  %vm3924 = vmor %vm3412, %vm3796
  %vm3925 = vmor %vm3413, %vm3797
  %vm3926 = vmor %vm3414, %vm3798
  %vm3927 = vmor %vm3415, %vm3799
  %vm3928 = vmor %vm3416, %vm3800
  %vm3929 = vmor %vm3417, %vm3801
  %vm3930 = vmor %vm3418, %vm3802
  %vm3931 = vmor %vm3419, %vm3803
  %vm3932 = vmor %vm3420, %vm3804
  %vm3933 = vmor %vm3421, %vm3805
  %vm3934 = vmor %vm3422, %vm3806
  %vm3935 = vmor %vm3423, %vm3807
  %vm3936 = vmor %vm3424, %vm3808
  %vm3937 = vmor %vm3425, %vm3809
  %vm3938 = vmor %vm3426, %vm3810
  %vm3939 = vmor %vm3427, %vm3811
  %vm3940 = vmor %vm3428, %vm3812
  %vm3941 = vmor %vm3429, %vm3813
  %vm3942 = vmor %vm3430, %vm3814
  %vm3943 = vmor %vm3431, %vm3815
  %vm3944 = vmor %vm3432, %vm3816
  %vm3945 = vmor %vm3433, %vm3817
  %vm3946 = vmor %vm3434, %vm3818
  %vm3947 = vmor %vm3435, %vm3819
  %vm3948 = vmor %vm3436, %vm3820
  %vm3949 = vmor %vm3437, %vm3821
  %vm3950 = vmor %vm3438, %vm3822
  %vm3951 = vmor %vm3439, %vm3823
  %vm3952 = vmor %vm3440, %vm3824
  %vm3953 = vmor %vm3441, %vm3825
  %vm3954 = vmor %vm3442, %vm3826
  %vm3955 = vmor %vm3443, %vm3827
  %vm3956 = vmor %vm3444, %vm3828
  %vm3957 = vmor %vm3445, %vm3829
  %vm3958 = vmor %vm3446, %vm3830
  %vm3959 = vmor %vm3447, %vm3831
  %vm3960 = vmor %vm3448, %vm3832
  %vm3961 = vmor %vm3449, %vm3833
  %vm3962 = vmor %vm3450, %vm3834
  %vm3963 = vmor %vm3451, %vm3835
  %vm3964 = vmor %vm3452, %vm3836
  %vm3965 = vmor %vm3453, %vm3837
  %vm3966 = vmor %vm3454, %vm3838
  %vm3967 = vmor %vm3455, %vm3839
  %vm3968 = vmor %vm3456, %vm3840
  %vm3969 = vmor %vm3457, %vm3841
  %vm3970 = vmor %vm3458, %vm3842
  %vm3971 = vmor %vm3459, %vm3843
  %vm3972 = vmor %vm3460, %vm3844
  %vm3973 = vmor %vm3461, %vm3845
  %vm3974 = vmor %vm3462, %vm3846
  %vm3975 = vmor %vm3463, %vm3847
  %vm3976 = vmor %vm3464, %vm3848
  %vm3977 = vmor %vm3465, %vm3849
  %vm3978 = vmor %vm3466, %vm3850
  %vm3979 = vmor %vm3467, %vm3851
  %vm3980 = vmor %vm3468, %vm3852
  %vm3981 = vmor %vm3469, %vm3853
  %v3982 = vadd.s32 %v11, 172
  %v3983 = vadd.s32 %v12, 172
  %v3984 = vadd.s32 %v13, 172
  %v3985 = vadd.s32 %v14, 172
  %v3986 = vadd.s32 %v15, 172
  %v3987 = vadd.s32 %v16, 172
  %v3988 = vadd.s32 %v17, 172
  %v3989 = vadd.s32 %v18, 172
  %v3990 = vadd.s32 %v19, 172
  %v3991 = vadd.s32 %v20, 172
  %v3992 = vadd.s32 %v21, 172
  %v3993 = vadd.s32 %v22, 172
  %v3994 = vadd.s32 %v23, 172
  %v3995 = vadd.s32 %v24, 172
  %v3996 = vadd.s32 %v25, 172
  %v3997 = vadd.s32 %v26, 172
  %v3998 = vadd.s32 %v27, 172
  %v3999 = vadd.s32 %v28, 172
  %v4000 = vadd.s32 %v29, 172
  %v4001 = vadd.s32 %v30, 172
  %v4002 = vadd.s32 %v31, 172
  %v4003 = vadd.s32 %v32, 172
  %v4004 = vadd.s32 %v33, 172
  %v4005 = vadd.s32 %v34, 172
  %v4006 = vadd.s32 %v35, 172
  %v4007 = vadd.s32 %v36, 172
  %v4008 = vadd.s32 %v37, 172
  %v4009 = vadd.s32 %v38, 172
  %v4010 = vadd.s32 %v39, 172
  %v4011 = vadd.s32 %v40, 172
  %v4012 = vadd.s32 %v41, 172
  %v4013 = vadd.s32 %v42, 172
  %v4014 = vadd.s32 %v43, 172
  %v4015 = vadd.s32 %v44, 172
  %v4016 = vadd.s32 %v45, 172
  %v4017 = vadd.s32 %v46, 172
  %v4018 = vadd.s32 %v47, 172
  %v4019 = vadd.s32 %v48, 172
  %v4020 = vadd.s32 %v49, 172
  %v4021 = vadd.s32 %v50, 172
  %v4022 = vadd.s32 %v51, 172
  %v4023 = vadd.s32 %v52, 172
  %v4024 = vadd.s32 %v53, 172
  %v4025 = vadd.s32 %v54, 172
  %v4026 = vadd.s32 %v55, 172
  %v4027 = vadd.s32 %v56, 172
  %v4028 = vadd.s32 %v57, 172
  %v4029 = vadd.s32 %v58, 172
  %v4030 = vadd.s32 %v59, 172
  %v4031 = vadd.s32 %v60, 172
  %v4032 = vadd.s32 %v61, 172
  %v4033 = vadd.s32 %v62, 172
  %v4034 = vadd.s32 %v63, 172
  %v4035 = vadd.s32 %v64, 172
  %v4036 = vadd.s32 %v65, 172
  %v4037 = vadd.s32 %v66, 172
  %v4038 = vadd.s32 %v67, 172
  %v4039 = vadd.s32 %v68, 172
  %v4040 = vadd.s32 %v69, 172
  %v4041 = vadd.s32 %v70, 172
  %v4042 = vadd.s32 %v71, 172
  %v4043 = vadd.s32 %v72, 172
  %v4044 = vadd.s32 %v73, 172
  %v4045 = vadd.s32 %v74, 172
  %4046 = vset.pattern.permute.xlu0 8
  %4047 = vperm.xlu0 %4046, %v3982
  %v4048 = vpop.permute.xlu0 %4047
  %4049 = vset.pattern.permute.xlu0 8
  %4050 = vperm.xlu0 %4049, %v3983
  %v4051 = vpop.permute.xlu0 %4050
  %4052 = vset.pattern.permute.xlu0 8
  %4053 = vperm.xlu0 %4052, %v3984
  %v4054 = vpop.permute.xlu0 %4053
  %4055 = vset.pattern.permute.xlu0 8
  %4056 = vperm.xlu0 %4055, %v3985
  %v4057 = vpop.permute.xlu0 %4056
  %4058 = vset.pattern.permute.xlu0 8
  %4059 = vperm.xlu0 %4058, %v3986
  %v4060 = vpop.permute.xlu0 %4059
  %4061 = vset.pattern.permute.xlu0 8
  %4062 = vperm.xlu0 %4061, %v3987
  %v4063 = vpop.permute.xlu0 %4062
  %4064 = vset.pattern.permute.xlu0 8
  %4065 = vperm.xlu0 %4064, %v3988
  %v4066 = vpop.permute.xlu0 %4065
  %4067 = vset.pattern.permute.xlu0 8
  %4068 = vperm.xlu0 %4067, %v3989
  %v4069 = vpop.permute.xlu0 %4068
  %4070 = vset.pattern.permute.xlu0 8
  %4071 = vperm.xlu0 %4070, %v3990
  %v4072 = vpop.permute.xlu0 %4071
  %4073 = vset.pattern.permute.xlu0 8
  %4074 = vperm.xlu0 %4073, %v3991
  %v4075 = vpop.permute.xlu0 %4074
  %4076 = vset.pattern.permute.xlu0 8
  %4077 = vperm.xlu0 %4076, %v3992
  %v4078 = vpop.permute.xlu0 %4077
  %4079 = vset.pattern.permute.xlu0 8
  %4080 = vperm.xlu0 %4079, %v3993
  %v4081 = vpop.permute.xlu0 %4080
  %4082 = vset.pattern.permute.xlu0 8
  %4083 = vperm.xlu0 %4082, %v3994
  %v4084 = vpop.permute.xlu0 %4083
  %4085 = vset.pattern.permute.xlu0 8
  %4086 = vperm.xlu0 %4085, %v3995
  %v4087 = vpop.permute.xlu0 %4086
  %4088 = vset.pattern.permute.xlu0 8
  %4089 = vperm.xlu0 %4088, %v3996
  %v4090 = vpop.permute.xlu0 %4089
  %4091 = vset.pattern.permute.xlu0 8
  %4092 = vperm.xlu0 %4091, %v3997
  %v4093 = vpop.permute.xlu0 %4092
  %4094 = vset.pattern.permute.xlu0 8
  %4095 = vperm.xlu0 %4094, %v3998
  %v4096 = vpop.permute.xlu0 %4095
  %4097 = vset.pattern.permute.xlu0 8
  %4098 = vperm.xlu0 %4097, %v3999
  %v4099 = vpop.permute.xlu0 %4098
  %4100 = vset.pattern.permute.xlu0 8
  %4101 = vperm.xlu0 %4100, %v4000
  %v4102 = vpop.permute.xlu0 %4101
  %4103 = vset.pattern.permute.xlu0 8
  %4104 = vperm.xlu0 %4103, %v4001
  %v4105 = vpop.permute.xlu0 %4104
  %4106 = vset.pattern.permute.xlu0 8
  %4107 = vperm.xlu0 %4106, %v4002
  %v4108 = vpop.permute.xlu0 %4107
  %4109 = vset.pattern.permute.xlu0 8
  %4110 = vperm.xlu0 %4109, %v4003
  %v4111 = vpop.permute.xlu0 %4110
  %4112 = vset.pattern.permute.xlu0 8
  %4113 = vperm.xlu0 %4112, %v4004
  %v4114 = vpop.permute.xlu0 %4113
  %4115 = vset.pattern.permute.xlu0 8
  %4116 = vperm.xlu0 %4115, %v4005
  %v4117 = vpop.permute.xlu0 %4116
  %4118 = vset.pattern.permute.xlu0 8
  %4119 = vperm.xlu0 %4118, %v4006
  %v4120 = vpop.permute.xlu0 %4119
  %4121 = vset.pattern.permute.xlu0 8
  %4122 = vperm.xlu0 %4121, %v4007
  %v4123 = vpop.permute.xlu0 %4122
  %4124 = vset.pattern.permute.xlu0 8
  %4125 = vperm.xlu0 %4124, %v4008
  %v4126 = vpop.permute.xlu0 %4125
  %4127 = vset.pattern.permute.xlu0 8
  %4128 = vperm.xlu0 %4127, %v4009
  %v4129 = vpop.permute.xlu0 %4128
  %4130 = vset.pattern.permute.xlu0 8
  %4131 = vperm.xlu0 %4130, %v4010
  %v4132 = vpop.permute.xlu0 %4131
  %4133 = vset.pattern.permute.xlu0 8
  %4134 = vperm.xlu0 %4133, %v4011
  %v4135 = vpop.permute.xlu0 %4134
  %4136 = vset.pattern.permute.xlu0 8
  %4137 = vperm.xlu0 %4136, %v4012
  %v4138 = vpop.permute.xlu0 %4137
  %4139 = vset.pattern.permute.xlu0 8
  %4140 = vperm.xlu0 %4139, %v4013
  %v4141 = vpop.permute.xlu0 %4140
  %4142 = vset.pattern.permute.xlu0 8
  %4143 = vperm.xlu0 %4142, %v4014
  %v4144 = vpop.permute.xlu0 %4143
  %4145 = vset.pattern.permute.xlu0 8
  %4146 = vperm.xlu0 %4145, %v4015
  %v4147 = vpop.permute.xlu0 %4146
  %4148 = vset.pattern.permute.xlu0 8
  %4149 = vperm.xlu0 %4148, %v4016
  %v4150 = vpop.permute.xlu0 %4149
  %4151 = vset.pattern.permute.xlu0 8
  %4152 = vperm.xlu0 %4151, %v4017
  %v4153 = vpop.permute.xlu0 %4152
  %4154 = vset.pattern.permute.xlu0 8
  %4155 = vperm.xlu0 %4154, %v4018
  %v4156 = vpop.permute.xlu0 %4155
  %4157 = vset.pattern.permute.xlu0 8
  %4158 = vperm.xlu0 %4157, %v4019
  %v4159 = vpop.permute.xlu0 %4158
  %4160 = vset.pattern.permute.xlu0 8
  %4161 = vperm.xlu0 %4160, %v4020
  %v4162 = vpop.permute.xlu0 %4161
  %4163 = vset.pattern.permute.xlu0 8
  %4164 = vperm.xlu0 %4163, %v4021
  %v4165 = vpop.permute.xlu0 %4164
  %4166 = vset.pattern.permute.xlu0 8
  %4167 = vperm.xlu0 %4166, %v4022
  %v4168 = vpop.permute.xlu0 %4167
  %4169 = vset.pattern.permute.xlu0 8
  %4170 = vperm.xlu0 %4169, %v4023
  %v4171 = vpop.permute.xlu0 %4170
  %4172 = vset.pattern.permute.xlu0 8
  %4173 = vperm.xlu0 %4172, %v4024
  %v4174 = vpop.permute.xlu0 %4173
  %4175 = vset.pattern.permute.xlu0 8
  %4176 = vperm.xlu0 %4175, %v4025
  %v4177 = vpop.permute.xlu0 %4176
  %4178 = vset.pattern.permute.xlu0 8
  %4179 = vperm.xlu0 %4178, %v4026
  %v4180 = vpop.permute.xlu0 %4179
  %4181 = vset.pattern.permute.xlu0 8
  %4182 = vperm.xlu0 %4181, %v4027
  %v4183 = vpop.permute.xlu0 %4182
  %4184 = vset.pattern.permute.xlu0 8
  %4185 = vperm.xlu0 %4184, %v4028
  %v4186 = vpop.permute.xlu0 %4185
  %4187 = vset.pattern.permute.xlu0 8
  %4188 = vperm.xlu0 %4187, %v4029
  %v4189 = vpop.permute.xlu0 %4188
  %4190 = vset.pattern.permute.xlu0 8
  %4191 = vperm.xlu0 %4190, %v4030
  %v4192 = vpop.permute.xlu0 %4191
  %4193 = vset.pattern.permute.xlu0 8
  %4194 = vperm.xlu0 %4193, %v4031
  %v4195 = vpop.permute.xlu0 %4194
  %4196 = vset.pattern.permute.xlu0 8
  %4197 = vperm.xlu0 %4196, %v4032
  %v4198 = vpop.permute.xlu0 %4197
  %4199 = vset.pattern.permute.xlu0 8
  %4200 = vperm.xlu0 %4199, %v4033
  %v4201 = vpop.permute.xlu0 %4200
  %4202 = vset.pattern.permute.xlu0 8
  %4203 = vperm.xlu0 %4202, %v4034
  %v4204 = vpop.permute.xlu0 %4203
  %4205 = vset.pattern.permute.xlu0 8
  %4206 = vperm.xlu0 %4205, %v4035
  %v4207 = vpop.permute.xlu0 %4206
  %4208 = vset.pattern.permute.xlu0 8
  %4209 = vperm.xlu0 %4208, %v4036
  %v4210 = vpop.permute.xlu0 %4209
  %4211 = vset.pattern.permute.xlu0 8
  %4212 = vperm.xlu0 %4211, %v4037
  %v4213 = vpop.permute.xlu0 %4212
  %4214 = vset.pattern.permute.xlu0 8
  %4215 = vperm.xlu0 %4214, %v4038
  %v4216 = vpop.permute.xlu0 %4215
  %4217 = vset.pattern.permute.xlu0 8
  %4218 = vperm.xlu0 %4217, %v4039
  %v4219 = vpop.permute.xlu0 %4218
  %4220 = vset.pattern.permute.xlu0 8
  %4221 = vperm.xlu0 %4220, %v4040
  %v4222 = vpop.permute.xlu0 %4221
  %4223 = vset.pattern.permute.xlu0 8
  %4224 = vperm.xlu0 %4223, %v4041
  %v4225 = vpop.permute.xlu0 %4224
  %4226 = vset.pattern.permute.xlu0 8
  %4227 = vperm.xlu0 %4226, %v4042
  %v4228 = vpop.permute.xlu0 %4227
  %4229 = vset.pattern.permute.xlu0 8
  %4230 = vperm.xlu0 %4229, %v4043
  %v4231 = vpop.permute.xlu0 %4230
  %4232 = vset.pattern.permute.xlu0 8
  %4233 = vperm.xlu0 %4232, %v4044
  %v4234 = vpop.permute.xlu0 %4233
  %4235 = vset.pattern.permute.xlu0 8
  %4236 = vperm.xlu0 %4235, %v4045
  %v4237 = vpop.permute.xlu0 %4236
  %vm4238 = vcmp.eq.s32.totalorder %v4048, %v76
  %vm4239 = vcmp.eq.s32.totalorder %v4048, %v77
  %vm4240 = vcmp.eq.s32.totalorder %v4051, %v76
  %vm4241 = vcmp.eq.s32.totalorder %v4051, %v77
  %vm4242 = vcmp.eq.s32.totalorder %v4054, %v76
  %vm4243 = vcmp.eq.s32.totalorder %v4054, %v77
  %vm4244 = vcmp.eq.s32.totalorder %v4057, %v76
  %vm4245 = vcmp.eq.s32.totalorder %v4057, %v77
  %vm4246 = vcmp.eq.s32.totalorder %v4060, %v76
  %vm4247 = vcmp.eq.s32.totalorder %v4060, %v77
  %vm4248 = vcmp.eq.s32.totalorder %v4063, %v76
  %vm4249 = vcmp.eq.s32.totalorder %v4063, %v77
  %vm4250 = vcmp.eq.s32.totalorder %v4066, %v76
  %vm4251 = vcmp.eq.s32.totalorder %v4066, %v77
  %vm4252 = vcmp.eq.s32.totalorder %v4069, %v76
  %vm4253 = vcmp.eq.s32.totalorder %v4069, %v77
  %vm4254 = vcmp.eq.s32.totalorder %v4072, %v76
  %vm4255 = vcmp.eq.s32.totalorder %v4072, %v77
  %vm4256 = vcmp.eq.s32.totalorder %v4075, %v76
  %vm4257 = vcmp.eq.s32.totalorder %v4075, %v77
  %vm4258 = vcmp.eq.s32.totalorder %v4078, %v76
  %vm4259 = vcmp.eq.s32.totalorder %v4078, %v77
  %vm4260 = vcmp.eq.s32.totalorder %v4081, %v76
  %vm4261 = vcmp.eq.s32.totalorder %v4081, %v77
  %vm4262 = vcmp.eq.s32.totalorder %v4084, %v76
  %vm4263 = vcmp.eq.s32.totalorder %v4084, %v77
  %vm4264 = vcmp.eq.s32.totalorder %v4087, %v76
  %vm4265 = vcmp.eq.s32.totalorder %v4087, %v77
  %vm4266 = vcmp.eq.s32.totalorder %v4090, %v76
  %vm4267 = vcmp.eq.s32.totalorder %v4090, %v77
  %vm4268 = vcmp.eq.s32.totalorder %v4093, %v76
  %vm4269 = vcmp.eq.s32.totalorder %v4093, %v77
  %vm4270 = vcmp.eq.s32.totalorder %v4096, %v76
  %vm4271 = vcmp.eq.s32.totalorder %v4096, %v77
  %vm4272 = vcmp.eq.s32.totalorder %v4099, %v76
  %vm4273 = vcmp.eq.s32.totalorder %v4099, %v77
  %vm4274 = vcmp.eq.s32.totalorder %v4102, %v76
  %vm4275 = vcmp.eq.s32.totalorder %v4102, %v77
  %vm4276 = vcmp.eq.s32.totalorder %v4105, %v76
  %vm4277 = vcmp.eq.s32.totalorder %v4105, %v77
  %vm4278 = vcmp.eq.s32.totalorder %v4108, %v76
  %vm4279 = vcmp.eq.s32.totalorder %v4108, %v77
  %vm4280 = vcmp.eq.s32.totalorder %v4111, %v76
  %vm4281 = vcmp.eq.s32.totalorder %v4111, %v77
  %vm4282 = vcmp.eq.s32.totalorder %v4114, %v76
  %vm4283 = vcmp.eq.s32.totalorder %v4114, %v77
  %vm4284 = vcmp.eq.s32.totalorder %v4117, %v76
  %vm4285 = vcmp.eq.s32.totalorder %v4117, %v77
  %vm4286 = vcmp.eq.s32.totalorder %v4120, %v76
  %vm4287 = vcmp.eq.s32.totalorder %v4120, %v77
  %vm4288 = vcmp.eq.s32.totalorder %v4123, %v76
  %vm4289 = vcmp.eq.s32.totalorder %v4123, %v77
  %vm4290 = vcmp.eq.s32.totalorder %v4126, %v76
  %vm4291 = vcmp.eq.s32.totalorder %v4126, %v77
  %vm4292 = vcmp.eq.s32.totalorder %v4129, %v76
  %vm4293 = vcmp.eq.s32.totalorder %v4129, %v77
  %vm4294 = vcmp.eq.s32.totalorder %v4132, %v76
  %vm4295 = vcmp.eq.s32.totalorder %v4132, %v77
  %vm4296 = vcmp.eq.s32.totalorder %v4135, %v76
  %vm4297 = vcmp.eq.s32.totalorder %v4135, %v77
  %vm4298 = vcmp.eq.s32.totalorder %v4138, %v76
  %vm4299 = vcmp.eq.s32.totalorder %v4138, %v77
  %vm4300 = vcmp.eq.s32.totalorder %v4141, %v76
  %vm4301 = vcmp.eq.s32.totalorder %v4141, %v77
  %vm4302 = vcmp.eq.s32.totalorder %v4144, %v76
  %vm4303 = vcmp.eq.s32.totalorder %v4144, %v77
  %vm4304 = vcmp.eq.s32.totalorder %v4147, %v76
  %vm4305 = vcmp.eq.s32.totalorder %v4147, %v77
  %vm4306 = vcmp.eq.s32.totalorder %v4150, %v76
  %vm4307 = vcmp.eq.s32.totalorder %v4150, %v77
  %vm4308 = vcmp.eq.s32.totalorder %v4153, %v76
  %vm4309 = vcmp.eq.s32.totalorder %v4153, %v77
  %vm4310 = vcmp.eq.s32.totalorder %v4156, %v76
  %vm4311 = vcmp.eq.s32.totalorder %v4156, %v77
  %vm4312 = vcmp.eq.s32.totalorder %v4159, %v76
  %vm4313 = vcmp.eq.s32.totalorder %v4159, %v77
  %vm4314 = vcmp.eq.s32.totalorder %v4162, %v76
  %vm4315 = vcmp.eq.s32.totalorder %v4162, %v77
  %vm4316 = vcmp.eq.s32.totalorder %v4165, %v76
  %vm4317 = vcmp.eq.s32.totalorder %v4165, %v77
  %vm4318 = vcmp.eq.s32.totalorder %v4168, %v76
  %vm4319 = vcmp.eq.s32.totalorder %v4168, %v77
  %vm4320 = vcmp.eq.s32.totalorder %v4171, %v76
  %vm4321 = vcmp.eq.s32.totalorder %v4171, %v77
  %vm4322 = vcmp.eq.s32.totalorder %v4174, %v76
  %vm4323 = vcmp.eq.s32.totalorder %v4174, %v77
  %vm4324 = vcmp.eq.s32.totalorder %v4177, %v76
  %vm4325 = vcmp.eq.s32.totalorder %v4177, %v77
  %vm4326 = vcmp.eq.s32.totalorder %v4180, %v76
  %vm4327 = vcmp.eq.s32.totalorder %v4180, %v77
  %vm4328 = vcmp.eq.s32.totalorder %v4183, %v76
  %vm4329 = vcmp.eq.s32.totalorder %v4183, %v77
  %vm4330 = vcmp.eq.s32.totalorder %v4186, %v76
  %vm4331 = vcmp.eq.s32.totalorder %v4186, %v77
  %vm4332 = vcmp.eq.s32.totalorder %v4189, %v76
  %vm4333 = vcmp.eq.s32.totalorder %v4189, %v77
  %vm4334 = vcmp.eq.s32.totalorder %v4192, %v76
  %vm4335 = vcmp.eq.s32.totalorder %v4192, %v77
  %vm4336 = vcmp.eq.s32.totalorder %v4195, %v76
  %vm4337 = vcmp.eq.s32.totalorder %v4195, %v77
  %vm4338 = vcmp.eq.s32.totalorder %v4198, %v76
  %vm4339 = vcmp.eq.s32.totalorder %v4198, %v77
  %vm4340 = vcmp.eq.s32.totalorder %v4201, %v76
  %vm4341 = vcmp.eq.s32.totalorder %v4201, %v77
  %vm4342 = vcmp.eq.s32.totalorder %v4204, %v76
  %vm4343 = vcmp.eq.s32.totalorder %v4204, %v77
  %vm4344 = vcmp.eq.s32.totalorder %v4207, %v76
  %vm4345 = vcmp.eq.s32.totalorder %v4207, %v77
  %vm4346 = vcmp.eq.s32.totalorder %v4210, %v76
  %vm4347 = vcmp.eq.s32.totalorder %v4210, %v77
  %vm4348 = vcmp.eq.s32.totalorder %v4213, %v76
  %vm4349 = vcmp.eq.s32.totalorder %v4213, %v77
  %vm4350 = vcmp.eq.s32.totalorder %v4216, %v76
  %vm4351 = vcmp.eq.s32.totalorder %v4216, %v77
  %vm4352 = vcmp.eq.s32.totalorder %v4219, %v76
  %vm4353 = vcmp.eq.s32.totalorder %v4219, %v77
  %vm4354 = vcmp.eq.s32.totalorder %v4222, %v76
  %vm4355 = vcmp.eq.s32.totalorder %v4222, %v77
  %vm4356 = vcmp.eq.s32.totalorder %v4225, %v76
  %vm4357 = vcmp.eq.s32.totalorder %v4225, %v77
  %vm4358 = vcmp.eq.s32.totalorder %v4228, %v76
  %vm4359 = vcmp.eq.s32.totalorder %v4228, %v77
  %vm4360 = vcmp.eq.s32.totalorder %v4231, %v76
  %vm4361 = vcmp.eq.s32.totalorder %v4231, %v77
  %vm4362 = vcmp.eq.s32.totalorder %v4234, %v76
  %vm4363 = vcmp.eq.s32.totalorder %v4234, %v77
  %vm4364 = vcmp.eq.s32.totalorder %v4237, %v76
  %vm4365 = vcmp.eq.s32.totalorder %v4237, %v77
  %vm4366 = vmor %vm3854, %vm4238
  %vm4367 = vmor %vm3855, %vm4239
  %vm4368 = vmor %vm3856, %vm4240
  %vm4369 = vmor %vm3857, %vm4241
  %vm4370 = vmor %vm3858, %vm4242
  %vm4371 = vmor %vm3859, %vm4243
  %vm4372 = vmor %vm3860, %vm4244
  %vm4373 = vmor %vm3861, %vm4245
  %vm4374 = vmor %vm3862, %vm4246
  %vm4375 = vmor %vm3863, %vm4247
  %vm4376 = vmor %vm3864, %vm4248
  %vm4377 = vmor %vm3865, %vm4249
  %vm4378 = vmor %vm3866, %vm4250
  %vm4379 = vmor %vm3867, %vm4251
  %vm4380 = vmor %vm3868, %vm4252
  %vm4381 = vmor %vm3869, %vm4253
  %vm4382 = vmor %vm3870, %vm4254
  %vm4383 = vmor %vm3871, %vm4255
  %vm4384 = vmor %vm3872, %vm4256
  %vm4385 = vmor %vm3873, %vm4257
  %vm4386 = vmor %vm3874, %vm4258
  %vm4387 = vmor %vm3875, %vm4259
  %vm4388 = vmor %vm3876, %vm4260
  %vm4389 = vmor %vm3877, %vm4261
  %vm4390 = vmor %vm3878, %vm4262
  %vm4391 = vmor %vm3879, %vm4263
  %vm4392 = vmor %vm3880, %vm4264
  %vm4393 = vmor %vm3881, %vm4265
  %vm4394 = vmor %vm3882, %vm4266
  %vm4395 = vmor %vm3883, %vm4267
  %vm4396 = vmor %vm3884, %vm4268
  %vm4397 = vmor %vm3885, %vm4269
  %vm4398 = vmor %vm3886, %vm4270
  %vm4399 = vmor %vm3887, %vm4271
  %vm4400 = vmor %vm3888, %vm4272
  %vm4401 = vmor %vm3889, %vm4273
  %vm4402 = vmor %vm3890, %vm4274
  %vm4403 = vmor %vm3891, %vm4275
  %vm4404 = vmor %vm3892, %vm4276
  %vm4405 = vmor %vm3893, %vm4277
  %vm4406 = vmor %vm3894, %vm4278
  %vm4407 = vmor %vm3895, %vm4279
  %vm4408 = vmor %vm3896, %vm4280
  %vm4409 = vmor %vm3897, %vm4281
  %vm4410 = vmor %vm3898, %vm4282
  %vm4411 = vmor %vm3899, %vm4283
  %vm4412 = vmor %vm3900, %vm4284
  %vm4413 = vmor %vm3901, %vm4285
  %vm4414 = vmor %vm3902, %vm4286
  %vm4415 = vmor %vm3903, %vm4287
  %vm4416 = vmor %vm3904, %vm4288
  %vm4417 = vmor %vm3905, %vm4289
  %vm4418 = vmor %vm3906, %vm4290
  %vm4419 = vmor %vm3907, %vm4291
  %vm4420 = vmor %vm3908, %vm4292
  %vm4421 = vmor %vm3909, %vm4293
  %vm4422 = vmor %vm3910, %vm4294
  %vm4423 = vmor %vm3911, %vm4295
  %vm4424 = vmor %vm3912, %vm4296
  %vm4425 = vmor %vm3913, %vm4297
  %vm4426 = vmor %vm3914, %vm4298
  %vm4427 = vmor %vm3915, %vm4299
  %vm4428 = vmor %vm3916, %vm4300
  %vm4429 = vmor %vm3917, %vm4301
  %vm4430 = vmor %vm3918, %vm4302
  %vm4431 = vmor %vm3919, %vm4303
  %vm4432 = vmor %vm3920, %vm4304
  %vm4433 = vmor %vm3921, %vm4305
  %vm4434 = vmor %vm3922, %vm4306
  %vm4435 = vmor %vm3923, %vm4307
  %vm4436 = vmor %vm3924, %vm4308
  %vm4437 = vmor %vm3925, %vm4309
  %vm4438 = vmor %vm3926, %vm4310
  %vm4439 = vmor %vm3927, %vm4311
  %vm4440 = vmor %vm3928, %vm4312
  %vm4441 = vmor %vm3929, %vm4313
  %vm4442 = vmor %vm3930, %vm4314
  %vm4443 = vmor %vm3931, %vm4315
  %vm4444 = vmor %vm3932, %vm4316
  %vm4445 = vmor %vm3933, %vm4317
  %vm4446 = vmor %vm3934, %vm4318
  %vm4447 = vmor %vm3935, %vm4319
  %vm4448 = vmor %vm3936, %vm4320
  %vm4449 = vmor %vm3937, %vm4321
  %vm4450 = vmor %vm3938, %vm4322
  %vm4451 = vmor %vm3939, %vm4323
  %vm4452 = vmor %vm3940, %vm4324
  %vm4453 = vmor %vm3941, %vm4325
  %vm4454 = vmor %vm3942, %vm4326
  %vm4455 = vmor %vm3943, %vm4327
  %vm4456 = vmor %vm3944, %vm4328
  %vm4457 = vmor %vm3945, %vm4329
  %vm4458 = vmor %vm3946, %vm4330
  %vm4459 = vmor %vm3947, %vm4331
  %vm4460 = vmor %vm3948, %vm4332
  %vm4461 = vmor %vm3949, %vm4333
  %vm4462 = vmor %vm3950, %vm4334
  %vm4463 = vmor %vm3951, %vm4335
  %vm4464 = vmor %vm3952, %vm4336
  %vm4465 = vmor %vm3953, %vm4337
  %vm4466 = vmor %vm3954, %vm4338
  %vm4467 = vmor %vm3955, %vm4339
  %vm4468 = vmor %vm3956, %vm4340
  %vm4469 = vmor %vm3957, %vm4341
  %vm4470 = vmor %vm3958, %vm4342
  %vm4471 = vmor %vm3959, %vm4343
  %vm4472 = vmor %vm3960, %vm4344
  %vm4473 = vmor %vm3961, %vm4345
  %vm4474 = vmor %vm3962, %vm4346
  %vm4475 = vmor %vm3963, %vm4347
  %vm4476 = vmor %vm3964, %vm4348
  %vm4477 = vmor %vm3965, %vm4349
  %vm4478 = vmor %vm3966, %vm4350
  %vm4479 = vmor %vm3967, %vm4351
  %vm4480 = vmor %vm3968, %vm4352
  %vm4481 = vmor %vm3969, %vm4353
  %vm4482 = vmor %vm3970, %vm4354
  %vm4483 = vmor %vm3971, %vm4355
  %vm4484 = vmor %vm3972, %vm4356
  %vm4485 = vmor %vm3973, %vm4357
  %vm4486 = vmor %vm3974, %vm4358
  %vm4487 = vmor %vm3975, %vm4359
  %vm4488 = vmor %vm3976, %vm4360
  %vm4489 = vmor %vm3977, %vm4361
  %vm4490 = vmor %vm3978, %vm4362
  %vm4491 = vmor %vm3979, %vm4363
  %vm4492 = vmor %vm3980, %vm4364
  %vm4493 = vmor %vm3981, %vm4365
  %v4494 = vsel %vm4366, 1, 0
  %v4495 = vsel %vm4367, 1, 0
  %v4496 = vsel %vm4368, 1, 0
  %v4497 = vsel %vm4369, 1, 0
  %v4498 = vsel %vm4370, 1, 0
  %v4499 = vsel %vm4371, 1, 0
  %v4500 = vsel %vm4372, 1, 0
  %v4501 = vsel %vm4373, 1, 0
  %v4502 = vsel %vm4374, 1, 0
  %v4503 = vsel %vm4375, 1, 0
  %v4504 = vsel %vm4376, 1, 0
  %v4505 = vsel %vm4377, 1, 0
  %v4506 = vsel %vm4378, 1, 0
  %v4507 = vsel %vm4379, 1, 0
  %v4508 = vsel %vm4380, 1, 0
  %v4509 = vsel %vm4381, 1, 0
  %v4510 = vsel %vm4382, 1, 0
  %v4511 = vsel %vm4383, 1, 0
  %v4512 = vsel %vm4384, 1, 0
  %v4513 = vsel %vm4385, 1, 0
  %v4514 = vsel %vm4386, 1, 0
  %v4515 = vsel %vm4387, 1, 0
  %v4516 = vsel %vm4388, 1, 0
  %v4517 = vsel %vm4389, 1, 0
  %v4518 = vsel %vm4390, 1, 0
  %v4519 = vsel %vm4391, 1, 0
  %v4520 = vsel %vm4392, 1, 0
  %v4521 = vsel %vm4393, 1, 0
  %v4522 = vsel %vm4394, 1, 0
  %v4523 = vsel %vm4395, 1, 0
  %v4524 = vsel %vm4396, 1, 0
  %v4525 = vsel %vm4397, 1, 0
  %v4526 = vsel %vm4398, 1, 0
  %v4527 = vsel %vm4399, 1, 0
  %v4528 = vsel %vm4400, 1, 0
  %v4529 = vsel %vm4401, 1, 0
  %v4530 = vsel %vm4402, 1, 0
  %v4531 = vsel %vm4403, 1, 0
  %v4532 = vsel %vm4404, 1, 0
  %v4533 = vsel %vm4405, 1, 0
  %v4534 = vsel %vm4406, 1, 0
  %v4535 = vsel %vm4407, 1, 0
  %v4536 = vsel %vm4408, 1, 0
  %v4537 = vsel %vm4409, 1, 0
  %v4538 = vsel %vm4410, 1, 0
  %v4539 = vsel %vm4411, 1, 0
  %v4540 = vsel %vm4412, 1, 0
  %v4541 = vsel %vm4413, 1, 0
  %v4542 = vsel %vm4414, 1, 0
  %v4543 = vsel %vm4415, 1, 0
  %v4544 = vsel %vm4416, 1, 0
  %v4545 = vsel %vm4417, 1, 0
  %v4546 = vsel %vm4418, 1, 0
  %v4547 = vsel %vm4419, 1, 0
  %v4548 = vsel %vm4420, 1, 0
  %v4549 = vsel %vm4421, 1, 0
  %v4550 = vsel %vm4422, 1, 0
  %v4551 = vsel %vm4423, 1, 0
  %v4552 = vsel %vm4424, 1, 0
  %v4553 = vsel %vm4425, 1, 0
  %v4554 = vsel %vm4426, 1, 0
  %v4555 = vsel %vm4427, 1, 0
  %v4556 = vsel %vm4428, 1, 0
  %v4557 = vsel %vm4429, 1, 0
  %v4558 = vsel %vm4430, 1, 0
  %v4559 = vsel %vm4431, 1, 0
  %v4560 = vsel %vm4432, 1, 0
  %v4561 = vsel %vm4433, 1, 0
  %v4562 = vsel %vm4434, 1, 0
  %v4563 = vsel %vm4435, 1, 0
  %v4564 = vsel %vm4436, 1, 0
  %v4565 = vsel %vm4437, 1, 0
  %v4566 = vsel %vm4438, 1, 0
  %v4567 = vsel %vm4439, 1, 0
  %v4568 = vsel %vm4440, 1, 0
  %v4569 = vsel %vm4441, 1, 0
  %v4570 = vsel %vm4442, 1, 0
  %v4571 = vsel %vm4443, 1, 0
  %v4572 = vsel %vm4444, 1, 0
  %v4573 = vsel %vm4445, 1, 0
  %v4574 = vsel %vm4446, 1, 0
  %v4575 = vsel %vm4447, 1, 0
  %v4576 = vsel %vm4448, 1, 0
  %v4577 = vsel %vm4449, 1, 0
  %v4578 = vsel %vm4450, 1, 0
  %v4579 = vsel %vm4451, 1, 0
  %v4580 = vsel %vm4452, 1, 0
  %v4581 = vsel %vm4453, 1, 0
  %v4582 = vsel %vm4454, 1, 0
  %v4583 = vsel %vm4455, 1, 0
  %v4584 = vsel %vm4456, 1, 0
  %v4585 = vsel %vm4457, 1, 0
  %v4586 = vsel %vm4458, 1, 0
  %v4587 = vsel %vm4459, 1, 0
  %v4588 = vsel %vm4460, 1, 0
  %v4589 = vsel %vm4461, 1, 0
  %v4590 = vsel %vm4462, 1, 0
  %v4591 = vsel %vm4463, 1, 0
  %v4592 = vsel %vm4464, 1, 0
  %v4593 = vsel %vm4465, 1, 0
  %v4594 = vsel %vm4466, 1, 0
  %v4595 = vsel %vm4467, 1, 0
  %v4596 = vsel %vm4468, 1, 0
  %v4597 = vsel %vm4469, 1, 0
  %v4598 = vsel %vm4470, 1, 0
  %v4599 = vsel %vm4471, 1, 0
  %v4600 = vsel %vm4472, 1, 0
  %v4601 = vsel %vm4473, 1, 0
  %v4602 = vsel %vm4474, 1, 0
  %v4603 = vsel %vm4475, 1, 0
  %v4604 = vsel %vm4476, 1, 0
  %v4605 = vsel %vm4477, 1, 0
  %v4606 = vsel %vm4478, 1, 0
  %v4607 = vsel %vm4479, 1, 0
  %v4608 = vsel %vm4480, 1, 0
  %v4609 = vsel %vm4481, 1, 0
  %v4610 = vsel %vm4482, 1, 0
  %v4611 = vsel %vm4483, 1, 0
  %v4612 = vsel %vm4484, 1, 0
  %v4613 = vsel %vm4485, 1, 0
  %v4614 = vsel %vm4486, 1, 0
  %v4615 = vsel %vm4487, 1, 0
  %v4616 = vsel %vm4488, 1, 0
  %v4617 = vsel %vm4489, 1, 0
  %v4618 = vsel %vm4490, 1, 0
  %v4619 = vsel %vm4491, 1, 0
  %v4620 = vsel %vm4492, 1, 0
  %v4621 = vsel %vm4493, 1, 0
  %v4622 = vcvt.s32.f32 %v4494
  %v4623 = vcvt.s32.f32 %v4495
  %v4624 = vcvt.s32.f32 %v4496
  %v4625 = vcvt.s32.f32 %v4497
  %v4626 = vcvt.s32.f32 %v4498
  %v4627 = vcvt.s32.f32 %v4499
  %v4628 = vcvt.s32.f32 %v4500
  %v4629 = vcvt.s32.f32 %v4501
  %v4630 = vcvt.s32.f32 %v4502
  %v4631 = vcvt.s32.f32 %v4503
  %v4632 = vcvt.s32.f32 %v4504
  %v4633 = vcvt.s32.f32 %v4505
  %v4634 = vcvt.s32.f32 %v4506
  %v4635 = vcvt.s32.f32 %v4507
  %v4636 = vcvt.s32.f32 %v4508
  %v4637 = vcvt.s32.f32 %v4509
  %v4638 = vcvt.s32.f32 %v4510
  %v4639 = vcvt.s32.f32 %v4511
  %v4640 = vcvt.s32.f32 %v4512
  %v4641 = vcvt.s32.f32 %v4513
  %v4642 = vcvt.s32.f32 %v4514
  %v4643 = vcvt.s32.f32 %v4515
  %v4644 = vcvt.s32.f32 %v4516
  %v4645 = vcvt.s32.f32 %v4517
  %v4646 = vcvt.s32.f32 %v4518
  %v4647 = vcvt.s32.f32 %v4519
  %v4648 = vcvt.s32.f32 %v4520
  %v4649 = vcvt.s32.f32 %v4521
  %v4650 = vcvt.s32.f32 %v4522
  %v4651 = vcvt.s32.f32 %v4523
  %v4652 = vcvt.s32.f32 %v4524
  %v4653 = vcvt.s32.f32 %v4525
  %v4654 = vcvt.s32.f32 %v4526
  %v4655 = vcvt.s32.f32 %v4527
  %v4656 = vcvt.s32.f32 %v4528
  %v4657 = vcvt.s32.f32 %v4529
  %v4658 = vcvt.s32.f32 %v4530
  %v4659 = vcvt.s32.f32 %v4531
  %v4660 = vcvt.s32.f32 %v4532
  %v4661 = vcvt.s32.f32 %v4533
  %v4662 = vcvt.s32.f32 %v4534
  %v4663 = vcvt.s32.f32 %v4535
  %v4664 = vcvt.s32.f32 %v4536
  %v4665 = vcvt.s32.f32 %v4537
  %v4666 = vcvt.s32.f32 %v4538
  %v4667 = vcvt.s32.f32 %v4539
  %v4668 = vcvt.s32.f32 %v4540
  %v4669 = vcvt.s32.f32 %v4541
  %v4670 = vcvt.s32.f32 %v4542
  %v4671 = vcvt.s32.f32 %v4543
  %v4672 = vcvt.s32.f32 %v4544
  %v4673 = vcvt.s32.f32 %v4545
  %v4674 = vcvt.s32.f32 %v4546
  %v4675 = vcvt.s32.f32 %v4547
  %v4676 = vcvt.s32.f32 %v4548
  %v4677 = vcvt.s32.f32 %v4549
  %v4678 = vcvt.s32.f32 %v4550
  %v4679 = vcvt.s32.f32 %v4551
  %v4680 = vcvt.s32.f32 %v4552
  %v4681 = vcvt.s32.f32 %v4553
  %v4682 = vcvt.s32.f32 %v4554
  %v4683 = vcvt.s32.f32 %v4555
  %v4684 = vcvt.s32.f32 %v4556
  %v4685 = vcvt.s32.f32 %v4557
  %v4686 = vcvt.s32.f32 %v4558
  %v4687 = vcvt.s32.f32 %v4559
  %v4688 = vcvt.s32.f32 %v4560
  %v4689 = vcvt.s32.f32 %v4561
  %v4690 = vcvt.s32.f32 %v4562
  %v4691 = vcvt.s32.f32 %v4563
  %v4692 = vcvt.s32.f32 %v4564
  %v4693 = vcvt.s32.f32 %v4565
  %v4694 = vcvt.s32.f32 %v4566
  %v4695 = vcvt.s32.f32 %v4567
  %v4696 = vcvt.s32.f32 %v4568
  %v4697 = vcvt.s32.f32 %v4569
  %v4698 = vcvt.s32.f32 %v4570
  %v4699 = vcvt.s32.f32 %v4571
  %v4700 = vcvt.s32.f32 %v4572
  %v4701 = vcvt.s32.f32 %v4573
  %v4702 = vcvt.s32.f32 %v4574
  %v4703 = vcvt.s32.f32 %v4575
  %v4704 = vcvt.s32.f32 %v4576
  %v4705 = vcvt.s32.f32 %v4577
  %v4706 = vcvt.s32.f32 %v4578
  %v4707 = vcvt.s32.f32 %v4579
  %v4708 = vcvt.s32.f32 %v4580
  %v4709 = vcvt.s32.f32 %v4581
  %v4710 = vcvt.s32.f32 %v4582
  %v4711 = vcvt.s32.f32 %v4583
  %v4712 = vcvt.s32.f32 %v4584
  %v4713 = vcvt.s32.f32 %v4585
  %v4714 = vcvt.s32.f32 %v4586
  %v4715 = vcvt.s32.f32 %v4587
  %v4716 = vcvt.s32.f32 %v4588
  %v4717 = vcvt.s32.f32 %v4589
  %v4718 = vcvt.s32.f32 %v4590
  %v4719 = vcvt.s32.f32 %v4591
  %v4720 = vcvt.s32.f32 %v4592
  %v4721 = vcvt.s32.f32 %v4593
  %v4722 = vcvt.s32.f32 %v4594
  %v4723 = vcvt.s32.f32 %v4595
  %v4724 = vcvt.s32.f32 %v4596
  %v4725 = vcvt.s32.f32 %v4597
  %v4726 = vcvt.s32.f32 %v4598
  %v4727 = vcvt.s32.f32 %v4599
  %v4728 = vcvt.s32.f32 %v4600
  %v4729 = vcvt.s32.f32 %v4601
  %v4730 = vcvt.s32.f32 %v4602
  %v4731 = vcvt.s32.f32 %v4603
  %v4732 = vcvt.s32.f32 %v4604
  %v4733 = vcvt.s32.f32 %v4605
  %v4734 = vcvt.s32.f32 %v4606
  %v4735 = vcvt.s32.f32 %v4607
  %v4736 = vcvt.s32.f32 %v4608
  %v4737 = vcvt.s32.f32 %v4609
  %v4738 = vcvt.s32.f32 %v4610
  %v4739 = vcvt.s32.f32 %v4611
  %v4740 = vcvt.s32.f32 %v4612
  %v4741 = vcvt.s32.f32 %v4613
  %v4742 = vcvt.s32.f32 %v4614
  %v4743 = vcvt.s32.f32 %v4615
  %v4744 = vcvt.s32.f32 %v4616
  %v4745 = vcvt.s32.f32 %v4617
  %v4746 = vcvt.s32.f32 %v4618
  %v4747 = vcvt.s32.f32 %v4619
  %v4748 = vcvt.s32.f32 %v4620
  %v4749 = vcvt.s32.f32 %v4621
  %v4750 = vld [vmem:[%s1] sm:$0xff]
  %v4751 = vld [vmem:[%s1 + $0x8] sm:$0xff]
  %v4752 = vld [vmem:[%s1 + $0x10] sm:$0xff]
  %v4753 = vld [vmem:[%s1 + $0x18] sm:$0xff]
  %v4754 = vld [vmem:[%s1 + $0x20] sm:$0xff]
  %v4755 = vld [vmem:[%s1 + $0x28] sm:$0xff]
  %v4756 = vld [vmem:[%s1 + $0x30] sm:$0xff]
  %v4757 = vld [vmem:[%s1 + $0x38] sm:$0xff]
  %v4758 = vld [vmem:[%s1 + $0x40] sm:$0xff]
  %v4759 = vld [vmem:[%s1 + $0x48] sm:$0xff]
  %v4760 = vld [vmem:[%s1 + $0x50] sm:$0xff]
  %v4761 = vld [vmem:[%s1 + $0x58] sm:$0xff]
  %v4762 = vld [vmem:[%s1 + $0x60] sm:$0xff]
  %v4763 = vld [vmem:[%s1 + $0x68] sm:$0xff]
  %v4764 = vld [vmem:[%s1 + $0x70] sm:$0xff]
  %v4765 = vld [vmem:[%s1 + $0x78] sm:$0xff]
  %v4766 = vld [vmem:[%s1 + $0x80] sm:$0xff]
  %v4767 = vld [vmem:[%s1 + $0x88] sm:$0xff]
  %v4768 = vld [vmem:[%s1 + $0x90] sm:$0xff]
  %v4769 = vld [vmem:[%s1 + $0x98] sm:$0xff]
  %v4770 = vld [vmem:[%s1 + $0xa0] sm:$0xff]
  %v4771 = vld [vmem:[%s1 + $0xa8] sm:$0xff]
  %v4772 = vld [vmem:[%s1 + $0xb0] sm:$0xff]
  %v4773 = vld [vmem:[%s1 + $0xb8] sm:$0xff]
  %v4774 = vld [vmem:[%s1 + $0xc0] sm:$0xff]
  %v4775 = vld [vmem:[%s1 + $0xc8] sm:$0xff]
  %v4776 = vld [vmem:[%s1 + $0xd0] sm:$0xff]
  %v4777 = vld [vmem:[%s1 + $0xd8] sm:$0xff]
  %v4778 = vld [vmem:[%s1 + $0xe0] sm:$0xff]
  %v4779 = vld [vmem:[%s1 + $0xe8] sm:$0xff]
  %v4780 = vld [vmem:[%s1 + $0xf0] sm:$0xff]
  %v4781 = vld [vmem:[%s1 + $0xf8] sm:$0xff]
  %v4782 = vld [vmem:[%s1 + $0x100] sm:$0xff]
  %v4783 = vld [vmem:[%s1 + $0x108] sm:$0xff]
  %v4784 = vld [vmem:[%s1 + $0x110] sm:$0xff]
  %v4785 = vld [vmem:[%s1 + $0x118] sm:$0xff]
  %v4786 = vld [vmem:[%s1 + $0x120] sm:$0xff]
  %v4787 = vld [vmem:[%s1 + $0x128] sm:$0xff]
  %v4788 = vld [vmem:[%s1 + $0x130] sm:$0xff]
  %v4789 = vld [vmem:[%s1 + $0x138] sm:$0xff]
  %v4790 = vld [vmem:[%s1 + $0x140] sm:$0xff]
  %v4791 = vld [vmem:[%s1 + $0x148] sm:$0xff]
  %v4792 = vld [vmem:[%s1 + $0x150] sm:$0xff]
  %v4793 = vld [vmem:[%s1 + $0x158] sm:$0xff]
  %v4794 = vld [vmem:[%s1 + $0x160] sm:$0xff]
  %v4795 = vld [vmem:[%s1 + $0x168] sm:$0xff]
  %v4796 = vld [vmem:[%s1 + $0x170] sm:$0xff]
  %v4797 = vld [vmem:[%s1 + $0x178] sm:$0xff]
  %v4798 = vld [vmem:[%s1 + $0x180] sm:$0xff]
  %v4799 = vld [vmem:[%s1 + $0x188] sm:$0xff]
  %v4800 = vld [vmem:[%s1 + $0x190] sm:$0xff]
  %v4801 = vld [vmem:[%s1 + $0x198] sm:$0xff]
  %v4802 = vld [vmem:[%s1 + $0x1a0] sm:$0xff]
  %v4803 = vld [vmem:[%s1 + $0x1a8] sm:$0xff]
  %v4804 = vld [vmem:[%s1 + $0x1b0] sm:$0xff]
  %v4805 = vld [vmem:[%s1 + $0x1b8] sm:$0xff]
  %v4806 = vld [vmem:[%s1 + $0x1c0] sm:$0xff]
  %v4807 = vld [vmem:[%s1 + $0x1c8] sm:$0xff]
  %v4808 = vld [vmem:[%s1 + $0x1d0] sm:$0xff]
  %v4809 = vld [vmem:[%s1 + $0x1d8] sm:$0xff]
  %v4810 = vld [vmem:[%s1 + $0x1e0] sm:$0xff]
  %v4811 = vld [vmem:[%s1 + $0x1e8] sm:$0xff]
  %v4812 = vld [vmem:[%s1 + $0x1f0] sm:$0xff]
  %v4813 = vld [vmem:[%s1 + $0x1f8] sm:$0xff]
  %v4814 = vld [vmem:[%s1 + $0x200] sm:$0xff]
  %v4815 = vld [vmem:[%s1 + $0x208] sm:$0xff]
  %v4816 = vld [vmem:[%s1 + $0x210] sm:$0xff]
  %v4817 = vld [vmem:[%s1 + $0x218] sm:$0xff]
  %v4818 = vld [vmem:[%s1 + $0x220] sm:$0xff]
  %v4819 = vld [vmem:[%s1 + $0x228] sm:$0xff]
  %v4820 = vld [vmem:[%s1 + $0x230] sm:$0xff]
  %v4821 = vld [vmem:[%s1 + $0x238] sm:$0xff]
  %v4822 = vld [vmem:[%s1 + $0x240] sm:$0xff]
  %v4823 = vld [vmem:[%s1 + $0x248] sm:$0xff]
  %v4824 = vld [vmem:[%s1 + $0x250] sm:$0xff]
  %v4825 = vld [vmem:[%s1 + $0x258] sm:$0xff]
  %v4826 = vld [vmem:[%s1 + $0x260] sm:$0xff]
  %v4827 = vld [vmem:[%s1 + $0x268] sm:$0xff]
  %v4828 = vld [vmem:[%s1 + $0x270] sm:$0xff]
  %v4829 = vld [vmem:[%s1 + $0x278] sm:$0xff]
  %v4830 = vld [vmem:[%s1 + $0x280] sm:$0xff]
  %v4831 = vld [vmem:[%s1 + $0x288] sm:$0xff]
  %v4832 = vld [vmem:[%s1 + $0x290] sm:$0xff]
  %v4833 = vld [vmem:[%s1 + $0x298] sm:$0xff]
  %v4834 = vld [vmem:[%s1 + $0x2a0] sm:$0xff]
  %v4835 = vld [vmem:[%s1 + $0x2a8] sm:$0xff]
  %v4836 = vld [vmem:[%s1 + $0x2b0] sm:$0xff]
  %v4837 = vld [vmem:[%s1 + $0x2b8] sm:$0xff]
  %v4838 = vld [vmem:[%s1 + $0x2c0] sm:$0xff]
  %v4839 = vld [vmem:[%s1 + $0x2c8] sm:$0xff]
  %v4840 = vld [vmem:[%s1 + $0x2d0] sm:$0xff]
  %v4841 = vld [vmem:[%s1 + $0x2d8] sm:$0xff]
  %v4842 = vld [vmem:[%s1 + $0x2e0] sm:$0xff]
  %v4843 = vld [vmem:[%s1 + $0x2e8] sm:$0xff]
  %v4844 = vld [vmem:[%s1 + $0x2f0] sm:$0xff]
  %v4845 = vld [vmem:[%s1 + $0x2f8] sm:$0xff]
  %4846 = vmatprep.subr.mxu0 %v4751
  %4847 = vmatpush1.msra.mxu0 %v4750
  %4848 = vmatprep.subr.mxu0 %v4754
  %4849 = vmatpush1.msra.mxu0 %v4753
  %4850 = vmatprep.subr.mxu0 %v4757
  %4851 = vmatpush1.msra.mxu0 %v4756
  %4852 = vmatprep.subr.mxu0 %v4760
  %4853 = vmatpush1.msra.mxu0 %v4759
  %4854 = vmatprep.subr.mxu0 %v4763
  %4855 = vmatpush1.msra.mxu0 %v4762
  %4856 = vmatprep.subr.mxu0 %v4766
  %4857 = vmatpush1.msra.mxu0 %v4765
  %4858 = vmatprep.subr.mxu0 %v4769
  %4859 = vmatpush1.msra.mxu0 %v4768
  %4860 = vmatprep.subr.mxu0 %v4772
  %4861 = vmatpush1.msra.mxu0 %v4771
  %4862 = vmatprep.subr.mxu0 %v4775
  %4863 = vmatpush1.msra.mxu0 %v4774
  %4864 = vmatprep.subr.mxu0 %v4778
  %4865 = vmatpush1.msra.mxu0 %v4777
  %4866 = vmatprep.subr.mxu0 %v4781
  %4867 = vmatpush1.msra.mxu0 %v4780
  %4868 = vmatprep.subr.mxu0 %v4784
  %4869 = vmatpush1.msra.mxu0 %v4783
  %4870 = vmatprep.subr.mxu0 %v4787
  %4871 = vmatpush1.msra.mxu0 %v4786
  %4872 = vmatprep.subr.mxu0 %v4790
  %4873 = vmatpush1.msra.mxu0 %v4789
  %4874 = vmatprep.subr.mxu0 %v4793
  %4875 = vmatpush1.msra.mxu0 %v4792
  %4876 = vmatprep.subr.mxu0 %v4796
  %4877 = vmatpush1.msra.mxu0 %v4795
  %4878 = vmatprep.subr.mxu0 %v4799
  %4879 = vmatpush1.msra.mxu0 %v4798
  %4880 = vmatprep.subr.mxu0 %v4802
  %4881 = vmatpush1.msra.mxu0 %v4801
  %4882 = vmatprep.subr.mxu0 %v4805
  %4883 = vmatpush1.msra.mxu0 %v4804
  %4884 = vmatprep.subr.mxu0 %v4808
  %4885 = vmatpush1.msra.mxu0 %v4807
  %4886 = vmatprep.subr.mxu0 %v4811
  %4887 = vmatpush1.msra.mxu0 %v4810
  %4888 = vmatprep.subr.mxu0 %v4814
  %4889 = vmatpush1.msra.mxu0 %v4813
  %4890 = vmatprep.subr.mxu0 %v4817
  %4891 = vmatpush1.msra.mxu0 %v4816
  %4892 = vmatprep.subr.mxu0 %v4820
  %4893 = vmatpush1.msra.mxu0 %v4819
  %4894 = vmatprep.subr.mxu0 %v4823
  %4895 = vmatpush1.msra.mxu0 %v4822
  %4896 = vmatprep.subr.mxu0 %v4826
  %4897 = vmatpush1.msra.mxu0 %v4825
  %4898 = vmatprep.subr.mxu0 %v4829
  %4899 = vmatpush1.msra.mxu0 %v4828
  %4900 = vmatprep.subr.mxu0 %v4832
  %4901 = vmatpush1.msra.mxu0 %v4831
  %4902 = vmatprep.subr.mxu0 %v4835
  %4903 = vmatpush1.msra.mxu0 %v4834
  %4904 = vmatprep.subr.mxu0 %v4838
  %4905 = vmatpush1.msra.mxu0 %v4837
  %4906 = vmatprep.subr.mxu0 %v4841
  %4907 = vmatpush1.msra.mxu0 %v4840
  %4908 = vmatprep.subr.mxu0 %v4844
  %4909 = vmatpush1.msra.mxu0 %v4843
  %4910 = vmatprep.mubr.f32.mxu0 %v4623
  %4911 = vmatmul.mubr.f32.gmra.mrb[0].mxu0 %v4622
  %v4912 = vpop.f32.mrb[0].mxu0
  %v4913 = vadd.f32 0.0, %v4912
  %v4914 = vpop.f32.mrb[0].mxu0
  %v4915 = vadd.f32 0.0, %v4914
  %4916 = vmatprep.mubr.f32.mxu0 %v4625
  %4917 = vmatmul.mubr.f32.gmra.mrb[0].mxu0 %v4624
  %v4918 = vpop.f32.mrb[0].mxu0
  %v4919 = vadd.f32 0.0, %v4918
  %v4920 = vpop.f32.mrb[0].mxu0
  %v4921 = vadd.f32 0.0, %v4920
  %4922 = vmatprep.mubr.f32.mxu0 %v4627
  %4923 = vmatmul.mubr.f32.gmra.mrb[0].mxu0 %v4626
  %v4924 = vpop.f32.mrb[0].mxu0
  %v4925 = vadd.f32 0.0, %v4924
  %v4926 = vpop.f32.mrb[0].mxu0
  %v4927 = vadd.f32 0.0, %v4926
  %4928 = vmatprep.mubr.f32.mxu0 %v4629
  %4929 = vmatmul.mubr.f32.gmra.mrb[0].mxu0 %v4628
  %v4930 = vpop.f32.mrb[0].mxu0
  %v4931 = vadd.f32 0.0, %v4930
  %v4932 = vpop.f32.mrb[0].mxu0
  %v4933 = vadd.f32 0.0, %v4932
  %4934 = vmatprep.mubr.f32.mxu0 %v4631
  %4935 = vmatmul.mubr.f32.gmra.mrb[0].mxu0 %v4630
  %v4936 = vpop.f32.mrb[0].mxu0
  %v4937 = vadd.f32 0.0, %v4936
  %v4938 = vpop.f32.mrb[0].mxu0
  %v4939 = vadd.f32 0.0, %v4938
  %4940 = vmatprep.mubr.f32.mxu0 %v4633
  %4941 = vmatmul.mubr.f32.gmra.mrb[0].mxu0 %v4632
  %v4942 = vpop.f32.mrb[0].mxu0
  %v4943 = vadd.f32 0.0, %v4942
  %v4944 = vpop.f32.mrb[0].mxu0
  %v4945 = vadd.f32 0.0, %v4944
  %4946 = vmatprep.mubr.f32.mxu0 %v4635
  %4947 = vmatmul.mubr.f32.gmra.mrb[0].mxu0 %v4634
  %v4948 = vpop.f32.mrb[0].mxu0
  %v4949 = vadd.f32 0.0, %v4948
  %v4950 = vpop.f32.mrb[0].mxu0
  %v4951 = vadd.f32 0.0, %v4950
  %4952 = vmatprep.mubr.f32.mxu0 %v4637
  %4953 = vmatmul.mubr.f32.gmra.mrb[0].mxu0 %v4636
  %v4954 = vpop.f32.mrb[0].mxu0
  %v4955 = vadd.f32 0.0, %v4954
  %v4956 = vpop.f32.mrb[0].mxu0
  %v4957 = vadd.f32 0.0, %v4956
  %4958 = vmatprep.mubr.f32.mxu0 %v4639
  %4959 = vmatmul.mubr.f32.gmra.mrb[0].mxu0 %v4638
  %v4960 = vpop.f32.mrb[0].mxu0
  %v4961 = vadd.f32 0.0, %v4960
  %v4962 = vpop.f32.mrb[0].mxu0
  %v4963 = vadd.f32 0.0, %v4962
  %4964 = vmatprep.mubr.f32.mxu0 %v4641
  %4965 = vmatmul.mubr.f32.gmra.mrb[0].mxu0 %v4640
  %v4966 = vpop.f32.mrb[0].mxu0
  %v4967 = vadd.f32 0.0, %v4966
  %v4968 = vpop.f32.mrb[0].mxu0
  %v4969 = vadd.f32 0.0, %v4968
  %4970 = vmatprep.mubr.f32.mxu0 %v4643
  %4971 = vmatmul.mubr.f32.gmra.mrb[0].mxu0 %v4642
  %v4972 = vpop.f32.mrb[0].mxu0
  %v4973 = vadd.f32 0.0, %v4972
  %v4974 = vpop.f32.mrb[0].mxu0
  %v4975 = vadd.f32 0.0, %v4974
  %4976 = vmatprep.mubr.f32.mxu0 %v4645
  %4977 = vmatmul.mubr.f32.gmra.mrb[0].mxu0 %v4644
  %v4978 = vpop.f32.mrb[0].mxu0
  %v4979 = vadd.f32 0.0, %v4978
  %v4980 = vpop.f32.mrb[0].mxu0
  %v4981 = vadd.f32 0.0, %v4980
  %4982 = vmatprep.mubr.f32.mxu0 %v4647
  %4983 = vmatmul.mubr.f32.gmra.mrb[0].mxu0 %v4646
  %v4984 = vpop.f32.mrb[0].mxu0
  %v4985 = vadd.f32 0.0, %v4984
  %v4986 = vpop.f32.mrb[0].mxu0
  %v4987 = vadd.f32 0.0, %v4986
  %4988 = vmatprep.mubr.f32.mxu0 %v4649
  %4989 = vmatmul.mubr.f32.gmra.mrb[0].mxu0 %v4648
  %v4990 = vpop.f32.mrb[0].mxu0
  %v4991 = vadd.f32 0.0, %v4990
  %v4992 = vpop.f32.mrb[0].mxu0
  %v4993 = vadd.f32 0.0, %v4992
  %4994 = vmatprep.mubr.f32.mxu0 %v4651
  %4995 = vmatmul.mubr.f32.gmra.mrb[0].mxu0 %v4650
  %v4996 = vpop.f32.mrb[0].mxu0
  %v4997 = vadd.f32 0.0, %v4996
  %v4998 = vpop.f32.mrb[0].mxu0
  %v4999 = vadd.f32 0.0, %v4998
  %5000 = vmatprep.mubr.f32.mxu0 %v4653
  %5001 = vmatmul.mubr.f32.gmra.mrb[0].mxu0 %v4652
  %v5002 = vpop.f32.mrb[0].mxu0
  %v5003 = vadd.f32 0.0, %v5002
  %v5004 = vpop.f32.mrb[0].mxu0
  %v5005 = vadd.f32 0.0, %v5004
  %5006 = vmatprep.mubr.f32.mxu0 %v4655
  %5007 = vmatmul.mubr.f32.gmra.mrb[0].mxu0 %v4654
  %v5008 = vpop.f32.mrb[0].mxu0
  %v5009 = vadd.f32 0.0, %v5008
  %v5010 = vpop.f32.mrb[0].mxu0
  %v5011 = vadd.f32 0.0, %v5010
  %5012 = vmatprep.mubr.f32.mxu0 %v4657
  %5013 = vmatmul.mubr.f32.gmra.mrb[0].mxu0 %v4656
  %v5014 = vpop.f32.mrb[0].mxu0
  %v5015 = vadd.f32 0.0, %v5014
  %v5016 = vpop.f32.mrb[0].mxu0
  %v5017 = vadd.f32 0.0, %v5016
  %5018 = vmatprep.mubr.f32.mxu0 %v4659
  %5019 = vmatmul.mubr.f32.gmra.mrb[0].mxu0 %v4658
  %v5020 = vpop.f32.mrb[0].mxu0
  %v5021 = vadd.f32 0.0, %v5020
  %v5022 = vpop.f32.mrb[0].mxu0
  %v5023 = vadd.f32 0.0, %v5022
  %5024 = vmatprep.mubr.f32.mxu0 %v4661
  %5025 = vmatmul.mubr.f32.gmra.mrb[0].mxu0 %v4660
  %v5026 = vpop.f32.mrb[0].mxu0
  %v5027 = vadd.f32 0.0, %v5026
  %v5028 = vpop.f32.mrb[0].mxu0
  %v5029 = vadd.f32 0.0, %v5028
  %5030 = vmatprep.mubr.f32.mxu0 %v4663
  %5031 = vmatmul.mubr.f32.gmra.mrb[0].mxu0 %v4662
  %v5032 = vpop.f32.mrb[0].mxu0
  %v5033 = vadd.f32 0.0, %v5032
  %v5034 = vpop.f32.mrb[0].mxu0
  %v5035 = vadd.f32 0.0, %v5034
  %5036 = vmatprep.mubr.f32.mxu0 %v4665
  %5037 = vmatmul.mubr.f32.gmra.mrb[0].mxu0 %v4664
  %v5038 = vpop.f32.mrb[0].mxu0
  %v5039 = vadd.f32 0.0, %v5038
  %v5040 = vpop.f32.mrb[0].mxu0
  %v5041 = vadd.f32 0.0, %v5040
  %5042 = vmatprep.mubr.f32.mxu0 %v4667
  %5043 = vmatmul.mubr.f32.gmra.mrb[0].mxu0 %v4666
  %v5044 = vpop.f32.mrb[0].mxu0
  %v5045 = vadd.f32 0.0, %v5044
  %v5046 = vpop.f32.mrb[0].mxu0
  %v5047 = vadd.f32 0.0, %v5046
  %5048 = vmatprep.mubr.f32.mxu0 %v4669
  %5049 = vmatmul.mubr.f32.gmra.mrb[0].mxu0 %v4668
  %v5050 = vpop.f32.mrb[0].mxu0
  %v5051 = vadd.f32 0.0, %v5050
  %v5052 = vpop.f32.mrb[0].mxu0
  %v5053 = vadd.f32 0.0, %v5052
  %5054 = vmatprep.mubr.f32.mxu0 %v4671
  %5055 = vmatmul.mubr.f32.gmra.mrb[0].mxu0 %v4670
  %v5056 = vpop.f32.mrb[0].mxu0
  %v5057 = vadd.f32 0.0, %v5056
  %v5058 = vpop.f32.mrb[0].mxu0
  %v5059 = vadd.f32 0.0, %v5058
  %5060 = vmatprep.mubr.f32.mxu0 %v4673
  %5061 = vmatmul.mubr.f32.gmra.mrb[0].mxu0 %v4672
  %v5062 = vpop.f32.mrb[0].mxu0
  %v5063 = vadd.f32 0.0, %v5062
  %v5064 = vpop.f32.mrb[0].mxu0
  %v5065 = vadd.f32 0.0, %v5064
  %5066 = vmatprep.mubr.f32.mxu0 %v4675
  %5067 = vmatmul.mubr.f32.gmra.mrb[0].mxu0 %v4674
  %v5068 = vpop.f32.mrb[0].mxu0
  %v5069 = vadd.f32 0.0, %v5068
  %v5070 = vpop.f32.mrb[0].mxu0
  %v5071 = vadd.f32 0.0, %v5070
  %5072 = vmatprep.mubr.f32.mxu0 %v4677
  %5073 = vmatmul.mubr.f32.gmra.mrb[0].mxu0 %v4676
  %v5074 = vpop.f32.mrb[0].mxu0
  %v5075 = vadd.f32 0.0, %v5074
  %v5076 = vpop.f32.mrb[0].mxu0
  %v5077 = vadd.f32 0.0, %v5076
  %5078 = vmatprep.mubr.f32.mxu0 %v4679
  %5079 = vmatmul.mubr.f32.gmra.mrb[0].mxu0 %v4678
  %v5080 = vpop.f32.mrb[0].mxu0
  %v5081 = vadd.f32 0.0, %v5080
  %v5082 = vpop.f32.mrb[0].mxu0
  %v5083 = vadd.f32 0.0, %v5082
  %5084 = vmatprep.mubr.f32.mxu0 %v4681
  %5085 = vmatmul.mubr.f32.gmra.mrb[0].mxu0 %v4680
  %v5086 = vpop.f32.mrb[0].mxu0
  %v5087 = vadd.f32 0.0, %v5086
  %v5088 = vpop.f32.mrb[0].mxu0
  %v5089 = vadd.f32 0.0, %v5088
  %5090 = vmatprep.mubr.f32.mxu0 %v4683
  %5091 = vmatmul.mubr.f32.gmra.mrb[0].mxu0 %v4682
  %v5092 = vpop.f32.mrb[0].mxu0
  %v5093 = vadd.f32 0.0, %v5092
  %v5094 = vpop.f32.mrb[0].mxu0
  %v5095 = vadd.f32 0.0, %v5094
  %5096 = vmatprep.mubr.f32.mxu0 %v4685
  %5097 = vmatmul.mubr.f32.gmra.mrb[0].mxu0 %v4684
  %v5098 = vpop.f32.mrb[0].mxu0
  %v5099 = vadd.f32 0.0, %v5098
  %v5100 = vpop.f32.mrb[0].mxu0
  %v5101 = vadd.f32 0.0, %v5100
  %5102 = vmatprep.mubr.f32.mxu0 %v4687
  %5103 = vmatmul.mubr.f32.gmra.mrb[0].mxu0 %v4686
  %v5104 = vpop.f32.mrb[0].mxu0
  %v5105 = vadd.f32 0.0, %v5104
  %v5106 = vpop.f32.mrb[0].mxu0
  %v5107 = vadd.f32 0.0, %v5106
  %5108 = vmatprep.mubr.f32.mxu0 %v4689
  %5109 = vmatmul.mubr.f32.gmra.mrb[0].mxu0 %v4688
  %v5110 = vpop.f32.mrb[0].mxu0
  %v5111 = vadd.f32 0.0, %v5110
  %v5112 = vpop.f32.mrb[0].mxu0
  %v5113 = vadd.f32 0.0, %v5112
  %5114 = vmatprep.mubr.f32.mxu0 %v4691
  %5115 = vmatmul.mubr.f32.gmra.mrb[0].mxu0 %v4690
  %v5116 = vpop.f32.mrb[0].mxu0
  %v5117 = vadd.f32 0.0, %v5116
  %v5118 = vpop.f32.mrb[0].mxu0
  %v5119 = vadd.f32 0.0, %v5118
  %5120 = vmatprep.mubr.f32.mxu0 %v4693
  %5121 = vmatmul.mubr.f32.gmra.mrb[0].mxu0 %v4692
  %v5122 = vpop.f32.mrb[0].mxu0
  %v5123 = vadd.f32 0.0, %v5122
  %v5124 = vpop.f32.mrb[0].mxu0
  %v5125 = vadd.f32 0.0, %v5124
  %5126 = vmatprep.mubr.f32.mxu0 %v4695
  %5127 = vmatmul.mubr.f32.gmra.mrb[0].mxu0 %v4694
  %v5128 = vpop.f32.mrb[0].mxu0
  %v5129 = vadd.f32 0.0, %v5128
  %v5130 = vpop.f32.mrb[0].mxu0
  %v5131 = vadd.f32 0.0, %v5130
  %5132 = vmatprep.mubr.f32.mxu0 %v4697
  %5133 = vmatmul.mubr.f32.gmra.mrb[0].mxu0 %v4696
  %v5134 = vpop.f32.mrb[0].mxu0
  %v5135 = vadd.f32 0.0, %v5134
  %v5136 = vpop.f32.mrb[0].mxu0
  %v5137 = vadd.f32 0.0, %v5136
  %5138 = vmatprep.mubr.f32.mxu0 %v4699
  %5139 = vmatmul.mubr.f32.gmra.mrb[0].mxu0 %v4698
  %v5140 = vpop.f32.mrb[0].mxu0
  %v5141 = vadd.f32 0.0, %v5140
  %v5142 = vpop.f32.mrb[0].mxu0
  %v5143 = vadd.f32 0.0, %v5142
  %5144 = vmatprep.mubr.f32.mxu0 %v4701
  %5145 = vmatmul.mubr.f32.gmra.mrb[0].mxu0 %v4700
  %v5146 = vpop.f32.mrb[0].mxu0
  %v5147 = vadd.f32 0.0, %v5146
  %v5148 = vpop.f32.mrb[0].mxu0
  %v5149 = vadd.f32 0.0, %v5148
  %5150 = vmatprep.mubr.f32.mxu0 %v4703
  %5151 = vmatmul.mubr.f32.gmra.mrb[0].mxu0 %v4702
  %v5152 = vpop.f32.mrb[0].mxu0
  %v5153 = vadd.f32 0.0, %v5152
  %v5154 = vpop.f32.mrb[0].mxu0
  %v5155 = vadd.f32 0.0, %v5154
  %5156 = vmatprep.mubr.f32.mxu0 %v4705
  %5157 = vmatmul.mubr.f32.gmra.mrb[0].mxu0 %v4704
  %v5158 = vpop.f32.mrb[0].mxu0
  %v5159 = vadd.f32 0.0, %v5158
  %v5160 = vpop.f32.mrb[0].mxu0
  %v5161 = vadd.f32 0.0, %v5160
  %5162 = vmatprep.mubr.f32.mxu0 %v4707
  %5163 = vmatmul.mubr.f32.gmra.mrb[0].mxu0 %v4706
  %v5164 = vpop.f32.mrb[0].mxu0
  %v5165 = vadd.f32 0.0, %v5164
  %v5166 = vpop.f32.mrb[0].mxu0
  %v5167 = vadd.f32 0.0, %v5166
  %5168 = vmatprep.mubr.f32.mxu0 %v4709
  %5169 = vmatmul.mubr.f32.gmra.mrb[0].mxu0 %v4708
  %v5170 = vpop.f32.mrb[0].mxu0
  %v5171 = vadd.f32 0.0, %v5170
  %v5172 = vpop.f32.mrb[0].mxu0
  %v5173 = vadd.f32 0.0, %v5172
  %5174 = vmatprep.mubr.f32.mxu0 %v4711
  %5175 = vmatmul.mubr.f32.gmra.mrb[0].mxu0 %v4710
  %v5176 = vpop.f32.mrb[0].mxu0
  %v5177 = vadd.f32 0.0, %v5176
  %v5178 = vpop.f32.mrb[0].mxu0
  %v5179 = vadd.f32 0.0, %v5178
  %5180 = vmatprep.mubr.f32.mxu0 %v4713
  %5181 = vmatmul.mubr.f32.gmra.mrb[0].mxu0 %v4712
  %v5182 = vpop.f32.mrb[0].mxu0
  %v5183 = vadd.f32 0.0, %v5182
  %v5184 = vpop.f32.mrb[0].mxu0
  %v5185 = vadd.f32 0.0, %v5184
  %5186 = vmatprep.mubr.f32.mxu0 %v4715
  %5187 = vmatmul.mubr.f32.gmra.mrb[0].mxu0 %v4714
  %v5188 = vpop.f32.mrb[0].mxu0
  %v5189 = vadd.f32 0.0, %v5188
  %v5190 = vpop.f32.mrb[0].mxu0
  %v5191 = vadd.f32 0.0, %v5190
  %5192 = vmatprep.mubr.f32.mxu0 %v4717
  %5193 = vmatmul.mubr.f32.gmra.mrb[0].mxu0 %v4716
  %v5194 = vpop.f32.mrb[0].mxu0
  %v5195 = vadd.f32 0.0, %v5194
  %v5196 = vpop.f32.mrb[0].mxu0
  %v5197 = vadd.f32 0.0, %v5196
  %5198 = vmatprep.mubr.f32.mxu0 %v4719
  %5199 = vmatmul.mubr.f32.gmra.mrb[0].mxu0 %v4718
  %v5200 = vpop.f32.mrb[0].mxu0
  %v5201 = vadd.f32 0.0, %v5200
  %v5202 = vpop.f32.mrb[0].mxu0
  %v5203 = vadd.f32 0.0, %v5202
  %5204 = vmatprep.mubr.f32.mxu0 %v4721
  %5205 = vmatmul.mubr.f32.gmra.mrb[0].mxu0 %v4720
  %v5206 = vpop.f32.mrb[0].mxu0
  %v5207 = vadd.f32 0.0, %v5206
  %v5208 = vpop.f32.mrb[0].mxu0
  %v5209 = vadd.f32 0.0, %v5208
  %5210 = vmatprep.mubr.f32.mxu0 %v4723
  %5211 = vmatmul.mubr.f32.gmra.mrb[0].mxu0 %v4722
  %v5212 = vpop.f32.mrb[0].mxu0
  %v5213 = vadd.f32 0.0, %v5212
  %v5214 = vpop.f32.mrb[0].mxu0
  %v5215 = vadd.f32 0.0, %v5214
  %5216 = vmatprep.mubr.f32.mxu0 %v4725
  %5217 = vmatmul.mubr.f32.gmra.mrb[0].mxu0 %v4724
  %v5218 = vpop.f32.mrb[0].mxu0
  %v5219 = vadd.f32 0.0, %v5218
  %v5220 = vpop.f32.mrb[0].mxu0
  %v5221 = vadd.f32 0.0, %v5220
  %5222 = vmatprep.mubr.f32.mxu0 %v4727
  %5223 = vmatmul.mubr.f32.gmra.mrb[0].mxu0 %v4726
  %v5224 = vpop.f32.mrb[0].mxu0
  %v5225 = vadd.f32 0.0, %v5224
  %v5226 = vpop.f32.mrb[0].mxu0
  %v5227 = vadd.f32 0.0, %v5226
  %5228 = vmatprep.mubr.f32.mxu0 %v4729
  %5229 = vmatmul.mubr.f32.gmra.mrb[0].mxu0 %v4728
  %v5230 = vpop.f32.mrb[0].mxu0
  %v5231 = vadd.f32 0.0, %v5230
  %v5232 = vpop.f32.mrb[0].mxu0
  %v5233 = vadd.f32 0.0, %v5232
  %5234 = vmatprep.mubr.f32.mxu0 %v4731
  %5235 = vmatmul.mubr.f32.gmra.mrb[0].mxu0 %v4730
  %v5236 = vpop.f32.mrb[0].mxu0
  %v5237 = vadd.f32 0.0, %v5236
  %v5238 = vpop.f32.mrb[0].mxu0
  %v5239 = vadd.f32 0.0, %v5238
  %5240 = vmatprep.mubr.f32.mxu0 %v4733
  %5241 = vmatmul.mubr.f32.gmra.mrb[0].mxu0 %v4732
  %v5242 = vpop.f32.mrb[0].mxu0
  %v5243 = vadd.f32 0.0, %v5242
  %v5244 = vpop.f32.mrb[0].mxu0
  %v5245 = vadd.f32 0.0, %v5244
  %5246 = vmatprep.mubr.f32.mxu0 %v4735
  %5247 = vmatmul.mubr.f32.gmra.mrb[0].mxu0 %v4734
  %v5248 = vpop.f32.mrb[0].mxu0
  %v5249 = vadd.f32 0.0, %v5248
  %v5250 = vpop.f32.mrb[0].mxu0
  %v5251 = vadd.f32 0.0, %v5250
  %5252 = vmatprep.mubr.f32.mxu0 %v4737
  %5253 = vmatmul.mubr.f32.gmra.mrb[0].mxu0 %v4736
  %v5254 = vpop.f32.mrb[0].mxu0
  %v5255 = vadd.f32 0.0, %v5254
  %v5256 = vpop.f32.mrb[0].mxu0
  %v5257 = vadd.f32 0.0, %v5256
  %5258 = vmatprep.mubr.f32.mxu0 %v4739
  %5259 = vmatmul.mubr.f32.gmra.mrb[0].mxu0 %v4738
  %v5260 = vpop.f32.mrb[0].mxu0
  %v5261 = vadd.f32 0.0, %v5260
  %v5262 = vpop.f32.mrb[0].mxu0
  %v5263 = vadd.f32 0.0, %v5262
  %5264 = vmatprep.mubr.f32.mxu0 %v4741
  %5265 = vmatmul.mubr.f32.gmra.mrb[0].mxu0 %v4740
  %v5266 = vpop.f32.mrb[0].mxu0
  %v5267 = vadd.f32 0.0, %v5266
  %v5268 = vpop.f32.mrb[0].mxu0
  %v5269 = vadd.f32 0.0, %v5268
  %5270 = vmatprep.mubr.f32.mxu0 %v4743
  %5271 = vmatmul.mubr.f32.gmra.mrb[0].mxu0 %v4742
  %v5272 = vpop.f32.mrb[0].mxu0
  %v5273 = vadd.f32 0.0, %v5272
  %v5274 = vpop.f32.mrb[0].mxu0
  %v5275 = vadd.f32 0.0, %v5274
  %5276 = vmatprep.mubr.f32.mxu0 %v4745
  %5277 = vmatmul.mubr.f32.gmra.mrb[0].mxu0 %v4744
  %v5278 = vpop.f32.mrb[0].mxu0
  %v5279 = vadd.f32 0.0, %v5278
  %v5280 = vpop.f32.mrb[0].mxu0
  %v5281 = vadd.f32 0.0, %v5280
  %5282 = vmatprep.mubr.f32.mxu0 %v4747
  %5283 = vmatmul.mubr.f32.gmra.mrb[0].mxu0 %v4746
  %v5284 = vpop.f32.mrb[0].mxu0
  %v5285 = vadd.f32 0.0, %v5284
  %v5286 = vpop.f32.mrb[0].mxu0
  %v5287 = vadd.f32 0.0, %v5286
  %5288 = vmatprep.mubr.f32.mxu0 %v4749
  %5289 = vmatmul.mubr.f32.gmra.mrb[0].mxu0 %v4748
  %v5290 = vpop.f32.mrb[0].mxu0
  %v5291 = vadd.f32 0.0, %v5290
  %v5292 = vpop.f32.mrb[0].mxu0
  %v5293 = vadd.f32 0.0, %v5292
  %5294 = vdwg.mxu0
  %5295 = vmatprep.subr.mxu0 0.0
  %5296 = vmatpush1.msra.mxu0 %v4752
  %5297 = vmatprep.subr.mxu0 0.0
  %5298 = vmatpush1.msra.mxu0 %v4755
  %5299 = vmatprep.subr.mxu0 0.0
  %5300 = vmatpush1.msra.mxu0 %v4758
  %5301 = vmatprep.subr.mxu0 0.0
  %5302 = vmatpush1.msra.mxu0 %v4761
  %5303 = vmatprep.subr.mxu0 0.0
  %5304 = vmatpush1.msra.mxu0 %v4764
  %5305 = vmatprep.subr.mxu0 0.0
  %5306 = vmatpush1.msra.mxu0 %v4767
  %5307 = vmatprep.subr.mxu0 0.0
  %5308 = vmatpush1.msra.mxu0 %v4770
  %5309 = vmatprep.subr.mxu0 0.0
  %5310 = vmatpush1.msra.mxu0 %v4773
  %5311 = vmatprep.subr.mxu0 0.0
  %5312 = vmatpush1.msra.mxu0 %v4776
  %5313 = vmatprep.subr.mxu0 0.0
  %5314 = vmatpush1.msra.mxu0 %v4779
  %5315 = vmatprep.subr.mxu0 0.0
  %5316 = vmatpush1.msra.mxu0 %v4782
  %5317 = vmatprep.subr.mxu0 0.0
  %5318 = vmatpush1.msra.mxu0 %v4785
  %5319 = vmatprep.subr.mxu0 0.0
  %5320 = vmatpush1.msra.mxu0 %v4788
  %5321 = vmatprep.subr.mxu0 0.0
  %5322 = vmatpush1.msra.mxu0 %v4791
  %5323 = vmatprep.subr.mxu0 0.0
  %5324 = vmatpush1.msra.mxu0 %v4794
  %5325 = vmatprep.subr.mxu0 0.0
  %5326 = vmatpush1.msra.mxu0 %v4797
  %5327 = vmatprep.subr.mxu0 0.0
  %5328 = vmatpush1.msra.mxu0 %v4800
  %5329 = vmatprep.subr.mxu0 0.0
  %5330 = vmatpush1.msra.mxu0 %v4803
  %5331 = vmatprep.subr.mxu0 0.0
  %5332 = vmatpush1.msra.mxu0 %v4806
  %5333 = vmatprep.subr.mxu0 0.0
  %5334 = vmatpush1.msra.mxu0 %v4809
  %5335 = vmatprep.subr.mxu0 0.0
  %5336 = vmatpush1.msra.mxu0 %v4812
  %5337 = vmatprep.subr.mxu0 0.0
  %5338 = vmatpush1.msra.mxu0 %v4815
  %5339 = vmatprep.subr.mxu0 0.0
  %5340 = vmatpush1.msra.mxu0 %v4818
  %5341 = vmatprep.subr.mxu0 0.0
  %5342 = vmatpush1.msra.mxu0 %v4821
  %5343 = vmatprep.subr.mxu0 0.0
  %5344 = vmatpush1.msra.mxu0 %v4824
  %5345 = vmatprep.subr.mxu0 0.0
  %5346 = vmatpush1.msra.mxu0 %v4827
  %5347 = vmatprep.subr.mxu0 0.0
  %5348 = vmatpush1.msra.mxu0 %v4830
  %5349 = vmatprep.subr.mxu0 0.0
  %5350 = vmatpush1.msra.mxu0 %v4833
  %5351 = vmatprep.subr.mxu0 0.0
  %5352 = vmatpush1.msra.mxu0 %v4836
  %5353 = vmatprep.subr.mxu0 0.0
  %5354 = vmatpush1.msra.mxu0 %v4839
  %5355 = vmatprep.subr.mxu0 0.0
  %5356 = vmatpush1.msra.mxu0 %v4842
  %5357 = vmatprep.subr.mxu0 0.0
  %5358 = vmatpush1.msra.mxu0 %v4845
  %5359 = vmatprep.mubr.f32.mxu0 %v4623
  %5360 = vmatmul.mubr.f32.gmra.mrb[0].mxu0 %v4622
  %v5361 = vpop.f32.mrb[0].mxu0
  %v5362 = vadd.f32 0.0, %v5361
  %v5363 = vpop.f32.mrb[0].mxu0
  %5364 = vmatprep.mubr.f32.mxu0 %v4625
  %5365 = vmatmul.mubr.f32.gmra.mrb[0].mxu0 %v4624
  %v5366 = vpop.f32.mrb[0].mxu0
  %v5367 = vadd.f32 0.0, %v5366
  %v5368 = vpop.f32.mrb[0].mxu0
  %5369 = vmatprep.mubr.f32.mxu0 %v4627
  %5370 = vmatmul.mubr.f32.gmra.mrb[0].mxu0 %v4626
  %v5371 = vpop.f32.mrb[0].mxu0
  %v5372 = vadd.f32 0.0, %v5371
  %v5373 = vpop.f32.mrb[0].mxu0
  %5374 = vmatprep.mubr.f32.mxu0 %v4629
  %5375 = vmatmul.mubr.f32.gmra.mrb[0].mxu0 %v4628
  %v5376 = vpop.f32.mrb[0].mxu0
  %v5377 = vadd.f32 0.0, %v5376
  %v5378 = vpop.f32.mrb[0].mxu0
  %5379 = vmatprep.mubr.f32.mxu0 %v4631
  %5380 = vmatmul.mubr.f32.gmra.mrb[0].mxu0 %v4630
  %v5381 = vpop.f32.mrb[0].mxu0
  %v5382 = vadd.f32 0.0, %v5381
  %v5383 = vpop.f32.mrb[0].mxu0
  %5384 = vmatprep.mubr.f32.mxu0 %v4633
  %5385 = vmatmul.mubr.f32.gmra.mrb[0].mxu0 %v4632
  %v5386 = vpop.f32.mrb[0].mxu0
  %v5387 = vadd.f32 0.0, %v5386
  %v5388 = vpop.f32.mrb[0].mxu0
  %5389 = vmatprep.mubr.f32.mxu0 %v4635
  %5390 = vmatmul.mubr.f32.gmra.mrb[0].mxu0 %v4634
  %v5391 = vpop.f32.mrb[0].mxu0
  %v5392 = vadd.f32 0.0, %v5391
  %v5393 = vpop.f32.mrb[0].mxu0
  %5394 = vmatprep.mubr.f32.mxu0 %v4637
  %5395 = vmatmul.mubr.f32.gmra.mrb[0].mxu0 %v4636
  %v5396 = vpop.f32.mrb[0].mxu0
  %v5397 = vadd.f32 0.0, %v5396
  %v5398 = vpop.f32.mrb[0].mxu0
  %5399 = vmatprep.mubr.f32.mxu0 %v4639
  %5400 = vmatmul.mubr.f32.gmra.mrb[0].mxu0 %v4638
  %v5401 = vpop.f32.mrb[0].mxu0
  %v5402 = vadd.f32 0.0, %v5401
  %v5403 = vpop.f32.mrb[0].mxu0
  %5404 = vmatprep.mubr.f32.mxu0 %v4641
  %5405 = vmatmul.mubr.f32.gmra.mrb[0].mxu0 %v4640
  %v5406 = vpop.f32.mrb[0].mxu0
  %v5407 = vadd.f32 0.0, %v5406
  %v5408 = vpop.f32.mrb[0].mxu0
  %5409 = vmatprep.mubr.f32.mxu0 %v4643
  %5410 = vmatmul.mubr.f32.gmra.mrb[0].mxu0 %v4642
  %v5411 = vpop.f32.mrb[0].mxu0
  %v5412 = vadd.f32 0.0, %v5411
  %v5413 = vpop.f32.mrb[0].mxu0
  %5414 = vmatprep.mubr.f32.mxu0 %v4645
  %5415 = vmatmul.mubr.f32.gmra.mrb[0].mxu0 %v4644
  %v5416 = vpop.f32.mrb[0].mxu0
  %v5417 = vadd.f32 0.0, %v5416
  %v5418 = vpop.f32.mrb[0].mxu0
  %5419 = vmatprep.mubr.f32.mxu0 %v4647
  %5420 = vmatmul.mubr.f32.gmra.mrb[0].mxu0 %v4646
  %v5421 = vpop.f32.mrb[0].mxu0
  %v5422 = vadd.f32 0.0, %v5421
  %v5423 = vpop.f32.mrb[0].mxu0
  %5424 = vmatprep.mubr.f32.mxu0 %v4649
  %5425 = vmatmul.mubr.f32.gmra.mrb[0].mxu0 %v4648
  %v5426 = vpop.f32.mrb[0].mxu0
  %v5427 = vadd.f32 0.0, %v5426
  %v5428 = vpop.f32.mrb[0].mxu0
  %5429 = vmatprep.mubr.f32.mxu0 %v4651
  %5430 = vmatmul.mubr.f32.gmra.mrb[0].mxu0 %v4650
  %v5431 = vpop.f32.mrb[0].mxu0
  %v5432 = vadd.f32 0.0, %v5431
  %v5433 = vpop.f32.mrb[0].mxu0
  %5434 = vmatprep.mubr.f32.mxu0 %v4653
  %5435 = vmatmul.mubr.f32.gmra.mrb[0].mxu0 %v4652
  %v5436 = vpop.f32.mrb[0].mxu0
  %v5437 = vadd.f32 0.0, %v5436
  %v5438 = vpop.f32.mrb[0].mxu0
  %5439 = vmatprep.mubr.f32.mxu0 %v4655
  %5440 = vmatmul.mubr.f32.gmra.mrb[0].mxu0 %v4654
  %v5441 = vpop.f32.mrb[0].mxu0
  %v5442 = vadd.f32 0.0, %v5441
  %v5443 = vpop.f32.mrb[0].mxu0
  %5444 = vmatprep.mubr.f32.mxu0 %v4657
  %5445 = vmatmul.mubr.f32.gmra.mrb[0].mxu0 %v4656
  %v5446 = vpop.f32.mrb[0].mxu0
  %v5447 = vadd.f32 0.0, %v5446
  %v5448 = vpop.f32.mrb[0].mxu0
  %5449 = vmatprep.mubr.f32.mxu0 %v4659
  %5450 = vmatmul.mubr.f32.gmra.mrb[0].mxu0 %v4658
  %v5451 = vpop.f32.mrb[0].mxu0
  %v5452 = vadd.f32 0.0, %v5451
  %v5453 = vpop.f32.mrb[0].mxu0
  %5454 = vmatprep.mubr.f32.mxu0 %v4661
  %5455 = vmatmul.mubr.f32.gmra.mrb[0].mxu0 %v4660
  %v5456 = vpop.f32.mrb[0].mxu0
  %v5457 = vadd.f32 0.0, %v5456
  %v5458 = vpop.f32.mrb[0].mxu0
  %5459 = vmatprep.mubr.f32.mxu0 %v4663
  %5460 = vmatmul.mubr.f32.gmra.mrb[0].mxu0 %v4662
  %v5461 = vpop.f32.mrb[0].mxu0
  %v5462 = vadd.f32 0.0, %v5461
  %v5463 = vpop.f32.mrb[0].mxu0
  %5464 = vmatprep.mubr.f32.mxu0 %v4665
  %5465 = vmatmul.mubr.f32.gmra.mrb[0].mxu0 %v4664
  %v5466 = vpop.f32.mrb[0].mxu0
  %v5467 = vadd.f32 0.0, %v5466
  %v5468 = vpop.f32.mrb[0].mxu0
  %5469 = vmatprep.mubr.f32.mxu0 %v4667
  %5470 = vmatmul.mubr.f32.gmra.mrb[0].mxu0 %v4666
  %v5471 = vpop.f32.mrb[0].mxu0
  %v5472 = vadd.f32 0.0, %v5471
  %v5473 = vpop.f32.mrb[0].mxu0
  %5474 = vmatprep.mubr.f32.mxu0 %v4669
  %5475 = vmatmul.mubr.f32.gmra.mrb[0].mxu0 %v4668
  %v5476 = vpop.f32.mrb[0].mxu0
  %v5477 = vadd.f32 0.0, %v5476
  %v5478 = vpop.f32.mrb[0].mxu0
  %5479 = vmatprep.mubr.f32.mxu0 %v4671
  %5480 = vmatmul.mubr.f32.gmra.mrb[0].mxu0 %v4670
  %v5481 = vpop.f32.mrb[0].mxu0
  %v5482 = vadd.f32 0.0, %v5481
  %v5483 = vpop.f32.mrb[0].mxu0
  %5484 = vmatprep.mubr.f32.mxu0 %v4673
  %5485 = vmatmul.mubr.f32.gmra.mrb[0].mxu0 %v4672
  %v5486 = vpop.f32.mrb[0].mxu0
  %v5487 = vadd.f32 0.0, %v5486
  %v5488 = vpop.f32.mrb[0].mxu0
  %5489 = vmatprep.mubr.f32.mxu0 %v4675
  %5490 = vmatmul.mubr.f32.gmra.mrb[0].mxu0 %v4674
  %v5491 = vpop.f32.mrb[0].mxu0
  %v5492 = vadd.f32 0.0, %v5491
  %v5493 = vpop.f32.mrb[0].mxu0
  %5494 = vmatprep.mubr.f32.mxu0 %v4677
  %5495 = vmatmul.mubr.f32.gmra.mrb[0].mxu0 %v4676
  %v5496 = vpop.f32.mrb[0].mxu0
  %v5497 = vadd.f32 0.0, %v5496
  %v5498 = vpop.f32.mrb[0].mxu0
  %5499 = vmatprep.mubr.f32.mxu0 %v4679
  %5500 = vmatmul.mubr.f32.gmra.mrb[0].mxu0 %v4678
  %v5501 = vpop.f32.mrb[0].mxu0
  %v5502 = vadd.f32 0.0, %v5501
  %v5503 = vpop.f32.mrb[0].mxu0
  %5504 = vmatprep.mubr.f32.mxu0 %v4681
  %5505 = vmatmul.mubr.f32.gmra.mrb[0].mxu0 %v4680
  %v5506 = vpop.f32.mrb[0].mxu0
  %v5507 = vadd.f32 0.0, %v5506
  %v5508 = vpop.f32.mrb[0].mxu0
  %5509 = vmatprep.mubr.f32.mxu0 %v4683
  %5510 = vmatmul.mubr.f32.gmra.mrb[0].mxu0 %v4682
  %v5511 = vpop.f32.mrb[0].mxu0
  %v5512 = vadd.f32 0.0, %v5511
  %v5513 = vpop.f32.mrb[0].mxu0
  %5514 = vmatprep.mubr.f32.mxu0 %v4685
  %5515 = vmatmul.mubr.f32.gmra.mrb[0].mxu0 %v4684
  %v5516 = vpop.f32.mrb[0].mxu0
  %v5517 = vadd.f32 0.0, %v5516
  %v5518 = vpop.f32.mrb[0].mxu0
  %5519 = vmatprep.mubr.f32.mxu0 %v4687
  %5520 = vmatmul.mubr.f32.gmra.mrb[0].mxu0 %v4686
  %v5521 = vpop.f32.mrb[0].mxu0
  %v5522 = vadd.f32 0.0, %v5521
  %v5523 = vpop.f32.mrb[0].mxu0
  %5524 = vmatprep.mubr.f32.mxu0 %v4689
  %5525 = vmatmul.mubr.f32.gmra.mrb[0].mxu0 %v4688
  %v5526 = vpop.f32.mrb[0].mxu0
  %v5527 = vadd.f32 0.0, %v5526
  %v5528 = vpop.f32.mrb[0].mxu0
  %5529 = vmatprep.mubr.f32.mxu0 %v4691
  %5530 = vmatmul.mubr.f32.gmra.mrb[0].mxu0 %v4690
  %v5531 = vpop.f32.mrb[0].mxu0
  %v5532 = vadd.f32 0.0, %v5531
  %v5533 = vpop.f32.mrb[0].mxu0
  %5534 = vmatprep.mubr.f32.mxu0 %v4693
  %5535 = vmatmul.mubr.f32.gmra.mrb[0].mxu0 %v4692
  %v5536 = vpop.f32.mrb[0].mxu0
  %v5537 = vadd.f32 0.0, %v5536
  %v5538 = vpop.f32.mrb[0].mxu0
  %5539 = vmatprep.mubr.f32.mxu0 %v4695
  %5540 = vmatmul.mubr.f32.gmra.mrb[0].mxu0 %v4694
  %v5541 = vpop.f32.mrb[0].mxu0
  %v5542 = vadd.f32 0.0, %v5541
  %v5543 = vpop.f32.mrb[0].mxu0
  %5544 = vmatprep.mubr.f32.mxu0 %v4697
  %5545 = vmatmul.mubr.f32.gmra.mrb[0].mxu0 %v4696
  %v5546 = vpop.f32.mrb[0].mxu0
  %v5547 = vadd.f32 0.0, %v5546
  %v5548 = vpop.f32.mrb[0].mxu0
  %5549 = vmatprep.mubr.f32.mxu0 %v4699
  %5550 = vmatmul.mubr.f32.gmra.mrb[0].mxu0 %v4698
  %v5551 = vpop.f32.mrb[0].mxu0
  %v5552 = vadd.f32 0.0, %v5551
  %v5553 = vpop.f32.mrb[0].mxu0
  %5554 = vmatprep.mubr.f32.mxu0 %v4701
  %5555 = vmatmul.mubr.f32.gmra.mrb[0].mxu0 %v4700
  %v5556 = vpop.f32.mrb[0].mxu0
  %v5557 = vadd.f32 0.0, %v5556
  %v5558 = vpop.f32.mrb[0].mxu0
  %5559 = vmatprep.mubr.f32.mxu0 %v4703
  %5560 = vmatmul.mubr.f32.gmra.mrb[0].mxu0 %v4702
  %v5561 = vpop.f32.mrb[0].mxu0
  %v5562 = vadd.f32 0.0, %v5561
  %v5563 = vpop.f32.mrb[0].mxu0
  %5564 = vmatprep.mubr.f32.mxu0 %v4705
  %5565 = vmatmul.mubr.f32.gmra.mrb[0].mxu0 %v4704
  %v5566 = vpop.f32.mrb[0].mxu0
  %v5567 = vadd.f32 0.0, %v5566
  %v5568 = vpop.f32.mrb[0].mxu0
  %5569 = vmatprep.mubr.f32.mxu0 %v4707
  %5570 = vmatmul.mubr.f32.gmra.mrb[0].mxu0 %v4706
  %v5571 = vpop.f32.mrb[0].mxu0
  %v5572 = vadd.f32 0.0, %v5571
  %v5573 = vpop.f32.mrb[0].mxu0
  %5574 = vmatprep.mubr.f32.mxu0 %v4709
  %5575 = vmatmul.mubr.f32.gmra.mrb[0].mxu0 %v4708
  %v5576 = vpop.f32.mrb[0].mxu0
  %v5577 = vadd.f32 0.0, %v5576
  %v5578 = vpop.f32.mrb[0].mxu0
  %5579 = vmatprep.mubr.f32.mxu0 %v4711
  %5580 = vmatmul.mubr.f32.gmra.mrb[0].mxu0 %v4710
  %v5581 = vpop.f32.mrb[0].mxu0
  %v5582 = vadd.f32 0.0, %v5581
  %v5583 = vpop.f32.mrb[0].mxu0
  %5584 = vmatprep.mubr.f32.mxu0 %v4713
  %5585 = vmatmul.mubr.f32.gmra.mrb[0].mxu0 %v4712
  %v5586 = vpop.f32.mrb[0].mxu0
  %v5587 = vadd.f32 0.0, %v5586
  %v5588 = vpop.f32.mrb[0].mxu0
  %5589 = vmatprep.mubr.f32.mxu0 %v4715
  %5590 = vmatmul.mubr.f32.gmra.mrb[0].mxu0 %v4714
  %v5591 = vpop.f32.mrb[0].mxu0
  %v5592 = vadd.f32 0.0, %v5591
  %v5593 = vpop.f32.mrb[0].mxu0
  %5594 = vmatprep.mubr.f32.mxu0 %v4717
  %5595 = vmatmul.mubr.f32.gmra.mrb[0].mxu0 %v4716
  %v5596 = vpop.f32.mrb[0].mxu0
  %v5597 = vadd.f32 0.0, %v5596
  %v5598 = vpop.f32.mrb[0].mxu0
  %5599 = vmatprep.mubr.f32.mxu0 %v4719
  %5600 = vmatmul.mubr.f32.gmra.mrb[0].mxu0 %v4718
  %v5601 = vpop.f32.mrb[0].mxu0
  %v5602 = vadd.f32 0.0, %v5601
  %v5603 = vpop.f32.mrb[0].mxu0
  %5604 = vmatprep.mubr.f32.mxu0 %v4721
  %5605 = vmatmul.mubr.f32.gmra.mrb[0].mxu0 %v4720
  %v5606 = vpop.f32.mrb[0].mxu0
  %v5607 = vadd.f32 0.0, %v5606
  %v5608 = vpop.f32.mrb[0].mxu0
  %5609 = vmatprep.mubr.f32.mxu0 %v4723
  %5610 = vmatmul.mubr.f32.gmra.mrb[0].mxu0 %v4722
  %v5611 = vpop.f32.mrb[0].mxu0
  %v5612 = vadd.f32 0.0, %v5611
  %v5613 = vpop.f32.mrb[0].mxu0
  %5614 = vmatprep.mubr.f32.mxu0 %v4725
  %5615 = vmatmul.mubr.f32.gmra.mrb[0].mxu0 %v4724
  %v5616 = vpop.f32.mrb[0].mxu0
  %v5617 = vadd.f32 0.0, %v5616
  %v5618 = vpop.f32.mrb[0].mxu0
  %5619 = vmatprep.mubr.f32.mxu0 %v4727
  %5620 = vmatmul.mubr.f32.gmra.mrb[0].mxu0 %v4726
  %v5621 = vpop.f32.mrb[0].mxu0
  %v5622 = vadd.f32 0.0, %v5621
  %v5623 = vpop.f32.mrb[0].mxu0
  %5624 = vmatprep.mubr.f32.mxu0 %v4729
  %5625 = vmatmul.mubr.f32.gmra.mrb[0].mxu0 %v4728
  %v5626 = vpop.f32.mrb[0].mxu0
  %v5627 = vadd.f32 0.0, %v5626
  %v5628 = vpop.f32.mrb[0].mxu0
  %5629 = vmatprep.mubr.f32.mxu0 %v4731
  %5630 = vmatmul.mubr.f32.gmra.mrb[0].mxu0 %v4730
  %v5631 = vpop.f32.mrb[0].mxu0
  %v5632 = vadd.f32 0.0, %v5631
  %v5633 = vpop.f32.mrb[0].mxu0
  %5634 = vmatprep.mubr.f32.mxu0 %v4733
  %5635 = vmatmul.mubr.f32.gmra.mrb[0].mxu0 %v4732
  %v5636 = vpop.f32.mrb[0].mxu0
  %v5637 = vadd.f32 0.0, %v5636
  %v5638 = vpop.f32.mrb[0].mxu0
  %5639 = vmatprep.mubr.f32.mxu0 %v4735
  %5640 = vmatmul.mubr.f32.gmra.mrb[0].mxu0 %v4734
  %v5641 = vpop.f32.mrb[0].mxu0
  %v5642 = vadd.f32 0.0, %v5641
  %v5643 = vpop.f32.mrb[0].mxu0
  %5644 = vmatprep.mubr.f32.mxu0 %v4737
  %5645 = vmatmul.mubr.f32.gmra.mrb[0].mxu0 %v4736
  %v5646 = vpop.f32.mrb[0].mxu0
  %v5647 = vadd.f32 0.0, %v5646
  %v5648 = vpop.f32.mrb[0].mxu0
  %5649 = vmatprep.mubr.f32.mxu0 %v4739
  %5650 = vmatmul.mubr.f32.gmra.mrb[0].mxu0 %v4738
  %v5651 = vpop.f32.mrb[0].mxu0
  %v5652 = vadd.f32 0.0, %v5651
  %v5653 = vpop.f32.mrb[0].mxu0
  %5654 = vmatprep.mubr.f32.mxu0 %v4741
  %5655 = vmatmul.mubr.f32.gmra.mrb[0].mxu0 %v4740
  %v5656 = vpop.f32.mrb[0].mxu0
  %v5657 = vadd.f32 0.0, %v5656
  %v5658 = vpop.f32.mrb[0].mxu0
  %5659 = vmatprep.mubr.f32.mxu0 %v4743
  %5660 = vmatmul.mubr.f32.gmra.mrb[0].mxu0 %v4742
  %v5661 = vpop.f32.mrb[0].mxu0
  %v5662 = vadd.f32 0.0, %v5661
  %v5663 = vpop.f32.mrb[0].mxu0
  %5664 = vmatprep.mubr.f32.mxu0 %v4745
  %5665 = vmatmul.mubr.f32.gmra.mrb[0].mxu0 %v4744
  %v5666 = vpop.f32.mrb[0].mxu0
  %v5667 = vadd.f32 0.0, %v5666
  %v5668 = vpop.f32.mrb[0].mxu0
  %5669 = vmatprep.mubr.f32.mxu0 %v4747
  %5670 = vmatmul.mubr.f32.gmra.mrb[0].mxu0 %v4746
  %v5671 = vpop.f32.mrb[0].mxu0
  %v5672 = vadd.f32 0.0, %v5671
  %v5673 = vpop.f32.mrb[0].mxu0
  %5674 = vmatprep.mubr.f32.mxu0 %v4749
  %5675 = vmatmul.mubr.f32.gmra.mrb[0].mxu0 %v4748
  %v5676 = vpop.f32.mrb[0].mxu0
  %v5677 = vadd.f32 0.0, %v5676
  %v5678 = vpop.f32.mrb[0].mxu0
  %5679 = vdwg.mxu0
  %5680 = vst [vmem:[%s2] sm:$0xff] %v4913
  %5681 = vst [vmem:[%s2 + $0x8] sm:$0xff] %v4915
  %vm5682 = vcmask 261120
  %5683 = vst.msk [vmem:[%s2 + $0x10] sm:$0xff] %vm5682, %v5362
  %5684 = vst [vmem:[%s2 + $0x18] sm:$0xff] %v4919
  %5685 = vst [vmem:[%s2 + $0x20] sm:$0xff] %v4921
  %5686 = vst.msk [vmem:[%s2 + $0x28] sm:$0xff] %vm5682, %v5367
  %5687 = vst [vmem:[%s2 + $0x30] sm:$0xff] %v4925
  %5688 = vst [vmem:[%s2 + $0x38] sm:$0xff] %v4927
  %5689 = vst.msk [vmem:[%s2 + $0x40] sm:$0xff] %vm5682, %v5372
  %5690 = vst [vmem:[%s2 + $0x48] sm:$0xff] %v4931
  %5691 = vst [vmem:[%s2 + $0x50] sm:$0xff] %v4933
  %5692 = vst.msk [vmem:[%s2 + $0x58] sm:$0xff] %vm5682, %v5377
  %5693 = vst [vmem:[%s2 + $0x60] sm:$0xff] %v4937
  %5694 = vst [vmem:[%s2 + $0x68] sm:$0xff] %v4939
  %5695 = vst.msk [vmem:[%s2 + $0x70] sm:$0xff] %vm5682, %v5382
  %5696 = vst [vmem:[%s2 + $0x78] sm:$0xff] %v4943
  %5697 = vst [vmem:[%s2 + $0x80] sm:$0xff] %v4945
  %5698 = vst.msk [vmem:[%s2 + $0x88] sm:$0xff] %vm5682, %v5387
  %5699 = vst [vmem:[%s2 + $0x90] sm:$0xff] %v4949
  %5700 = vst [vmem:[%s2 + $0x98] sm:$0xff] %v4951
  %5701 = vst.msk [vmem:[%s2 + $0xa0] sm:$0xff] %vm5682, %v5392
  %5702 = vst [vmem:[%s2 + $0xa8] sm:$0xff] %v4955
  %5703 = vst [vmem:[%s2 + $0xb0] sm:$0xff] %v4957
  %5704 = vst.msk [vmem:[%s2 + $0xb8] sm:$0xff] %vm5682, %v5397
  %5705 = vst [vmem:[%s2 + $0xc0] sm:$0xff] %v4961
  %5706 = vst [vmem:[%s2 + $0xc8] sm:$0xff] %v4963
  %5707 = vst.msk [vmem:[%s2 + $0xd0] sm:$0xff] %vm5682, %v5402
  %5708 = vst [vmem:[%s2 + $0xd8] sm:$0xff] %v4967
  %5709 = vst [vmem:[%s2 + $0xe0] sm:$0xff] %v4969
  %5710 = vst.msk [vmem:[%s2 + $0xe8] sm:$0xff] %vm5682, %v5407
  %5711 = vst [vmem:[%s2 + $0xf0] sm:$0xff] %v4973
  %5712 = vst [vmem:[%s2 + $0xf8] sm:$0xff] %v4975
  %5713 = vst.msk [vmem:[%s2 + $0x100] sm:$0xff] %vm5682, %v5412
  %5714 = vst [vmem:[%s2 + $0x108] sm:$0xff] %v4979
  %5715 = vst [vmem:[%s2 + $0x110] sm:$0xff] %v4981
  %5716 = vst.msk [vmem:[%s2 + $0x118] sm:$0xff] %vm5682, %v5417
  %5717 = vst [vmem:[%s2 + $0x120] sm:$0xff] %v4985
  %5718 = vst [vmem:[%s2 + $0x128] sm:$0xff] %v4987
  %5719 = vst.msk [vmem:[%s2 + $0x130] sm:$0xff] %vm5682, %v5422
  %5720 = vst [vmem:[%s2 + $0x138] sm:$0xff] %v4991
  %5721 = vst [vmem:[%s2 + $0x140] sm:$0xff] %v4993
  %5722 = vst.msk [vmem:[%s2 + $0x148] sm:$0xff] %vm5682, %v5427
  %5723 = vst [vmem:[%s2 + $0x150] sm:$0xff] %v4997
  %5724 = vst [vmem:[%s2 + $0x158] sm:$0xff] %v4999
  %5725 = vst.msk [vmem:[%s2 + $0x160] sm:$0xff] %vm5682, %v5432
  %5726 = vst [vmem:[%s2 + $0x168] sm:$0xff] %v5003
  %5727 = vst [vmem:[%s2 + $0x170] sm:$0xff] %v5005
  %5728 = vst.msk [vmem:[%s2 + $0x178] sm:$0xff] %vm5682, %v5437
  %5729 = vst [vmem:[%s2 + $0x180] sm:$0xff] %v5009
  %5730 = vst [vmem:[%s2 + $0x188] sm:$0xff] %v5011
  %5731 = vst.msk [vmem:[%s2 + $0x190] sm:$0xff] %vm5682, %v5442
  %5732 = vst [vmem:[%s2 + $0x198] sm:$0xff] %v5015
  %5733 = vst [vmem:[%s2 + $0x1a0] sm:$0xff] %v5017
  %5734 = vst.msk [vmem:[%s2 + $0x1a8] sm:$0xff] %vm5682, %v5447
  %5735 = vst [vmem:[%s2 + $0x1b0] sm:$0xff] %v5021
  %5736 = vst [vmem:[%s2 + $0x1b8] sm:$0xff] %v5023
  %5737 = vst.msk [vmem:[%s2 + $0x1c0] sm:$0xff] %vm5682, %v5452
  %5738 = vst [vmem:[%s2 + $0x1c8] sm:$0xff] %v5027
  %5739 = vst [vmem:[%s2 + $0x1d0] sm:$0xff] %v5029
  %5740 = vst.msk [vmem:[%s2 + $0x1d8] sm:$0xff] %vm5682, %v5457
  %5741 = vst [vmem:[%s2 + $0x1e0] sm:$0xff] %v5033
  %5742 = vst [vmem:[%s2 + $0x1e8] sm:$0xff] %v5035
  %5743 = vst.msk [vmem:[%s2 + $0x1f0] sm:$0xff] %vm5682, %v5462
  %5744 = vst [vmem:[%s2 + $0x1f8] sm:$0xff] %v5039
  %5745 = vst [vmem:[%s2 + $0x200] sm:$0xff] %v5041
  %5746 = vst.msk [vmem:[%s2 + $0x208] sm:$0xff] %vm5682, %v5467
  %5747 = vst [vmem:[%s2 + $0x210] sm:$0xff] %v5045
  %5748 = vst [vmem:[%s2 + $0x218] sm:$0xff] %v5047
  %5749 = vst.msk [vmem:[%s2 + $0x220] sm:$0xff] %vm5682, %v5472
  %5750 = vst [vmem:[%s2 + $0x228] sm:$0xff] %v5051
  %5751 = vst [vmem:[%s2 + $0x230] sm:$0xff] %v5053
  %5752 = vst.msk [vmem:[%s2 + $0x238] sm:$0xff] %vm5682, %v5477
  %5753 = vst [vmem:[%s2 + $0x240] sm:$0xff] %v5057
  %5754 = vst [vmem:[%s2 + $0x248] sm:$0xff] %v5059
  %5755 = vst.msk [vmem:[%s2 + $0x250] sm:$0xff] %vm5682, %v5482
  %5756 = vst [vmem:[%s2 + $0x258] sm:$0xff] %v5063
  %5757 = vst [vmem:[%s2 + $0x260] sm:$0xff] %v5065
  %5758 = vst.msk [vmem:[%s2 + $0x268] sm:$0xff] %vm5682, %v5487
  %5759 = vst [vmem:[%s2 + $0x270] sm:$0xff] %v5069
  %5760 = vst [vmem:[%s2 + $0x278] sm:$0xff] %v5071
  %5761 = vst.msk [vmem:[%s2 + $0x280] sm:$0xff] %vm5682, %v5492
  %5762 = vst [vmem:[%s2 + $0x288] sm:$0xff] %v5075
  %5763 = vst [vmem:[%s2 + $0x290] sm:$0xff] %v5077
  %5764 = vst.msk [vmem:[%s2 + $0x298] sm:$0xff] %vm5682, %v5497
  %5765 = vst [vmem:[%s2 + $0x2a0] sm:$0xff] %v5081
  %5766 = vst [vmem:[%s2 + $0x2a8] sm:$0xff] %v5083
  %5767 = vst.msk [vmem:[%s2 + $0x2b0] sm:$0xff] %vm5682, %v5502
  %5768 = vst [vmem:[%s2 + $0x2b8] sm:$0xff] %v5087
  %5769 = vst [vmem:[%s2 + $0x2c0] sm:$0xff] %v5089
  %5770 = vst.msk [vmem:[%s2 + $0x2c8] sm:$0xff] %vm5682, %v5507
  %5771 = vst [vmem:[%s2 + $0x2d0] sm:$0xff] %v5093
  %5772 = vst [vmem:[%s2 + $0x2d8] sm:$0xff] %v5095
  %5773 = vst.msk [vmem:[%s2 + $0x2e0] sm:$0xff] %vm5682, %v5512
  %5774 = vst [vmem:[%s2 + $0x2e8] sm:$0xff] %v5099
  %5775 = vst [vmem:[%s2 + $0x2f0] sm:$0xff] %v5101
  %5776 = vst.msk [vmem:[%s2 + $0x2f8] sm:$0xff] %vm5682, %v5517
  %5777 = vst [vmem:[%s2 + $0x300] sm:$0xff] %v5105
  %5778 = vst [vmem:[%s2 + $0x308] sm:$0xff] %v5107
  %5779 = vst.msk [vmem:[%s2 + $0x310] sm:$0xff] %vm5682, %v5522
  %5780 = vst [vmem:[%s2 + $0x318] sm:$0xff] %v5111
  %5781 = vst [vmem:[%s2 + $0x320] sm:$0xff] %v5113
  %5782 = vst.msk [vmem:[%s2 + $0x328] sm:$0xff] %vm5682, %v5527
  %5783 = vst [vmem:[%s2 + $0x330] sm:$0xff] %v5117
  %5784 = vst [vmem:[%s2 + $0x338] sm:$0xff] %v5119
  %5785 = vst.msk [vmem:[%s2 + $0x340] sm:$0xff] %vm5682, %v5532
  %5786 = vst [vmem:[%s2 + $0x348] sm:$0xff] %v5123
  %5787 = vst [vmem:[%s2 + $0x350] sm:$0xff] %v5125
  %5788 = vst.msk [vmem:[%s2 + $0x358] sm:$0xff] %vm5682, %v5537
  %5789 = vst [vmem:[%s2 + $0x360] sm:$0xff] %v5129
  %5790 = vst [vmem:[%s2 + $0x368] sm:$0xff] %v5131
  %5791 = vst.msk [vmem:[%s2 + $0x370] sm:$0xff] %vm5682, %v5542
  %5792 = vst [vmem:[%s2 + $0x378] sm:$0xff] %v5135
  %5793 = vst [vmem:[%s2 + $0x380] sm:$0xff] %v5137
  %5794 = vst.msk [vmem:[%s2 + $0x388] sm:$0xff] %vm5682, %v5547
  %5795 = vst [vmem:[%s2 + $0x390] sm:$0xff] %v5141
  %5796 = vst [vmem:[%s2 + $0x398] sm:$0xff] %v5143
  %5797 = vst.msk [vmem:[%s2 + $0x3a0] sm:$0xff] %vm5682, %v5552
  %5798 = vst [vmem:[%s2 + $0x3a8] sm:$0xff] %v5147
  %5799 = vst [vmem:[%s2 + $0x3b0] sm:$0xff] %v5149
  %5800 = vst.msk [vmem:[%s2 + $0x3b8] sm:$0xff] %vm5682, %v5557
  %5801 = vst [vmem:[%s2 + $0x3c0] sm:$0xff] %v5153
  %5802 = vst [vmem:[%s2 + $0x3c8] sm:$0xff] %v5155
  %5803 = vst.msk [vmem:[%s2 + $0x3d0] sm:$0xff] %vm5682, %v5562
  %5804 = vst [vmem:[%s2 + $0x3d8] sm:$0xff] %v5159
  %5805 = vst [vmem:[%s2 + $0x3e0] sm:$0xff] %v5161
  %5806 = vst.msk [vmem:[%s2 + $0x3e8] sm:$0xff] %vm5682, %v5567
  %5807 = vst [vmem:[%s2 + $0x3f0] sm:$0xff] %v5165
  %5808 = vst [vmem:[%s2 + $0x3f8] sm:$0xff] %v5167
  %5809 = vst.msk [vmem:[%s2 + $0x400] sm:$0xff] %vm5682, %v5572
  %5810 = vst [vmem:[%s2 + $0x408] sm:$0xff] %v5171
  %5811 = vst [vmem:[%s2 + $0x410] sm:$0xff] %v5173
  %5812 = vst.msk [vmem:[%s2 + $0x418] sm:$0xff] %vm5682, %v5577
  %5813 = vst [vmem:[%s2 + $0x420] sm:$0xff] %v5177
  %5814 = vst [vmem:[%s2 + $0x428] sm:$0xff] %v5179
  %5815 = vst.msk [vmem:[%s2 + $0x430] sm:$0xff] %vm5682, %v5582
  %5816 = vst [vmem:[%s2 + $0x438] sm:$0xff] %v5183
  %5817 = vst [vmem:[%s2 + $0x440] sm:$0xff] %v5185
  %5818 = vst.msk [vmem:[%s2 + $0x448] sm:$0xff] %vm5682, %v5587
  %5819 = vst [vmem:[%s2 + $0x450] sm:$0xff] %v5189
  %5820 = vst [vmem:[%s2 + $0x458] sm:$0xff] %v5191
  %5821 = vst.msk [vmem:[%s2 + $0x460] sm:$0xff] %vm5682, %v5592
  %5822 = vst [vmem:[%s2 + $0x468] sm:$0xff] %v5195
  %5823 = vst [vmem:[%s2 + $0x470] sm:$0xff] %v5197
  %5824 = vst.msk [vmem:[%s2 + $0x478] sm:$0xff] %vm5682, %v5597
  %5825 = vst [vmem:[%s2 + $0x480] sm:$0xff] %v5201
  %5826 = vst [vmem:[%s2 + $0x488] sm:$0xff] %v5203
  %5827 = vst.msk [vmem:[%s2 + $0x490] sm:$0xff] %vm5682, %v5602
  %5828 = vst [vmem:[%s2 + $0x498] sm:$0xff] %v5207
  %5829 = vst [vmem:[%s2 + $0x4a0] sm:$0xff] %v5209
  %5830 = vst.msk [vmem:[%s2 + $0x4a8] sm:$0xff] %vm5682, %v5607
  %5831 = vst [vmem:[%s2 + $0x4b0] sm:$0xff] %v5213
  %5832 = vst [vmem:[%s2 + $0x4b8] sm:$0xff] %v5215
  %5833 = vst.msk [vmem:[%s2 + $0x4c0] sm:$0xff] %vm5682, %v5612
  %5834 = vst [vmem:[%s2 + $0x4c8] sm:$0xff] %v5219
  %5835 = vst [vmem:[%s2 + $0x4d0] sm:$0xff] %v5221
  %5836 = vst.msk [vmem:[%s2 + $0x4d8] sm:$0xff] %vm5682, %v5617
  %5837 = vst [vmem:[%s2 + $0x4e0] sm:$0xff] %v5225
  %5838 = vst [vmem:[%s2 + $0x4e8] sm:$0xff] %v5227
  %5839 = vst.msk [vmem:[%s2 + $0x4f0] sm:$0xff] %vm5682, %v5622
  %5840 = vst [vmem:[%s2 + $0x4f8] sm:$0xff] %v5231
  %5841 = vst [vmem:[%s2 + $0x500] sm:$0xff] %v5233
  %5842 = vst.msk [vmem:[%s2 + $0x508] sm:$0xff] %vm5682, %v5627
  %5843 = vst [vmem:[%s2 + $0x510] sm:$0xff] %v5237
  %5844 = vst [vmem:[%s2 + $0x518] sm:$0xff] %v5239
  %5845 = vst.msk [vmem:[%s2 + $0x520] sm:$0xff] %vm5682, %v5632
  %5846 = vst [vmem:[%s2 + $0x528] sm:$0xff] %v5243
  %5847 = vst [vmem:[%s2 + $0x530] sm:$0xff] %v5245
  %5848 = vst.msk [vmem:[%s2 + $0x538] sm:$0xff] %vm5682, %v5637
  %5849 = vst [vmem:[%s2 + $0x540] sm:$0xff] %v5249
  %5850 = vst [vmem:[%s2 + $0x548] sm:$0xff] %v5251
  %5851 = vst.msk [vmem:[%s2 + $0x550] sm:$0xff] %vm5682, %v5642
  %5852 = vst [vmem:[%s2 + $0x558] sm:$0xff] %v5255
  %5853 = vst [vmem:[%s2 + $0x560] sm:$0xff] %v5257
  %5854 = vst.msk [vmem:[%s2 + $0x568] sm:$0xff] %vm5682, %v5647
  %5855 = vst [vmem:[%s2 + $0x570] sm:$0xff] %v5261
  %5856 = vst [vmem:[%s2 + $0x578] sm:$0xff] %v5263
  %5857 = vst.msk [vmem:[%s2 + $0x580] sm:$0xff] %vm5682, %v5652
  %5858 = vst [vmem:[%s2 + $0x588] sm:$0xff] %v5267
  %5859 = vst [vmem:[%s2 + $0x590] sm:$0xff] %v5269
  %5860 = vst.msk [vmem:[%s2 + $0x598] sm:$0xff] %vm5682, %v5657
  %5861 = vst [vmem:[%s2 + $0x5a0] sm:$0xff] %v5273
  %5862 = vst [vmem:[%s2 + $0x5a8] sm:$0xff] %v5275
  %5863 = vst.msk [vmem:[%s2 + $0x5b0] sm:$0xff] %vm5682, %v5662
  %5864 = vst [vmem:[%s2 + $0x5b8] sm:$0xff] %v5279
  %5865 = vst [vmem:[%s2 + $0x5c0] sm:$0xff] %v5281
  %5866 = vst.msk [vmem:[%s2 + $0x5c8] sm:$0xff] %vm5682, %v5667
  %5867 = vst [vmem:[%s2 + $0x5d0] sm:$0xff] %v5285
  %5868 = vst [vmem:[%s2 + $0x5d8] sm:$0xff] %v5287
  %5869 = vst.msk [vmem:[%s2 + $0x5e0] sm:$0xff] %vm5682, %v5672
  %5870 = vst [vmem:[%s2 + $0x5e8] sm:$0xff] %v5291
  %5871 = vst [vmem:[%s2 + $0x5f0] sm:$0xff] %v5293
  %5872 = vst.msk [vmem:[%s2 + $0x5f8] sm:$0xff] %vm5682, %v5677
  // Predicated region
  $region10: #{tpu_custom_call.1} parent=0 // pred_check
    _
  $region11: #{tpu_custom_call.1} parent=0 // pred_check_branch
    %5874 = sbr.rel (0) target = $region13
  $region12: #{tpu_custom_call.1} parent=0 // pred_region
    _
  $region13: #{tpu_custom_call.1} parent=0 // pred_fallthru
    _
  // Predicated region
  $region14: #{tpu_custom_call.1} parent=0 // pred_check
    _
  $region15: #{tpu_custom_call.1} parent=0 // pred_check_branch
    %5876 = sbr.rel (0) target = $region17
  $region16: #{tpu_custom_call.1} parent=0 // pred_region
    _
  $region17: #{tpu_custom_call.1} parent=0 // pred_fallthru
    _

</llo_original>
